<compile_context>
chip_gen: v5e
topology: v5e:2x2
jax: 0.10.0
libtpu: 0.0.40
codegen_flags: <defaults>
</compile_context>

<pallas_src>
import numpy as np
import jax
import jax.numpy as jnp
from jax import lax
from jax.experimental import pallas as pl
from jax.experimental.pallas import tpu as pltpu


# ----------------------------- fused Pallas kernel --------------------------

def _lenet_kernel(x_ref, w1_ref, b1_ref, sw1e_ref, sw1o_ref,
                  w2_ref, b2_ref, sw2e_ref, sw2o_ref,
                  wf1_ref, bf1_ref, wf2_ref, bf2_ref, wf3_ref, bf3_ref,
                  o_ref):
    f32 = jnp.float32
    bf16 = jnp.bfloat16

    x = x_ref[...]                            # (R, 96) bf16, R = block_b*32, lane = w*3+c
    r = x.shape[0]

    # ---- conv1 + bias + ReLU (K-concatenated bands, taps at row offsets 0..4) ----
    m1 = r - 4
    lhs = jnp.concatenate([x[i:i + m1, :] for i in range(5)], axis=1)        # (m1, 480)
    a = jnp.dot(lhs, w1_ref[...], preferred_element_type=f32)                # (m1, 168)
    a = jnp.maximum(a + b1_ref[...], 0.0).astype(bf16)

    # ---- max-pool 2x2 #1: width via exact 0/1 column-selection dots (bf16);
    #      height pooling is folded into the row stride of the conv2 taps. -------
    p = jnp.maximum(jnp.dot(a, sw1e_ref[...], preferred_element_type=f32),
                    jnp.dot(a, sw1o_ref[...], preferred_element_type=f32))   # (m1, 84)
    y = jnp.maximum(p[:-1, :], p[1:, :]).astype(bf16)                        # (m1-1, 84)

    # ---- conv2 + bias + ReLU (taps at row offsets 0,2,4,6,8) --------------------
    m2 = r - 13
    lhs = jnp.concatenate([y[2 * i:2 * i + m2, :] for i in range(5)], axis=1)  # (m2, 420)
    a = jnp.dot(lhs, w2_ref[...], preferred_element_type=f32)                # (m2, 160)
    a = jnp.maximum(a + b2_ref[...], 0.0).astype(bf16)

    # ---- max-pool 2x2 #2 --------------------------------------------------------
    p = jnp.maximum(jnp.dot(a, sw2e_ref[...], preferred_element_type=f32),
                    jnp.dot(a, sw2o_ref[...], preferred_element_type=f32))   # (m2, 80)
    y = jnp.maximum(p[:-2, :], p[2:, :]).astype(bf16)                        # (m2-2, 80)

    # ---- fc1 + ReLU (NCHW flatten folded into taps at row offsets 0,4,8,12,16) ---
    m3 = r - 31
    lhs = jnp.concatenate([y[4 * h:4 * h + m3, :] for h in range(5)], axis=1)  # (m3, 400)
    z = jnp.dot(lhs, wf1_ref[...], preferred_element_type=f32)               # (m3, 120)
    z = jnp.maximum(z + bf1_ref[...], 0.0).astype(bf16)

    # ---- fc2 + ReLU, fc3 (no ReLU on fc3, matching the PyTorch module) -----------
    z = jnp.maximum(jnp.dot(z, wf2_ref[...], preferred_element_type=f32)
                    + bf2_ref[...], 0.0).astype(bf16)
    z = jnp.dot(z, wf3_ref[...], preferred_element_type=f32) + bf3_ref[...]  # (m3, 10)

    # Image b's logits live at row 32*b; pad to a dense (R, 10) tile and store once.
    o_ref[...] = jnp.concatenate(
        [z, jnp.zeros((r - m3, z.shape[1]), f32)], axis=0).astype(o_ref.dtype)


# ------------------------- host-side weight repacking -----------------------

def _conv_band_cat(w_oihw, w_in):
    """K-concatenated banded (Toeplitz-along-W) matrix: (kh*w_in*ic, w_out*oc)."""
    oc, ic, kh, kw = w_oihw.shape
    w_out = w_in - kw + 1
    m = np.zeros((kh, w_in * ic, w_out * oc), np.float32)
    for i in range(kh):
        for wo in range(w_out):
            for j in range(kw):
                wi = wo + j
                m[i, wi * ic:(wi + 1) * ic, wo * oc:(wo + 1) * oc] = w_oihw[:, :, i, j].T
    return m.reshape(kh * w_in * ic, w_out * oc)


def _pool_col_select(wp_n, c):
    """Exact 0/1 lane-selection matrices (even, odd): each (2*wp_n*c, wp_n*c)."""
    s = np.zeros((2, 2 * wp_n * c, wp_n * c), np.float32)
    for wp in range(wp_n):
        for ch in range(c):
            s[0, (2 * wp) * c + ch, wp * c + ch] = 1.0
            s[1, (2 * wp + 1) * c + ch, wp * c + ch] = 1.0
    return s[0], s[1]


def _fc1_cat(fc1_w, h=5, w=5, c=16):
    """(h*w*c, 120): row h*80 + (w*16+cc)  <->  torch flat index cc*25 + h*5 + w."""
    m = np.zeros((h, w * c, fc1_w.shape[0]), np.float32)
    for hh in range(h):
        for ww in range(w):
            for cc in range(c):
                m[hh, ww * c + cc, :] = fc1_w[:, cc * h * w + hh * w + ww]
    return m.reshape(h * w * c, fc1_w.shape[0])


def prepare_params(p):
    """One-time repack of PyTorch-layout LeNet params into the kernel's form."""
    c1 = np.asarray(p["conv1_w"], np.float32); b1 = np.asarray(p["conv1_b"], np.float32)
    c2 = np.asarray(p["conv2_w"], np.float32); b2 = np.asarray(p["conv2_b"], np.float32)
    f1 = np.asarray(p["fc1_w"], np.float32);   g1 = np.asarray(p["fc1_b"], np.float32)
    f2 = np.asarray(p["fc2_w"], np.float32);   g2 = np.asarray(p["fc2_b"], np.float32)
    f3 = np.asarray(p["fc3_w"], np.float32);   g3 = np.asarray(p["fc3_b"], np.float32)
    sw1e, sw1o = _pool_col_select(14, 6)
    sw2e, sw2o = _pool_col_select(5, 16)
    bf16 = jnp.bfloat16
    return {
        "w1":   jnp.asarray(_conv_band_cat(c1, 32), bf16),           # (480, 168)
        "b1":   jnp.asarray(np.tile(b1, 28)[None, :], jnp.float32),  # (1, 168)
        "sw1e": jnp.asarray(sw1e, bf16),                             # (168, 84)
        "sw1o": jnp.asarray(sw1o, bf16),                             # (168, 84)
        "w2":   jnp.asarray(_conv_band_cat(c2, 14), bf16),           # (420, 160)
        "b2":   jnp.asarray(np.tile(b2, 10)[None, :], jnp.float32),  # (1, 160)
        "sw2e": jnp.asarray(sw2e, bf16),                             # (160, 80)
        "sw2o": jnp.asarray(sw2o, bf16),                             # (160, 80)
        "wf1":  jnp.asarray(_fc1_cat(f1), bf16),                     # (400, 120)
        "bf1":  jnp.asarray(g1[None, :], jnp.float32),               # (1, 120)
        "wf2":  jnp.asarray(f2.T, bf16),                             # (120, 84)
        "bf2":  jnp.asarray(g2[None, :], jnp.float32),               # (1, 84)
        "wf3":  jnp.asarray(f3.T, bf16),                             # (84, 10)
        "bf3":  jnp.asarray(g3[None, :], jnp.float32),               # (1, 10)
    }


# ------------------------------- fused forward -------------------------------

def _round_up(a, b):
    return (a + b - 1) // b * b


def lenet_forward(x_nchw, kp, block_b=128):
    n, c, h, w = x_nchw.shape
    assert (c, h, w) == (3, 32, 32), "LeNet expects 3x32x32 inputs"

    bb = min(block_b, _round_up(n, 8))        # images per grid step
    n_pad = _round_up(n, bb)
    rows = bb * 32                            # rows per block (stride 32 per image)

    # NCHW -> (N*32, 96) bf16 slab: row = 32*b + h, lane = w*3 + c  (layout plumbing).
    x2d = jnp.transpose(x_nchw, (0, 2, 3, 1)).reshape(n, 32, 96).astype(jnp.bfloat16)
    if n_pad != n:
        x2d = jnp.concatenate(
            [x2d, jnp.zeros((n_pad - n, 32, 96), jnp.bfloat16)], axis=0)
    x2d = x2d.reshape(n_pad * 32, 96)

    weights = (kp["w1"], kp["b1"], kp["sw1e"], kp["sw1o"],
               kp["w2"], kp["b2"], kp["sw2e"], kp["sw2o"],
               kp["wf1"], kp["bf1"], kp["wf2"], kp["bf2"], kp["wf3"], kp["bf3"])

    def resident(a):                          # whole array, VMEM-resident across the grid
        zeros = (0,) * a.ndim
        return pl.BlockSpec(a.shape, lambda b, _z=zeros: _z)

    in_specs = [pl.BlockSpec((rows, 96), lambda b: (b, 0))]
    in_specs += [resident(a) for a in weights]
    out_specs = pl.BlockSpec((rows, 10), lambda b: (b, 0))

    m1, m2, m3 = rows - 4, rows - 13, rows - 31
    flops_per_block = 2 * (m1 * 480 * 168 + 2 * m1 * 168 * 84
                           + m2 * 420 * 160 + 2 * m2 * 160 * 80
                           + m3 * 400 * 120 + m3 * 120 * 84 + m3 * 84 * 10)
    n_blocks = n_pad // bb
    bytes_accessed = (sum(int(a.size) * a.dtype.itemsize for a in weights)
                      + int(x2d.size) * x2d.dtype.itemsize + n_pad * 32 * 10 * 4)

    out = pl.pallas_call(
        _lenet_kernel,
        out_shape=jax.ShapeDtypeStruct((n_pad * 32, 10), jnp.float32),
        grid=(n_blocks,),
        in_specs=in_specs,
        out_specs=out_specs,
        compiler_params=pltpu.CompilerParams(
            dimension_semantics=("parallel",),      # image blocks are independent
            vmem_limit_bytes=48 * 1024 * 1024),     # safe on 128 MiB (v5e/v6e) and 64 MiB (v7x)
        cost_estimate=pl.CostEstimate(flops=int(n_blocks * flops_per_block),
                                      transcendentals=0,
                                      bytes_accessed=int(bytes_accessed)),
    )(x2d, *weights)

    # Each image's logits sit at row 32*b of the output slab.
    return out.reshape(n_pad, 32, 10)[:n, 0, :]


# --------------------------- params & plain-JAX reference --------------------

def init_params(key):
    ks = jax.random.split(key, 10)

    def u(k, shape, fan_in):
        bound = 1.0 / float(np.sqrt(fan_in))
        return jax.random.uniform(k, shape, jnp.float32, -bound, bound)

    return {
        "conv1_w": u(ks[0], (6, 3, 5, 5), 3 * 5 * 5),
        "conv1_b": u(ks[1], (6,), 3 * 5 * 5),
        "conv2_w": u(ks[2], (16, 6, 5, 5), 6 * 5 * 5),
        "conv2_b": u(ks[3], (16,), 6 * 5 * 5),
        "fc1_w":   u(ks[4], (120, 400), 400),
        "fc1_b":   u(ks[5], (120,), 400),
        "fc2_w":   u(ks[6], (84, 120), 120),
        "fc2_b":   u(ks[7], (84,), 120),
        "fc3_w":   u(ks[8], (10, 84), 84),
        "fc3_b":   u(ks[9], (10,), 84),
    }


def lenet_forward_ref(x_nchw, p):
    """Plain-JAX (f32) reference matching the PyTorch module exactly."""
    dn = ("NCHW", "OIHW", "NCHW")
    x = lax.conv_general_dilated(x_nchw, p["conv1_w"], (1, 1), "VALID",
                                 dimension_numbers=dn)
    x = jax.nn.relu(x + p["conv1_b"][None, :, None, None])
    x = lax.reduce_window(x, -jnp.inf, lax.max, (1, 1, 2, 2), (1, 1, 2, 2), "VALID")
    x = lax.conv_general_dilated(x, p["conv2_w"], (1, 1), "VALID",
                                 dimension_numbers=dn)
    x = jax.nn.relu(x + p["conv2_b"][None, :, None, None])
    x = lax.reduce_window(x, -jnp.inf, lax.max, (1, 1, 2, 2), (1, 1, 2, 2), "VALID")
    x = x.reshape(x.shape[0], -1)                       # NCHW flatten (c*25 + h*5 + w)
    x = jax.nn.relu(x @ p["fc1_w"].T + p["fc1_b"])
    x = jax.nn.relu(x @ p["fc2_w"].T + p["fc2_b"])
    x = x @ p["fc3_w"].T + p["fc3_b"]                   # no ReLU on fc3
    return x


# ------------------------------------ main -----------------------------------

if __name__ == "__main__":
    key = jax.random.PRNGKey(0)
    k_x, k_p = jax.random.split(key)
    # LeNet's fc1 (16*5*5 = 400) implies 3x32x32 inputs.
    x = jax.random.normal(k_x, (2, 3, 32, 32), dtype=jnp.float32)
    params = init_params(k_p)
    kparams = prepare_params(params)        # one-time host-side repack (bf16 weights)

    fwd = jax.jit(lenet_forward)
    out = jax.block_until_ready(fwd(x, kparams))
    ref = jax.block_until_ready(lenet_forward_ref(x, params))

    assert out.shape == (2, 10), out.shape
    # bf16 matmul inputs / f32 accumulation vs f32 reference -> loosened tolerance.
    max_err = float(jnp.max(jnp.abs(out - ref)))
    assert jnp.allclose(out, ref, rtol=4e-2, atol=4e-2), ("mismatch vs reference", max_err)
    print("KERNEL_OK")
</pallas_src>

<mosaic_0001>
module attributes {stable_mosaic.version = 11 : i64} {
  func.func @_lenet_kernel(%arg0: i32, %arg1: memref<256x96xbf16, #tpu.memory_space<vmem>>, %arg2: memref<480x168xbf16, #tpu.memory_space<vmem>>, %arg3: memref<1x168xf32, #tpu.memory_space<vmem>>, %arg4: memref<168x84xbf16, #tpu.memory_space<vmem>>, %arg5: memref<168x84xbf16, #tpu.memory_space<vmem>>, %arg6: memref<420x160xbf16, #tpu.memory_space<vmem>>, %arg7: memref<1x160xf32, #tpu.memory_space<vmem>>, %arg8: memref<160x80xbf16, #tpu.memory_space<vmem>>, %arg9: memref<160x80xbf16, #tpu.memory_space<vmem>>, %arg10: memref<400x120xbf16, #tpu.memory_space<vmem>>, %arg11: memref<1x120xf32, #tpu.memory_space<vmem>>, %arg12: memref<120x84xbf16, #tpu.memory_space<vmem>>, %arg13: memref<1x84xf32, #tpu.memory_space<vmem>>, %arg14: memref<84x10xbf16, #tpu.memory_space<vmem>>, %arg15: memref<1x10xf32, #tpu.memory_space<vmem>>, %arg16: memref<256x10xf32, #tpu.memory_space<vmem>>) attributes {dimension_semantics = [#tpu.dimension_semantics<parallel>], iteration_bounds = array<i64: 1>, scalar_prefetch = 0 : i64, scratch_operands = 0 : i64, tpu.core_type = #tpu.core_type<tc>, window_params = [{transform_indices = @transform_0, window_bounds = array<i64: 256, 96>}, {pipeline_mode = #tpu.pipeline_mode<synchronous>, transform_indices = @transform_1, window_bounds = array<i64: 480, 168>}, {pipeline_mode = #tpu.pipeline_mode<synchronous>, transform_indices = @transform_2, window_bounds = array<i64: 1, 168>}, {pipeline_mode = #tpu.pipeline_mode<synchronous>, transform_indices = @transform_3, window_bounds = array<i64: 168, 84>}, {pipeline_mode = #tpu.pipeline_mode<synchronous>, transform_indices = @transform_4, window_bounds = array<i64: 168, 84>}, {pipeline_mode = #tpu.pipeline_mode<synchronous>, transform_indices = @transform_5, window_bounds = array<i64: 420, 160>}, {pipeline_mode = #tpu.pipeline_mode<synchronous>, transform_indices = @transform_6, window_bounds = array<i64: 1, 160>}, {pipeline_mode = #tpu.pipeline_mode<synchronous>, transform_indices = @transform_7, window_bounds = array<i64: 160, 80>}, {pipeline_mode = #tpu.pipeline_mode<synchronous>, transform_indices = @transform_8, window_bounds = array<i64: 160, 80>}, {pipeline_mode = #tpu.pipeline_mode<synchronous>, transform_indices = @transform_9, window_bounds = array<i64: 400, 120>}, {pipeline_mode = #tpu.pipeline_mode<synchronous>, transform_indices = @transform_10, window_bounds = array<i64: 1, 120>}, {pipeline_mode = #tpu.pipeline_mode<synchronous>, transform_indices = @transform_11, window_bounds = array<i64: 120, 84>}, {pipeline_mode = #tpu.pipeline_mode<synchronous>, transform_indices = @transform_12, window_bounds = array<i64: 1, 84>}, {pipeline_mode = #tpu.pipeline_mode<synchronous>, transform_indices = @transform_13, window_bounds = array<i64: 84, 10>}, {pipeline_mode = #tpu.pipeline_mode<synchronous>, transform_indices = @transform_14, window_bounds = array<i64: 1, 10>}, {transform_indices = @transform_15, window_bounds = array<i64: 256, 10>}]} {
    %c0 = arith.constant 0 : index
    %c0_0 = arith.constant 0 : index
    %0 = vector.load %arg1[%c0, %c0_0] : memref<256x96xbf16, #tpu.memory_space<vmem>>, vector<256x96xbf16>
    %1 = vector.extract_strided_slice %0 {offsets = [0, 0], sizes = [252, 96], strides = [1, 1]} : vector<256x96xbf16> to vector<252x96xbf16>
    %2 = vector.extract_strided_slice %0 {offsets = [1, 0], sizes = [252, 96], strides = [1, 1]} : vector<256x96xbf16> to vector<252x96xbf16>
    %3 = vector.extract_strided_slice %0 {offsets = [2, 0], sizes = [252, 96], strides = [1, 1]} : vector<256x96xbf16> to vector<252x96xbf16>
    %4 = vector.extract_strided_slice %0 {offsets = [3, 0], sizes = [252, 96], strides = [1, 1]} : vector<256x96xbf16> to vector<252x96xbf16>
    %5 = vector.extract_strided_slice %0 {offsets = [4, 0], sizes = [252, 96], strides = [1, 1]} : vector<256x96xbf16> to vector<252x96xbf16>
    %6 = tpu.concatenate %1, %2, %3, %4, %5 in 1 : vector<252x96xbf16>, vector<252x96xbf16>, vector<252x96xbf16>, vector<252x96xbf16>, vector<252x96xbf16> -> vector<252x480xbf16>
    %c0_1 = arith.constant 0 : index
    %c0_2 = arith.constant 0 : index
    %7 = vector.load %arg2[%c0_1, %c0_2] : memref<480x168xbf16, #tpu.memory_space<vmem>>, vector<480x168xbf16>
    %cst = arith.constant dense<0.000000e+00> : vector<252x168xf32>
    %8 = tpu.matmul %6, %7, %cst {dimension_numbers = #tpu.dot_dimension_numbers<[1], [0], [0], [1], [0, 0, 1, 1], [], []>} : vector<252x480xbf16>, vector<480x168xbf16>, vector<252x168xf32> -> vector<252x168xf32>
    %c0_3 = arith.constant 0 : index
    %c0_4 = arith.constant 0 : index
    %9 = vector.load %arg3[%c0_3, %c0_4] : memref<1x168xf32, #tpu.memory_space<vmem>>, vector<1x168xf32>
    %10 = vector.broadcast %9 : vector<1x168xf32> to vector<252x168xf32>
    %11 = arith.addf %8, %10 : vector<252x168xf32>
    %cst_5 = arith.constant 0.000000e+00 : f32
    %12 = vector.broadcast %cst_5 : f32 to vector<252x168xf32>
    %13 = arith.maximumf %11, %12 : vector<252x168xf32>
    %14 = arith.truncf %13 : vector<252x168xf32> to vector<252x168xbf16>
    %c0_6 = arith.constant 0 : index
    %c0_7 = arith.constant 0 : index
    %15 = vector.load %arg4[%c0_6, %c0_7] : memref<168x84xbf16, #tpu.memory_space<vmem>>, vector<168x84xbf16>
    %cst_8 = arith.constant dense<0.000000e+00> : vector<252x84xf32>
    %16 = tpu.matmul %14, %15, %cst_8 {dimension_numbers = #tpu.dot_dimension_numbers<[1], [0], [0], [1], [0, 0, 1, 1], [], []>} : vector<252x168xbf16>, vector<168x84xbf16>, vector<252x84xf32> -> vector<252x84xf32>
    %c0_9 = arith.constant 0 : index
    %c0_10 = arith.constant 0 : index
    %17 = vector.load %arg5[%c0_9, %c0_10] : memref<168x84xbf16, #tpu.memory_space<vmem>>, vector<168x84xbf16>
    %cst_11 = arith.constant dense<0.000000e+00> : vector<252x84xf32>
    %18 = tpu.matmul %14, %17, %cst_11 {dimension_numbers = #tpu.dot_dimension_numbers<[1], [0], [0], [1], [0, 0, 1, 1], [], []>} : vector<252x168xbf16>, vector<168x84xbf16>, vector<252x84xf32> -> vector<252x84xf32>
    %19 = arith.maximumf %16, %18 : vector<252x84xf32>
    %20 = vector.extract_strided_slice %19 {offsets = [0, 0], sizes = [251, 84], strides = [1, 1]} : vector<252x84xf32> to vector<251x84xf32>
    %21 = vector.extract_strided_slice %19 {offsets = [1, 0], sizes = [251, 84], strides = [1, 1]} : vector<252x84xf32> to vector<251x84xf32>
    %22 = arith.maximumf %20, %21 : vector<251x84xf32>
    %23 = arith.truncf %22 : vector<251x84xf32> to vector<251x84xbf16>
    %24 = vector.extract_strided_slice %23 {offsets = [0, 0], sizes = [243, 84], strides = [1, 1]} : vector<251x84xbf16> to vector<243x84xbf16>
    %25 = vector.extract_strided_slice %23 {offsets = [2, 0], sizes = [243, 84], strides = [1, 1]} : vector<251x84xbf16> to vector<243x84xbf16>
    %26 = vector.extract_strided_slice %23 {offsets = [4, 0], sizes = [243, 84], strides = [1, 1]} : vector<251x84xbf16> to vector<243x84xbf16>
    %27 = vector.extract_strided_slice %23 {offsets = [6, 0], sizes = [243, 84], strides = [1, 1]} : vector<251x84xbf16> to vector<243x84xbf16>
    %28 = vector.extract_strided_slice %23 {offsets = [8, 0], sizes = [243, 84], strides = [1, 1]} : vector<251x84xbf16> to vector<243x84xbf16>
    %29 = tpu.concatenate %24, %25, %26, %27, %28 in 1 : vector<243x84xbf16>, vector<243x84xbf16>, vector<243x84xbf16>, vector<243x84xbf16>, vector<243x84xbf16> -> vector<243x420xbf16>
    %c0_12 = arith.constant 0 : index
    %c0_13 = arith.constant 0 : index
    %30 = vector.load %arg6[%c0_12, %c0_13] : memref<420x160xbf16, #tpu.memory_space<vmem>>, vector<420x160xbf16>
    %cst_14 = arith.constant dense<0.000000e+00> : vector<243x160xf32>
    %31 = tpu.matmul %29, %30, %cst_14 {dimension_numbers = #tpu.dot_dimension_numbers<[1], [0], [0], [1], [0, 0, 1, 1], [], []>} : vector<243x420xbf16>, vector<420x160xbf16>, vector<243x160xf32> -> vector<243x160xf32>
    %c0_15 = arith.constant 0 : index
    %c0_16 = arith.constant 0 : index
    %32 = vector.load %arg7[%c0_15, %c0_16] : memref<1x160xf32, #tpu.memory_space<vmem>>, vector<1x160xf32>
    %33 = vector.broadcast %32 : vector<1x160xf32> to vector<243x160xf32>
    %34 = arith.addf %31, %33 : vector<243x160xf32>
    %cst_17 = arith.constant 0.000000e+00 : f32
    %35 = vector.broadcast %cst_17 : f32 to vector<243x160xf32>
    %36 = arith.maximumf %34, %35 : vector<243x160xf32>
    %37 = arith.truncf %36 : vector<243x160xf32> to vector<243x160xbf16>
    %c0_18 = arith.constant 0 : index
    %c0_19 = arith.constant 0 : index
    %38 = vector.load %arg8[%c0_18, %c0_19] : memref<160x80xbf16, #tpu.memory_space<vmem>>, vector<160x80xbf16>
    %cst_20 = arith.constant dense<0.000000e+00> : vector<243x80xf32>
    %39 = tpu.matmul %37, %38, %cst_20 {dimension_numbers = #tpu.dot_dimension_numbers<[1], [0], [0], [1], [0, 0, 1, 1], [], []>} : vector<243x160xbf16>, vector<160x80xbf16>, vector<243x80xf32> -> vector<243x80xf32>
    %c0_21 = arith.constant 0 : index
    %c0_22 = arith.constant 0 : index
    %40 = vector.load %arg9[%c0_21, %c0_22] : memref<160x80xbf16, #tpu.memory_space<vmem>>, vector<160x80xbf16>
    %cst_23 = arith.constant dense<0.000000e+00> : vector<243x80xf32>
    %41 = tpu.matmul %37, %40, %cst_23 {dimension_numbers = #tpu.dot_dimension_numbers<[1], [0], [0], [1], [0, 0, 1, 1], [], []>} : vector<243x160xbf16>, vector<160x80xbf16>, vector<243x80xf32> -> vector<243x80xf32>
    %42 = arith.maximumf %39, %41 : vector<243x80xf32>
    %43 = vector.extract_strided_slice %42 {offsets = [0, 0], sizes = [241, 80], strides = [1, 1]} : vector<243x80xf32> to vector<241x80xf32>
    %44 = vector.extract_strided_slice %42 {offsets = [2, 0], sizes = [241, 80], strides = [1, 1]} : vector<243x80xf32> to vector<241x80xf32>
    %45 = arith.maximumf %43, %44 : vector<241x80xf32>
    %46 = arith.truncf %45 : vector<241x80xf32> to vector<241x80xbf16>
    %47 = vector.extract_strided_slice %46 {offsets = [0, 0], sizes = [225, 80], strides = [1, 1]} : vector<241x80xbf16> to vector<225x80xbf16>
    %48 = vector.extract_strided_slice %46 {offsets = [4, 0], sizes = [225, 80], strides = [1, 1]} : vector<241x80xbf16> to vector<225x80xbf16>
    %49 = vector.extract_strided_slice %46 {offsets = [8, 0], sizes = [225, 80], strides = [1, 1]} : vector<241x80xbf16> to vector<225x80xbf16>
    %50 = vector.extract_strided_slice %46 {offsets = [12, 0], sizes = [225, 80], strides = [1, 1]} : vector<241x80xbf16> to vector<225x80xbf16>
    %51 = vector.extract_strided_slice %46 {offsets = [16, 0], sizes = [225, 80], strides = [1, 1]} : vector<241x80xbf16> to vector<225x80xbf16>
    %52 = tpu.concatenate %47, %48, %49, %50, %51 in 1 : vector<225x80xbf16>, vector<225x80xbf16>, vector<225x80xbf16>, vector<225x80xbf16>, vector<225x80xbf16> -> vector<225x400xbf16>
    %c0_24 = arith.constant 0 : index
    %c0_25 = arith.constant 0 : index
    %53 = vector.load %arg10[%c0_24, %c0_25] : memref<400x120xbf16, #tpu.memory_space<vmem>>, vector<400x120xbf16>
    %cst_26 = arith.constant dense<0.000000e+00> : vector<225x120xf32>
    %54 = tpu.matmul %52, %53, %cst_26 {dimension_numbers = #tpu.dot_dimension_numbers<[1], [0], [0], [1], [0, 0, 1, 1], [], []>} : vector<225x400xbf16>, vector<400x120xbf16>, vector<225x120xf32> -> vector<225x120xf32>
    %c0_27 = arith.constant 0 : index
    %c0_28 = arith.constant 0 : index
    %55 = vector.load %arg11[%c0_27, %c0_28] : memref<1x120xf32, #tpu.memory_space<vmem>>, vector<1x120xf32>
    %56 = vector.broadcast %55 : vector<1x120xf32> to vector<225x120xf32>
    %57 = arith.addf %54, %56 : vector<225x120xf32>
    %cst_29 = arith.constant 0.000000e+00 : f32
    %58 = vector.broadcast %cst_29 : f32 to vector<225x120xf32>
    %59 = arith.maximumf %57, %58 : vector<225x120xf32>
    %60 = arith.truncf %59 : vector<225x120xf32> to vector<225x120xbf16>
    %c0_30 = arith.constant 0 : index
    %c0_31 = arith.constant 0 : index
    %61 = vector.load %arg12[%c0_30, %c0_31] : memref<120x84xbf16, #tpu.memory_space<vmem>>, vector<120x84xbf16>
    %cst_32 = arith.constant dense<0.000000e+00> : vector<225x84xf32>
    %62 = tpu.matmul %60, %61, %cst_32 {dimension_numbers = #tpu.dot_dimension_numbers<[1], [0], [0], [1], [0, 0, 1, 1], [], []>} : vector<225x120xbf16>, vector<120x84xbf16>, vector<225x84xf32> -> vector<225x84xf32>
    %c0_33 = arith.constant 0 : index
    %c0_34 = arith.constant 0 : index
    %63 = vector.load %arg13[%c0_33, %c0_34] : memref<1x84xf32, #tpu.memory_space<vmem>>, vector<1x84xf32>
    %64 = vector.broadcast %63 : vector<1x84xf32> to vector<225x84xf32>
    %65 = arith.addf %62, %64 : vector<225x84xf32>
    %cst_35 = arith.constant 0.000000e+00 : f32
    %66 = vector.broadcast %cst_35 : f32 to vector<225x84xf32>
    %67 = arith.maximumf %65, %66 : vector<225x84xf32>
    %68 = arith.truncf %67 : vector<225x84xf32> to vector<225x84xbf16>
    %c0_36 = arith.constant 0 : index
    %c0_37 = arith.constant 0 : index
    %69 = vector.load %arg14[%c0_36, %c0_37] : memref<84x10xbf16, #tpu.memory_space<vmem>>, vector<84x10xbf16>
    %cst_38 = arith.constant dense<0.000000e+00> : vector<225x10xf32>
    %70 = tpu.matmul %68, %69, %cst_38 {dimension_numbers = #tpu.dot_dimension_numbers<[1], [0], [0], [1], [0, 0, 1, 1], [], []>} : vector<225x84xbf16>, vector<84x10xbf16>, vector<225x10xf32> -> vector<225x10xf32>
    %c0_39 = arith.constant 0 : index
    %c0_40 = arith.constant 0 : index
    %71 = vector.load %arg15[%c0_39, %c0_40] : memref<1x10xf32, #tpu.memory_space<vmem>>, vector<1x10xf32>
    %72 = vector.broadcast %71 : vector<1x10xf32> to vector<225x10xf32>
    %73 = arith.addf %70, %72 : vector<225x10xf32>
    %cst_41 = arith.constant 0.000000e+00 : f32
    %74 = vector.broadcast %cst_41 : f32 to vector<31x10xf32>
    %75 = tpu.concatenate %73, %74 in 0 : vector<225x10xf32>, vector<31x10xf32> -> vector<256x10xf32>
    %c0_42 = arith.constant 0 : index
    %c0_43 = arith.constant 0 : index
    %76 = vector.load %arg16[%c0_42, %c0_43] : memref<256x10xf32, #tpu.memory_space<vmem>>, vector<256x10xf32>
    tpu.vector_store %arg16[%c0_42, %c0_43], %75 {strides = array<i32>} : memref<256x10xf32, #tpu.memory_space<vmem>>, vector<256x10xf32>,
    return
  }
  func.func @transform_0(%arg0: i32) -> (i32, i32) {
    %c0_i32 = arith.constant 0 : i32
    %c0_i32_0 = arith.constant 0 : i32
    return %arg0, %c0_i32 : i32, i32
  }
  func.func @transform_1(%arg0: i32) -> (i32, i32) {
    %c0_i32 = arith.constant 0 : i32
    %c0_i32_0 = arith.constant 0 : i32
    %c0_i32_1 = arith.constant 0 : i32
    return %c0_i32, %c0_i32_0 : i32, i32
  }
  func.func @transform_2(%arg0: i32) -> (i32, i32) {
    %c0_i32 = arith.constant 0 : i32
    %c0_i32_0 = arith.constant 0 : i32
    %c0_i32_1 = arith.constant 0 : i32
    return %c0_i32, %c0_i32_0 : i32, i32
  }
  func.func @transform_3(%arg0: i32) -> (i32, i32) {
    %c0_i32 = arith.constant 0 : i32
    %c0_i32_0 = arith.constant 0 : i32
    %c0_i32_1 = arith.constant 0 : i32
    return %c0_i32, %c0_i32_0 : i32, i32
  }
  func.func @transform_4(%arg0: i32) -> (i32, i32) {
    %c0_i32 = arith.constant 0 : i32
    %c0_i32_0 = arith.constant 0 : i32
    %c0_i32_1 = arith.constant 0 : i32
    return %c0_i32, %c0_i32_0 : i32, i32
  }
  func.func @transform_5(%arg0: i32) -> (i32, i32) {
    %c0_i32 = arith.constant 0 : i32
    %c0_i32_0 = arith.constant 0 : i32
    %c0_i32_1 = arith.constant 0 : i32
    return %c0_i32, %c0_i32_0 : i32, i32
  }
  func.func @transform_6(%arg0: i32) -> (i32, i32) {
    %c0_i32 = arith.constant 0 : i32
    %c0_i32_0 = arith.constant 0 : i32
    %c0_i32_1 = arith.constant 0 : i32
    return %c0_i32, %c0_i32_0 : i32, i32
  }
  func.func @transform_7(%arg0: i32) -> (i32, i32) {
    %c0_i32 = arith.constant 0 : i32
    %c0_i32_0 = arith.constant 0 : i32
    %c0_i32_1 = arith.constant 0 : i32
    return %c0_i32, %c0_i32_0 : i32, i32
  }
  func.func @transform_8(%arg0: i32) -> (i32, i32) {
    %c0_i32 = arith.constant 0 : i32
    %c0_i32_0 = arith.constant 0 : i32
    %c0_i32_1 = arith.constant 0 : i32
    return %c0_i32, %c0_i32_0 : i32, i32
  }
  func.func @transform_9(%arg0: i32) -> (i32, i32) {
    %c0_i32 = arith.constant 0 : i32
    %c0_i32_0 = arith.constant 0 : i32
    %c0_i32_1 = arith.constant 0 : i32
    return %c0_i32, %c0_i32_0 : i32, i32
  }
  func.func @transform_10(%arg0: i32) -> (i32, i32) {
    %c0_i32 = arith.constant 0 : i32
    %c0_i32_0 = arith.constant 0 : i32
    %c0_i32_1 = arith.constant 0 : i32
    return %c0_i32, %c0_i32_0 : i32, i32
  }
  func.func @transform_11(%arg0: i32) -> (i32, i32) {
    %c0_i32 = arith.constant 0 : i32
    %c0_i32_0 = arith.constant 0 : i32
    %c0_i32_1 = arith.constant 0 : i32
    return %c0_i32, %c0_i32_0 : i32, i32
  }
  func.func @transform_12(%arg0: i32) -> (i32, i32) {
    %c0_i32 = arith.constant 0 : i32
    %c0_i32_0 = arith.constant 0 : i32
    %c0_i32_1 = arith.constant 0 : i32
    return %c0_i32, %c0_i32_0 : i32, i32
  }
  func.func @transform_13(%arg0: i32) -> (i32, i32) {
    %c0_i32 = arith.constant 0 : i32
    %c0_i32_0 = arith.constant 0 : i32
    %c0_i32_1 = arith.constant 0 : i32
    return %c0_i32, %c0_i32_0 : i32, i32
  }
  func.func @transform_14(%arg0: i32) -> (i32, i32) {
    %c0_i32 = arith.constant 0 : i32
    %c0_i32_0 = arith.constant 0 : i32
    %c0_i32_1 = arith.constant 0 : i32
    return %c0_i32, %c0_i32_0 : i32, i32
  }
  func.func @transform_15(%arg0: i32) -> (i32, i32) {
    %c0_i32 = arith.constant 0 : i32
    %c0_i32_0 = arith.constant 0 : i32
    return %arg0, %c0_i32 : i32, i32
  }
}

</mosaic_0001>

<llo_original>
// kernel: lenet_forward.1
$region0: #{lenet_forward.1}
  #allocation0 [shape = 'u32[]', space=smem, size = 0x4, offset = 0x4, fixed_abs, tag = 'smem constant byte address 0x4 - core index']
  #allocation1 [shape = 'u32[72,128]{1,0:T(1,128)}', space=vmem, size = 0x9000, scoped, tag = 'internal scratch']
  %s0 = inlined_call_operand.vmem [shape: bf16[256,96], index: 0, kind: input, shape index: {}]
  %s1 = inlined_call_operand.vmem [shape: bf16[480,168], index: 1, kind: input, shape index: {}]
  %s2 = inlined_call_operand.vmem [shape: f32[1,168], index: 2, kind: input, shape index: {}]
  %s3 = inlined_call_operand.vmem [shape: bf16[168,84], index: 3, kind: input, shape index: {}]
  %s4 = inlined_call_operand.vmem [shape: bf16[168,84], index: 4, kind: input, shape index: {}]
  %s5 = inlined_call_operand.vmem [shape: bf16[420,160], index: 5, kind: input, shape index: {}]
  %s6 = inlined_call_operand.vmem [shape: f32[1,160], index: 6, kind: input, shape index: {}]
  %s7 = inlined_call_operand.vmem [shape: bf16[160,80], index: 7, kind: input, shape index: {}]
  %s8 = inlined_call_operand.vmem [shape: bf16[160,80], index: 8, kind: input, shape index: {}]
  %s9 = inlined_call_operand.vmem [shape: bf16[400,120], index: 9, kind: input, shape index: {}]
  %s10 = inlined_call_operand.vmem [shape: f32[1,120], index: 10, kind: input, shape index: {}]
  %s11 = inlined_call_operand.vmem [shape: bf16[120,84], index: 11, kind: input, shape index: {}]
  %s12 = inlined_call_operand.vmem [shape: f32[1,84], index: 12, kind: input, shape index: {}]
  %s13 = inlined_call_operand.vmem [shape: bf16[84,10], index: 13, kind: input, shape index: {}]
  %s14 = inlined_call_operand.vmem [shape: f32[1,10], index: 14, kind: input, shape index: {}]
  %s15 = inlined_call_operand.vmem [shape: f32[256,10], index: 15, kind: output, shape index: {}]
  %s16 = sld [smem:[#allocation0]]
  $region70: #{lenet_forward.1} parent=0
    _
  %s18 = ssub.s32 1, %s16
  %s19 = scalar_select 0, %s18, %s16
  // Predicated region
  $region2: #{lenet_forward.1} parent=0 // pred_check
    _
  $region3: #{lenet_forward.1} parent=0 // pred_check_branch
    %21 = sbr.rel (0) target = $region5
  $region4: #{lenet_forward.1} parent=0 // pred_region
    _
  $region5: #{lenet_forward.1} parent=0 // pred_fallthru
    _
  // Predicated region
  $region6: #{lenet_forward.1} parent=0 // pred_check
    _
  $region7: #{lenet_forward.1} parent=0 // pred_check_branch
    %23 = sbr.rel (0) target = $region9
  $region8: #{lenet_forward.1} parent=0 // pred_region
    _
  $region9: #{lenet_forward.1} parent=0 // pred_fallthru
    _
  // Predicated region
  $region10: #{lenet_forward.1} parent=0 // pred_check
    _
  $region11: #{lenet_forward.1} parent=0 // pred_check_branch
    %25 = sbr.rel (0) target = $region13
  $region12: #{lenet_forward.1} parent=0 // pred_region
    _
  $region13: #{lenet_forward.1} parent=0 // pred_fallthru
    _
  // Predicated region
  $region14: #{lenet_forward.1} parent=0 // pred_check
    _
  $region15: #{lenet_forward.1} parent=0 // pred_check_branch
    %27 = sbr.rel (0) target = $region17
  $region16: #{lenet_forward.1} parent=0 // pred_region
    _
  $region17: #{lenet_forward.1} parent=0 // pred_fallthru
    _
  // Predicated region
  $region18: #{lenet_forward.1} parent=0 // pred_check
    _
  $region19: #{lenet_forward.1} parent=0 // pred_check_branch
    %29 = sbr.rel (0) target = $region21
  $region20: #{lenet_forward.1} parent=0 // pred_region
    _
  $region21: #{lenet_forward.1} parent=0 // pred_fallthru
    _
  // Predicated region
  $region22: #{lenet_forward.1} parent=0 // pred_check
    _
  $region23: #{lenet_forward.1} parent=0 // pred_check_branch
    %31 = sbr.rel (0) target = $region25
  $region24: #{lenet_forward.1} parent=0 // pred_region
    _
  $region25: #{lenet_forward.1} parent=0 // pred_fallthru
    _
  // Predicated region
  $region26: #{lenet_forward.1} parent=0 // pred_check
    _
  $region27: #{lenet_forward.1} parent=0 // pred_check_branch
    %33 = sbr.rel (0) target = $region29
  $region28: #{lenet_forward.1} parent=0 // pred_region
    _
  $region29: #{lenet_forward.1} parent=0 // pred_fallthru
    _
  // Predicated region
  $region30: #{lenet_forward.1} parent=0 // pred_check
    _
  $region31: #{lenet_forward.1} parent=0 // pred_check_branch
    %35 = sbr.rel (0) target = $region33
  $region32: #{lenet_forward.1} parent=0 // pred_region
    _
  $region33: #{lenet_forward.1} parent=0 // pred_fallthru
    _
  // Predicated region
  $region34: #{lenet_forward.1} parent=0 // pred_check
    _
  $region35: #{lenet_forward.1} parent=0 // pred_check_branch
    %37 = sbr.rel (0) target = $region37
  $region36: #{lenet_forward.1} parent=0 // pred_region
    _
  $region37: #{lenet_forward.1} parent=0 // pred_fallthru
    _
  // Predicated region
  $region38: #{lenet_forward.1} parent=0 // pred_check
    _
  $region39: #{lenet_forward.1} parent=0 // pred_check_branch
    %39 = sbr.rel (0) target = $region41
  $region40: #{lenet_forward.1} parent=0 // pred_region
    _
  $region41: #{lenet_forward.1} parent=0 // pred_fallthru
    _
  // Predicated region
  $region42: #{lenet_forward.1} parent=0 // pred_check
    _
  $region43: #{lenet_forward.1} parent=0 // pred_check_branch
    %41 = sbr.rel (0) target = $region45
  $region44: #{lenet_forward.1} parent=0 // pred_region
    _
  $region45: #{lenet_forward.1} parent=0 // pred_fallthru
    _
  // Predicated region
  $region46: #{lenet_forward.1} parent=0 // pred_check
    _
  $region47: #{lenet_forward.1} parent=0 // pred_check_branch
    %43 = sbr.rel (0) target = $region49
  $region48: #{lenet_forward.1} parent=0 // pred_region
    _
  $region49: #{lenet_forward.1} parent=0 // pred_fallthru
    _
  // Predicated region
  $region50: #{lenet_forward.1} parent=0 // pred_check
    _
  $region51: #{lenet_forward.1} parent=0 // pred_check_branch
    %45 = sbr.rel (0) target = $region53
  $region52: #{lenet_forward.1} parent=0 // pred_region
    _
  $region53: #{lenet_forward.1} parent=0 // pred_fallthru
    _
  // Predicated region
  $region54: #{lenet_forward.1} parent=0 // pred_check
    _
  $region55: #{lenet_forward.1} parent=0 // pred_check_branch
    %47 = sbr.rel (0) target = $region57
  $region56: #{lenet_forward.1} parent=0 // pred_region
    _
  $region57: #{lenet_forward.1} parent=0 // pred_fallthru
    _
  // Predicated region
  $region58: #{lenet_forward.1} parent=0 // pred_check
    _
  $region59: #{lenet_forward.1} parent=0 // pred_check_branch
    %49 = sbr.rel (0) target = $region61
  $region60: #{lenet_forward.1} parent=0 // pred_region
    _
  $region61: #{lenet_forward.1} parent=0 // pred_fallthru
    _
  %v51 = vld [vmem:[%s0] sm:$0xf]
  %v52 = vld [vmem:[%s0 + $0x4] sm:$0xf]
  %v53 = vld [vmem:[%s0 + $0x8] sm:$0xf]
  %v54 = vld [vmem:[%s0 + $0xc] sm:$0xf]
  %v55 = vld [vmem:[%s0 + $0x10] sm:$0xf]
  %v56 = vld [vmem:[%s0 + $0x14] sm:$0xf]
  %v57 = vld [vmem:[%s0 + $0x18] sm:$0xf]
  %v58 = vld [vmem:[%s0 + $0x1c] sm:$0xf]
  %v59 = vld [vmem:[%s0 + $0x20] sm:$0xf]
  %v60 = vld [vmem:[%s0 + $0x24] sm:$0xf]
  %v61 = vld [vmem:[%s0 + $0x28] sm:$0xf]
  %v62 = vld [vmem:[%s0 + $0x2c] sm:$0xf]
  %v63 = vld [vmem:[%s0 + $0x30] sm:$0xf]
  %v64 = vld [vmem:[%s0 + $0x34] sm:$0xf]
  %v65 = vld [vmem:[%s0 + $0x38] sm:$0xf]
  %v66 = vld [vmem:[%s0 + $0x3c] sm:$0xf]
  %v67 = vld [vmem:[%s0 + $0x40] sm:$0xf]
  %v68 = vld [vmem:[%s0 + $0x44] sm:$0xf]
  %v69 = vld [vmem:[%s0 + $0x48] sm:$0xf]
  %v70 = vld [vmem:[%s0 + $0x4c] sm:$0xf]
  %v71 = vld [vmem:[%s0 + $0x50] sm:$0xf]
  %v72 = vld [vmem:[%s0 + $0x54] sm:$0xf]
  %v73 = vld [vmem:[%s0 + $0x58] sm:$0xf]
  %v74 = vld [vmem:[%s0 + $0x5c] sm:$0xf]
  %v75 = vld [vmem:[%s0 + $0x60] sm:$0xf]
  %v76 = vld [vmem:[%s0 + $0x64] sm:$0xf]
  %v77 = vld [vmem:[%s0 + $0x68] sm:$0xf]
  %v78 = vld [vmem:[%s0 + $0x6c] sm:$0xf]
  %v79 = vld [vmem:[%s0 + $0x70] sm:$0xf]
  %v80 = vld [vmem:[%s0 + $0x74] sm:$0xf]
  %v81 = vld [vmem:[%s0 + $0x78] sm:$0xf]
  %v82 = vld [vmem:[%s0 + $0x7c] sm:$0xf]
  %v115 = vunpack.c.l.b16 %v51
  %v116 = vunpack.c.l.b16 %v52
  %v117 = vunpack.c.l.b16 %v53
  %v118 = vunpack.c.l.b16 %v54
  %v119 = vunpack.c.l.b16 %v55
  %v120 = vunpack.c.l.b16 %v56
  %v121 = vunpack.c.l.b16 %v57
  %v122 = vunpack.c.l.b16 %v58
  %v123 = vunpack.c.l.b16 %v59
  %v124 = vunpack.c.l.b16 %v60
  %v125 = vunpack.c.l.b16 %v61
  %v126 = vunpack.c.l.b16 %v62
  %v127 = vunpack.c.l.b16 %v63
  %v128 = vunpack.c.l.b16 %v64
  %v129 = vunpack.c.l.b16 %v65
  %v130 = vunpack.c.l.b16 %v66
  %v131 = vunpack.c.l.b16 %v67
  %v132 = vunpack.c.l.b16 %v68
  %v133 = vunpack.c.l.b16 %v69
  %v134 = vunpack.c.l.b16 %v70
  %v135 = vunpack.c.l.b16 %v71
  %v136 = vunpack.c.l.b16 %v72
  %v137 = vunpack.c.l.b16 %v73
  %v138 = vunpack.c.l.b16 %v74
  %v139 = vunpack.c.l.b16 %v75
  %v140 = vunpack.c.l.b16 %v76
  %v141 = vunpack.c.l.b16 %v77
  %v142 = vunpack.c.l.b16 %v78
  %v143 = vunpack.c.l.b16 %v79
  %v144 = vunpack.c.l.b16 %v80
  %v145 = vunpack.c.l.b16 %v81
  %v146 = vunpack.c.l.b16 %v82
  %v147 = vpack.c.b16 %v116, %v115
  %v148 = vpack.c.b16 %v118, %v117
  %v149 = vpack.c.b16 %v120, %v119
  %v150 = vpack.c.b16 %v122, %v121
  %v151 = vpack.c.b16 %v124, %v123
  %v152 = vpack.c.b16 %v126, %v125
  %v153 = vpack.c.b16 %v128, %v127
  %v154 = vpack.c.b16 %v130, %v129
  %v155 = vpack.c.b16 %v132, %v131
  %v156 = vpack.c.b16 %v134, %v133
  %v157 = vpack.c.b16 %v136, %v135
  %v158 = vpack.c.b16 %v138, %v137
  %v159 = vpack.c.b16 %v140, %v139
  %v160 = vpack.c.b16 %v142, %v141
  %v161 = vpack.c.b16 %v144, %v143
  %v162 = vpack.c.b16 %v146, %v145
  %vm163 = vsmask.f32 7424
  %v165 = vshrl.u32 %v147, 16
  %v167 = vshll.u32 %v147, 16
  %v169 = vrot.slane %v167, 1
  %v170 = vor.u32 %v165, %v169
  %v172 = vshll.u32 %v148, 16
  %v174 = vrot.slane %v172, 1
  %v175 = vsel %vm163, %v170, %v174
  %v176 = vshrl.u32 %v148, 16
  %v178 = vor.u32 %v176, %v174
  %v180 = vshll.u32 %v149, 16
  %v182 = vrot.slane %v180, 1
  %v183 = vsel %vm163, %v178, %v182
  %v184 = vshrl.u32 %v149, 16
  %v186 = vor.u32 %v184, %v182
  %v188 = vshll.u32 %v150, 16
  %v190 = vrot.slane %v188, 1
  %v191 = vsel %vm163, %v186, %v190
  %v192 = vshrl.u32 %v150, 16
  %v194 = vor.u32 %v192, %v190
  %v196 = vshll.u32 %v151, 16
  %v198 = vrot.slane %v196, 1
  %v199 = vsel %vm163, %v194, %v198
  %v200 = vshrl.u32 %v151, 16
  %v202 = vor.u32 %v200, %v198
  %v204 = vshll.u32 %v152, 16
  %v206 = vrot.slane %v204, 1
  %v207 = vsel %vm163, %v202, %v206
  %v208 = vshrl.u32 %v152, 16
  %v210 = vor.u32 %v208, %v206
  %v212 = vshll.u32 %v153, 16
  %v214 = vrot.slane %v212, 1
  %v215 = vsel %vm163, %v210, %v214
  %v216 = vshrl.u32 %v153, 16
  %v218 = vor.u32 %v216, %v214
  %v220 = vshll.u32 %v154, 16
  %v222 = vrot.slane %v220, 1
  %v223 = vsel %vm163, %v218, %v222
  %v224 = vshrl.u32 %v154, 16
  %v226 = vor.u32 %v224, %v222
  %v228 = vshll.u32 %v155, 16
  %v230 = vrot.slane %v228, 1
  %v231 = vsel %vm163, %v226, %v230
  %v232 = vshrl.u32 %v155, 16
  %v234 = vor.u32 %v232, %v230
  %v236 = vshll.u32 %v156, 16
  %v238 = vrot.slane %v236, 1
  %v239 = vsel %vm163, %v234, %v238
  %v240 = vshrl.u32 %v156, 16
  %v242 = vor.u32 %v240, %v238
  %v244 = vshll.u32 %v157, 16
  %v246 = vrot.slane %v244, 1
  %v247 = vsel %vm163, %v242, %v246
  %v248 = vshrl.u32 %v157, 16
  %v250 = vor.u32 %v248, %v246
  %v252 = vshll.u32 %v158, 16
  %v254 = vrot.slane %v252, 1
  %v255 = vsel %vm163, %v250, %v254
  %v256 = vshrl.u32 %v158, 16
  %v258 = vor.u32 %v256, %v254
  %v260 = vshll.u32 %v159, 16
  %v262 = vrot.slane %v260, 1
  %v263 = vsel %vm163, %v258, %v262
  %v264 = vshrl.u32 %v159, 16
  %v266 = vor.u32 %v264, %v262
  %v268 = vshll.u32 %v160, 16
  %v270 = vrot.slane %v268, 1
  %v271 = vsel %vm163, %v266, %v270
  %v272 = vshrl.u32 %v160, 16
  %v274 = vor.u32 %v272, %v270
  %v276 = vshll.u32 %v161, 16
  %v278 = vrot.slane %v276, 1
  %v279 = vsel %vm163, %v274, %v278
  %v280 = vshrl.u32 %v161, 16
  %v282 = vor.u32 %v280, %v278
  %v284 = vshll.u32 %v162, 16
  %v286 = vrot.slane %v284, 1
  %v287 = vsel %vm163, %v282, %v286
  %v288 = vshrl.u32 %v162, 16
  %v290 = vor.u32 %v288, %v286
  %291 = vrot.lane.b32.xlu0 %v175, 96
  %v292 = vpop.permute.xlu0 %291
  %293 = vrot.lane.b32.xlu0 %v183, 96
  %v294 = vpop.permute.xlu0 %293
  %295 = vrot.lane.b32.xlu0 %v191, 96
  %v296 = vpop.permute.xlu0 %295
  %297 = vrot.lane.b32.xlu0 %v199, 96
  %v298 = vpop.permute.xlu0 %297
  %299 = vrot.lane.b32.xlu0 %v207, 96
  %v300 = vpop.permute.xlu0 %299
  %301 = vrot.lane.b32.xlu0 %v215, 96
  %v302 = vpop.permute.xlu0 %301
  %303 = vrot.lane.b32.xlu0 %v223, 96
  %v304 = vpop.permute.xlu0 %303
  %305 = vrot.lane.b32.xlu0 %v231, 96
  %v306 = vpop.permute.xlu0 %305
  %307 = vrot.lane.b32.xlu0 %v239, 96
  %v308 = vpop.permute.xlu0 %307
  %309 = vrot.lane.b32.xlu0 %v247, 96
  %v310 = vpop.permute.xlu0 %309
  %311 = vrot.lane.b32.xlu0 %v255, 96
  %v312 = vpop.permute.xlu0 %311
  %313 = vrot.lane.b32.xlu0 %v263, 96
  %v314 = vpop.permute.xlu0 %313
  %315 = vrot.lane.b32.xlu0 %v271, 96
  %v316 = vpop.permute.xlu0 %315
  %317 = vrot.lane.b32.xlu0 %v279, 96
  %v318 = vpop.permute.xlu0 %317
  %319 = vrot.lane.b32.xlu0 %v287, 96
  %v320 = vpop.permute.xlu0 %319
  %321 = vrot.lane.b32.xlu0 %v290, 96
  %v322 = vpop.permute.xlu0 %321
  %vm323 = vcmask 1046528
  %v324 = vrot.slane %v147, 1
  %v325 = vrot.slane %v148, 1
  %v326 = vsel %vm323, %v324, %v325
  %v327 = vrot.slane %v149, 1
  %v328 = vsel %vm323, %v325, %v327
  %v329 = vrot.slane %v150, 1
  %v330 = vsel %vm323, %v327, %v329
  %v331 = vrot.slane %v151, 1
  %v332 = vsel %vm323, %v329, %v331
  %v333 = vrot.slane %v152, 1
  %v334 = vsel %vm323, %v331, %v333
  %v335 = vrot.slane %v153, 1
  %v336 = vsel %vm323, %v333, %v335
  %v337 = vrot.slane %v154, 1
  %v338 = vsel %vm323, %v335, %v337
  %v339 = vrot.slane %v155, 1
  %v340 = vsel %vm323, %v337, %v339
  %v341 = vrot.slane %v156, 1
  %v342 = vsel %vm323, %v339, %v341
  %v343 = vrot.slane %v157, 1
  %v344 = vsel %vm323, %v341, %v343
  %v345 = vrot.slane %v158, 1
  %v346 = vsel %vm323, %v343, %v345
  %v347 = vrot.slane %v159, 1
  %v348 = vsel %vm323, %v345, %v347
  %v349 = vrot.slane %v160, 1
  %v350 = vsel %vm323, %v347, %v349
  %v351 = vrot.slane %v161, 1
  %v352 = vsel %vm323, %v349, %v351
  %v353 = vrot.slane %v162, 1
  %v354 = vsel %vm323, %v351, %v353
  %355 = vrot.lane.b32.xlu0 %v326, 64
  %v356 = vpop.permute.xlu0 %355
  %357 = vrot.lane.b32.xlu0 %v328, 64
  %v358 = vpop.permute.xlu0 %357
  %359 = vrot.lane.b32.xlu0 %v330, 64
  %v360 = vpop.permute.xlu0 %359
  %361 = vrot.lane.b32.xlu0 %v332, 64
  %v362 = vpop.permute.xlu0 %361
  %363 = vrot.lane.b32.xlu0 %v334, 64
  %v364 = vpop.permute.xlu0 %363
  %365 = vrot.lane.b32.xlu0 %v336, 64
  %v366 = vpop.permute.xlu0 %365
  %367 = vrot.lane.b32.xlu0 %v338, 64
  %v368 = vpop.permute.xlu0 %367
  %369 = vrot.lane.b32.xlu0 %v340, 64
  %v370 = vpop.permute.xlu0 %369
  %371 = vrot.lane.b32.xlu0 %v342, 64
  %v372 = vpop.permute.xlu0 %371
  %373 = vrot.lane.b32.xlu0 %v344, 64
  %v374 = vpop.permute.xlu0 %373
  %375 = vrot.lane.b32.xlu0 %v346, 64
  %v376 = vpop.permute.xlu0 %375
  %377 = vrot.lane.b32.xlu0 %v348, 64
  %v378 = vpop.permute.xlu0 %377
  %379 = vrot.lane.b32.xlu0 %v350, 64
  %v380 = vpop.permute.xlu0 %379
  %381 = vrot.lane.b32.xlu0 %v352, 64
  %v382 = vpop.permute.xlu0 %381
  %383 = vrot.lane.b32.xlu0 %v354, 64
  %v384 = vpop.permute.xlu0 %383
  %385 = vrot.lane.b32.xlu0 %v353, 64
  %v386 = vpop.permute.xlu0 %385
  %vm387 = vsmask.f32 6400
  %v388 = vrot.slane %v165, 1
  %v389 = vrot.slane %v167, 2
  %v390 = vor.u32 %v388, %v389
  %v391 = vrot.slane %v176, 1
  %v392 = vrot.slane %v172, 2
  %v393 = vor.u32 %v391, %v392
  %v394 = vsel %vm387, %v390, %v393
  %v395 = vrot.slane %v184, 1
  %v396 = vrot.slane %v180, 2
  %v397 = vor.u32 %v395, %v396
  %v398 = vsel %vm387, %v393, %v397
  %v399 = vrot.slane %v192, 1
  %v400 = vrot.slane %v188, 2
  %v401 = vor.u32 %v399, %v400
  %v402 = vsel %vm387, %v397, %v401
  %v403 = vrot.slane %v200, 1
  %v404 = vrot.slane %v196, 2
  %v405 = vor.u32 %v403, %v404
  %v406 = vsel %vm387, %v401, %v405
  %v407 = vrot.slane %v208, 1
  %v408 = vrot.slane %v204, 2
  %v409 = vor.u32 %v407, %v408
  %v410 = vsel %vm387, %v405, %v409
  %v411 = vrot.slane %v216, 1
  %v412 = vrot.slane %v212, 2
  %v413 = vor.u32 %v411, %v412
  %v414 = vsel %vm387, %v409, %v413
  %v415 = vrot.slane %v224, 1
  %v416 = vrot.slane %v220, 2
  %v417 = vor.u32 %v415, %v416
  %v418 = vsel %vm387, %v413, %v417
  %v419 = vrot.slane %v232, 1
  %v420 = vrot.slane %v228, 2
  %v421 = vor.u32 %v419, %v420
  %v422 = vsel %vm387, %v417, %v421
  %v423 = vrot.slane %v240, 1
  %v424 = vrot.slane %v236, 2
  %v425 = vor.u32 %v423, %v424
  %v426 = vsel %vm387, %v421, %v425
  %v427 = vrot.slane %v248, 1
  %v428 = vrot.slane %v244, 2
  %v429 = vor.u32 %v427, %v428
  %v430 = vsel %vm387, %v425, %v429
  %v431 = vrot.slane %v256, 1
  %v432 = vrot.slane %v252, 2
  %v433 = vor.u32 %v431, %v432
  %v434 = vsel %vm387, %v429, %v433
  %v435 = vrot.slane %v264, 1
  %v436 = vrot.slane %v260, 2
  %v437 = vor.u32 %v435, %v436
  %v438 = vsel %vm387, %v433, %v437
  %v439 = vrot.slane %v272, 1
  %v440 = vrot.slane %v268, 2
  %v441 = vor.u32 %v439, %v440
  %v442 = vsel %vm387, %v437, %v441
  %v443 = vrot.slane %v280, 1
  %v444 = vrot.slane %v276, 2
  %v445 = vor.u32 %v443, %v444
  %v446 = vsel %vm387, %v441, %v445
  %v447 = vrot.slane %v288, 1
  %v448 = vrot.slane %v284, 2
  %v449 = vor.u32 %v447, %v448
  %v450 = vsel %vm387, %v445, %v449
  %451 = vrot.lane.b32.xlu0 %v394, 32
  %v452 = vpop.permute.xlu0 %451
  %453 = vrot.lane.b32.xlu0 %v398, 32
  %v454 = vpop.permute.xlu0 %453
  %455 = vrot.lane.b32.xlu0 %v402, 32
  %v456 = vpop.permute.xlu0 %455
  %457 = vrot.lane.b32.xlu0 %v406, 32
  %v458 = vpop.permute.xlu0 %457
  %459 = vrot.lane.b32.xlu0 %v410, 32
  %v460 = vpop.permute.xlu0 %459
  %461 = vrot.lane.b32.xlu0 %v414, 32
  %v462 = vpop.permute.xlu0 %461
  %463 = vrot.lane.b32.xlu0 %v418, 32
  %v464 = vpop.permute.xlu0 %463
  %465 = vrot.lane.b32.xlu0 %v422, 32
  %v466 = vpop.permute.xlu0 %465
  %467 = vrot.lane.b32.xlu0 %v426, 32
  %v468 = vpop.permute.xlu0 %467
  %469 = vrot.lane.b32.xlu0 %v430, 32
  %v470 = vpop.permute.xlu0 %469
  %471 = vrot.lane.b32.xlu0 %v434, 32
  %v472 = vpop.permute.xlu0 %471
  %473 = vrot.lane.b32.xlu0 %v438, 32
  %v474 = vpop.permute.xlu0 %473
  %475 = vrot.lane.b32.xlu0 %v442, 32
  %v476 = vpop.permute.xlu0 %475
  %477 = vrot.lane.b32.xlu0 %v446, 32
  %v478 = vpop.permute.xlu0 %477
  %479 = vrot.lane.b32.xlu0 %v450, 32
  %v480 = vpop.permute.xlu0 %479
  %481 = vrot.lane.b32.xlu0 %v449, 32
  %v482 = vpop.permute.xlu0 %481
  %vm483 = vcmask 1045504
  %v484 = vrot.slane %v147, 2
  %v485 = vrot.slane %v148, 2
  %v486 = vsel %vm483, %v484, %v485
  %v487 = vrot.slane %v149, 2
  %v488 = vsel %vm483, %v485, %v487
  %v489 = vrot.slane %v150, 2
  %v490 = vsel %vm483, %v487, %v489
  %v491 = vrot.slane %v151, 2
  %v492 = vsel %vm483, %v489, %v491
  %v493 = vrot.slane %v152, 2
  %v494 = vsel %vm483, %v491, %v493
  %v495 = vrot.slane %v153, 2
  %v496 = vsel %vm483, %v493, %v495
  %v497 = vrot.slane %v154, 2
  %v498 = vsel %vm483, %v495, %v497
  %v499 = vrot.slane %v155, 2
  %v500 = vsel %vm483, %v497, %v499
  %v501 = vrot.slane %v156, 2
  %v502 = vsel %vm483, %v499, %v501
  %v503 = vrot.slane %v157, 2
  %v504 = vsel %vm483, %v501, %v503
  %v505 = vrot.slane %v158, 2
  %v506 = vsel %vm483, %v503, %v505
  %v507 = vrot.slane %v159, 2
  %v508 = vsel %vm483, %v505, %v507
  %v509 = vrot.slane %v160, 2
  %v510 = vsel %vm483, %v507, %v509
  %v511 = vrot.slane %v161, 2
  %v512 = vsel %vm483, %v509, %v511
  %v513 = vrot.slane %v162, 2
  %v514 = vsel %vm483, %v511, %v513
  %vm515 = vcmask 785408
  %v517 = vsel %vm515, %v147, %v292
  %v520 = vsel %vm515, %v148, %v294
  %v523 = vsel %vm515, %v149, %v296
  %v526 = vsel %vm515, %v150, %v298
  %v529 = vsel %vm515, %v151, %v300
  %v532 = vsel %vm515, %v152, %v302
  %v535 = vsel %vm515, %v153, %v304
  %v538 = vsel %vm515, %v154, %v306
  %v541 = vsel %vm515, %v155, %v308
  %v544 = vsel %vm515, %v156, %v310
  %v547 = vsel %vm515, %v157, %v312
  %v550 = vsel %vm515, %v158, %v314
  %v553 = vsel %vm515, %v159, %v316
  %v556 = vsel %vm515, %v160, %v318
  %v559 = vsel %vm515, %v161, %v320
  %v562 = vsel %vm515, %v162, %v322
  %vm564 = vcmask 523264
  %v566 = vsel %vm564, %v292, %v356
  %v569 = vsel %vm564, %v294, %v358
  %v572 = vsel %vm564, %v296, %v360
  %v575 = vsel %vm564, %v298, %v362
  %v578 = vsel %vm564, %v300, %v364
  %v581 = vsel %vm564, %v302, %v366
  %v584 = vsel %vm564, %v304, %v368
  %v587 = vsel %vm564, %v306, %v370
  %v590 = vsel %vm564, %v308, %v372
  %v593 = vsel %vm564, %v310, %v374
  %v596 = vsel %vm564, %v312, %v376
  %v599 = vsel %vm564, %v314, %v378
  %v602 = vsel %vm564, %v316, %v380
  %v605 = vsel %vm564, %v318, %v382
  %v608 = vsel %vm564, %v320, %v384
  %v611 = vsel %vm564, %v322, %v386
  %vm613 = vcmask 261120
  %v615 = vsel %vm613, %v356, %v452
  %v618 = vsel %vm613, %v358, %v454
  %v621 = vsel %vm613, %v360, %v456
  %v624 = vsel %vm613, %v362, %v458
  %v627 = vsel %vm613, %v364, %v460
  %v630 = vsel %vm613, %v366, %v462
  %v633 = vsel %vm613, %v368, %v464
  %v636 = vsel %vm613, %v370, %v466
  %v639 = vsel %vm613, %v372, %v468
  %v642 = vsel %vm613, %v374, %v470
  %v645 = vsel %vm613, %v376, %v472
  %v648 = vsel %vm613, %v378, %v474
  %v651 = vsel %vm613, %v380, %v476
  %v654 = vsel %vm613, %v382, %v478
  %v657 = vsel %vm613, %v384, %v480
  %v660 = vsel %vm613, %v386, %v482
  %v662 = vld [vmem:[%s1] sm:$0xff]
  %v663 = vld [vmem:[%s1 + $0x8] sm:$0xff]
  %v664 = vld [vmem:[%s1 + $0x10] sm:$0xff]
  %v665 = vld [vmem:[%s1 + $0x18] sm:$0xff]
  %v666 = vld [vmem:[%s1 + $0x20] sm:$0xff]
  %v667 = vld [vmem:[%s1 + $0x28] sm:$0xff]
  %v668 = vld [vmem:[%s1 + $0x30] sm:$0xff]
  %v669 = vld [vmem:[%s1 + $0x38] sm:$0xff]
  %v670 = vld [vmem:[%s1 + $0x40] sm:$0xff]
  %v671 = vld [vmem:[%s1 + $0x48] sm:$0xff]
  %v672 = vld [vmem:[%s1 + $0x50] sm:$0xff]
  %v673 = vld [vmem:[%s1 + $0x58] sm:$0xff]
  %v674 = vld [vmem:[%s1 + $0x60] sm:$0xff]
  %v675 = vld [vmem:[%s1 + $0x68] sm:$0xff]
  %v676 = vld [vmem:[%s1 + $0x70] sm:$0xff]
  %v677 = vld [vmem:[%s1 + $0x78] sm:$0xff]
  %v678 = vld [vmem:[%s1 + $0x80] sm:$0xff]
  %v679 = vld [vmem:[%s1 + $0x88] sm:$0xff]
  %v680 = vld [vmem:[%s1 + $0x90] sm:$0xff]
  %v681 = vld [vmem:[%s1 + $0x98] sm:$0xff]
  %v682 = vld [vmem:[%s1 + $0xa0] sm:$0xff]
  %v683 = vld [vmem:[%s1 + $0xa8] sm:$0xff]
  %v684 = vld [vmem:[%s1 + $0xb0] sm:$0xff]
  %v685 = vld [vmem:[%s1 + $0xb8] sm:$0xff]
  %v686 = vld [vmem:[%s1 + $0xc0] sm:$0xff]
  %v687 = vld [vmem:[%s1 + $0xc8] sm:$0xff]
  %v688 = vld [vmem:[%s1 + $0xd0] sm:$0xff]
  %v689 = vld [vmem:[%s1 + $0xd8] sm:$0xff]
  %v690 = vld [vmem:[%s1 + $0xe0] sm:$0xff]
  %v691 = vld [vmem:[%s1 + $0xe8] sm:$0xff]
  %v692 = vld [vmem:[%s1 + $0xf0] sm:$0xff]
  %v693 = vld [vmem:[%s1 + $0xf8] sm:$0xff]
  %v694 = vld [vmem:[%s1 + $0x100] sm:$0xff]
  %v695 = vld [vmem:[%s1 + $0x108] sm:$0xff]
  %v696 = vld [vmem:[%s1 + $0x110] sm:$0xff]
  %v697 = vld [vmem:[%s1 + $0x118] sm:$0xff]
  %v698 = vld [vmem:[%s1 + $0x120] sm:$0xff]
  %v699 = vld [vmem:[%s1 + $0x128] sm:$0xff]
  %v700 = vld [vmem:[%s1 + $0x130] sm:$0xff]
  %v701 = vld [vmem:[%s1 + $0x138] sm:$0xff]
  %v702 = vld [vmem:[%s1 + $0x140] sm:$0xff]
  %v703 = vld [vmem:[%s1 + $0x148] sm:$0xff]
  %v704 = vld [vmem:[%s1 + $0x150] sm:$0xff]
  %v705 = vld [vmem:[%s1 + $0x158] sm:$0xff]
  %v706 = vld [vmem:[%s1 + $0x160] sm:$0xff]
  %v707 = vld [vmem:[%s1 + $0x168] sm:$0xff]
  %v708 = vld [vmem:[%s1 + $0x170] sm:$0xff]
  %v709 = vld [vmem:[%s1 + $0x178] sm:$0xff]
  %v710 = vld [vmem:[%s1 + $0x180] sm:$0xff]
  %v711 = vld [vmem:[%s1 + $0x188] sm:$0xff]
  %v712 = vld [vmem:[%s1 + $0x190] sm:$0xff]
  %v713 = vld [vmem:[%s1 + $0x198] sm:$0xff]
  %v714 = vld [vmem:[%s1 + $0x1a0] sm:$0xff]
  %v715 = vld [vmem:[%s1 + $0x1a8] sm:$0xff]
  %v716 = vld [vmem:[%s1 + $0x1b0] sm:$0xff]
  %v717 = vld [vmem:[%s1 + $0x1b8] sm:$0xff]
  %v718 = vld [vmem:[%s1 + $0x1c0] sm:$0xff]
  %v719 = vld [vmem:[%s1 + $0x1c8] sm:$0xff]
  %v720 = vld [vmem:[%s1 + $0x1d0] sm:$0xff]
  %v721 = vld [vmem:[%s1 + $0x1d8] sm:$0xff]
  %v722 = vld [vmem:[%s2] sm:$0x3]
  %v724 = vperm.slane %v722, 0
  %v725 = vperm.slane %v722, 1
  %v788 = vunpack.c.l.b16 %v662
  %v789 = vunpack.c.h.b16 %v662
  %v790 = vunpack.c.l.b16 %v663
  %v791 = vunpack.c.h.b16 %v663
  %v792 = vunpack.c.l.b16 %v664
  %v793 = vunpack.c.h.b16 %v664
  %v794 = vunpack.c.l.b16 %v665
  %v795 = vunpack.c.h.b16 %v665
  %v796 = vunpack.c.l.b16 %v666
  %v797 = vunpack.c.h.b16 %v666
  %v798 = vunpack.c.l.b16 %v667
  %v799 = vunpack.c.h.b16 %v667
  %v800 = vunpack.c.l.b16 %v668
  %v801 = vunpack.c.h.b16 %v668
  %v802 = vunpack.c.l.b16 %v669
  %v803 = vunpack.c.h.b16 %v669
  %v804 = vunpack.c.l.b16 %v670
  %v805 = vunpack.c.h.b16 %v670
  %v806 = vunpack.c.l.b16 %v671
  %v807 = vunpack.c.h.b16 %v671
  %v808 = vunpack.c.l.b16 %v672
  %v809 = vunpack.c.h.b16 %v672
  %v810 = vunpack.c.l.b16 %v673
  %v811 = vunpack.c.h.b16 %v673
  %v812 = vunpack.c.l.b16 %v674
  %v813 = vunpack.c.h.b16 %v674
  %v814 = vunpack.c.l.b16 %v675
  %v815 = vunpack.c.h.b16 %v675
  %v816 = vunpack.c.l.b16 %v676
  %v817 = vunpack.c.h.b16 %v676
  %v818 = vunpack.c.l.b16 %v677
  %v819 = vunpack.c.h.b16 %v677
  %v820 = vunpack.c.l.b16 %v678
  %v821 = vunpack.c.h.b16 %v678
  %v822 = vunpack.c.l.b16 %v679
  %v823 = vunpack.c.h.b16 %v679
  %v824 = vunpack.c.l.b16 %v680
  %v825 = vunpack.c.h.b16 %v680
  %v826 = vunpack.c.l.b16 %v681
  %v827 = vunpack.c.h.b16 %v681
  %v828 = vunpack.c.l.b16 %v682
  %v829 = vunpack.c.h.b16 %v682
  %v830 = vunpack.c.l.b16 %v683
  %v831 = vunpack.c.h.b16 %v683
  %v832 = vunpack.c.l.b16 %v684
  %v833 = vunpack.c.h.b16 %v684
  %v834 = vunpack.c.l.b16 %v685
  %v835 = vunpack.c.h.b16 %v685
  %v836 = vunpack.c.l.b16 %v686
  %v837 = vunpack.c.h.b16 %v686
  %v838 = vunpack.c.l.b16 %v687
  %v839 = vunpack.c.h.b16 %v687
  %v840 = vunpack.c.l.b16 %v688
  %v841 = vunpack.c.h.b16 %v688
  %v842 = vunpack.c.l.b16 %v689
  %v843 = vunpack.c.h.b16 %v689
  %v844 = vunpack.c.l.b16 %v690
  %v845 = vunpack.c.h.b16 %v690
  %v846 = vunpack.c.l.b16 %v691
  %v847 = vunpack.c.h.b16 %v691
  %v848 = vunpack.c.l.b16 %v692
  %v849 = vunpack.c.h.b16 %v692
  %v850 = vunpack.c.l.b16 %v693
  %v851 = vunpack.c.h.b16 %v693
  %v852 = vunpack.c.l.b16 %v694
  %v853 = vunpack.c.h.b16 %v694
  %v854 = vunpack.c.l.b16 %v695
  %v855 = vunpack.c.h.b16 %v695
  %v856 = vunpack.c.l.b16 %v696
  %v857 = vunpack.c.h.b16 %v696
  %v858 = vunpack.c.l.b16 %v697
  %v859 = vunpack.c.h.b16 %v697
  %v860 = vunpack.c.l.b16 %v698
  %v861 = vunpack.c.h.b16 %v698
  %v862 = vunpack.c.l.b16 %v699
  %v863 = vunpack.c.h.b16 %v699
  %v864 = vunpack.c.l.b16 %v700
  %v865 = vunpack.c.h.b16 %v700
  %v866 = vunpack.c.l.b16 %v701
  %v867 = vunpack.c.h.b16 %v701
  %v868 = vunpack.c.l.b16 %v702
  %v869 = vunpack.c.h.b16 %v702
  %v870 = vunpack.c.l.b16 %v703
  %v871 = vunpack.c.h.b16 %v703
  %v872 = vunpack.c.l.b16 %v704
  %v873 = vunpack.c.h.b16 %v704
  %v874 = vunpack.c.l.b16 %v705
  %v875 = vunpack.c.h.b16 %v705
  %v876 = vunpack.c.l.b16 %v706
  %v877 = vunpack.c.h.b16 %v706
  %v878 = vunpack.c.l.b16 %v707
  %v879 = vunpack.c.h.b16 %v707
  %v880 = vunpack.c.l.b16 %v708
  %v881 = vunpack.c.h.b16 %v708
  %v882 = vunpack.c.l.b16 %v709
  %v883 = vunpack.c.h.b16 %v709
  %v884 = vunpack.c.l.b16 %v710
  %v885 = vunpack.c.h.b16 %v710
  %v886 = vunpack.c.l.b16 %v711
  %v887 = vunpack.c.h.b16 %v711
  %v888 = vunpack.c.l.b16 %v712
  %v889 = vunpack.c.h.b16 %v712
  %v890 = vunpack.c.l.b16 %v713
  %v891 = vunpack.c.h.b16 %v713
  %v892 = vunpack.c.l.b16 %v714
  %v893 = vunpack.c.h.b16 %v714
  %v894 = vunpack.c.l.b16 %v715
  %v895 = vunpack.c.h.b16 %v715
  %v896 = vunpack.c.l.b16 %v716
  %v897 = vunpack.c.h.b16 %v716
  %v898 = vunpack.c.l.b16 %v717
  %v899 = vunpack.c.h.b16 %v717
  %v900 = vunpack.c.l.b16 %v718
  %v901 = vunpack.c.h.b16 %v718
  %v902 = vunpack.c.l.b16 %v719
  %v903 = vunpack.c.h.b16 %v719
  %v904 = vunpack.c.l.b16 %v720
  %v905 = vunpack.c.h.b16 %v720
  %v906 = vunpack.c.l.b16 %v721
  %v907 = vunpack.c.h.b16 %v721
  %v908 = vpack.c.b16 %v790, %v788
  %v909 = vpack.c.b16 %v791, %v789
  %v910 = vpack.c.b16 %v794, %v792
  %v911 = vpack.c.b16 %v795, %v793
  %v912 = vpack.c.b16 %v798, %v796
  %v913 = vpack.c.b16 %v799, %v797
  %v914 = vpack.c.b16 %v802, %v800
  %v915 = vpack.c.b16 %v803, %v801
  %v916 = vpack.c.b16 %v806, %v804
  %v917 = vpack.c.b16 %v807, %v805
  %v918 = vpack.c.b16 %v810, %v808
  %v919 = vpack.c.b16 %v811, %v809
  %v920 = vpack.c.b16 %v814, %v812
  %v921 = vpack.c.b16 %v815, %v813
  %v922 = vpack.c.b16 %v818, %v816
  %v923 = vpack.c.b16 %v819, %v817
  %v924 = vpack.c.b16 %v822, %v820
  %v925 = vpack.c.b16 %v823, %v821
  %v926 = vpack.c.b16 %v826, %v824
  %v927 = vpack.c.b16 %v827, %v825
  %v928 = vpack.c.b16 %v830, %v828
  %v929 = vpack.c.b16 %v831, %v829
  %v930 = vpack.c.b16 %v834, %v832
  %v931 = vpack.c.b16 %v835, %v833
  %v932 = vpack.c.b16 %v838, %v836
  %v933 = vpack.c.b16 %v839, %v837
  %v934 = vpack.c.b16 %v842, %v840
  %v935 = vpack.c.b16 %v843, %v841
  %v936 = vpack.c.b16 %v846, %v844
  %v937 = vpack.c.b16 %v847, %v845
  %v938 = vpack.c.b16 %v850, %v848
  %v939 = vpack.c.b16 %v851, %v849
  %v940 = vpack.c.b16 %v854, %v852
  %v941 = vpack.c.b16 %v855, %v853
  %v942 = vpack.c.b16 %v858, %v856
  %v943 = vpack.c.b16 %v859, %v857
  %v944 = vpack.c.b16 %v862, %v860
  %v945 = vpack.c.b16 %v863, %v861
  %v946 = vpack.c.b16 %v866, %v864
  %v947 = vpack.c.b16 %v867, %v865
  %v948 = vpack.c.b16 %v870, %v868
  %v949 = vpack.c.b16 %v871, %v869
  %v950 = vpack.c.b16 %v874, %v872
  %v951 = vpack.c.b16 %v875, %v873
  %v952 = vpack.c.b16 %v878, %v876
  %v953 = vpack.c.b16 %v879, %v877
  %v954 = vpack.c.b16 %v882, %v880
  %v955 = vpack.c.b16 %v883, %v881
  %v956 = vpack.c.b16 %v886, %v884
  %v957 = vpack.c.b16 %v887, %v885
  %v958 = vpack.c.b16 %v890, %v888
  %v959 = vpack.c.b16 %v891, %v889
  %v960 = vpack.c.b16 %v894, %v892
  %v961 = vpack.c.b16 %v895, %v893
  %v962 = vpack.c.b16 %v898, %v896
  %v963 = vpack.c.b16 %v899, %v897
  %v964 = vpack.c.b16 %v902, %v900
  %v965 = vpack.c.b16 %v903, %v901
  %v966 = vpack.c.b16 %v906, %v904
  %v967 = vpack.c.b16 %v907, %v905
  %v1029 = vsel %vm515, %v486, 0
  %v1032 = vsel %vm515, %v488, 0
  %v1035 = vsel %vm515, %v490, 0
  %v1038 = vsel %vm515, %v492, 0
  %v1041 = vsel %vm515, %v494, 0
  %v1044 = vsel %vm515, %v496, 0
  %v1047 = vsel %vm515, %v498, 0
  %v1050 = vsel %vm515, %v500, 0
  %v1053 = vsel %vm515, %v502, 0
  %v1056 = vsel %vm515, %v504, 0
  %v1059 = vsel %vm515, %v506, 0
  %v1062 = vsel %vm515, %v508, 0
  %v1065 = vsel %vm515, %v510, 0
  %v1068 = vsel %vm515, %v512, 0
  %v1071 = vsel %vm515, %v514, 0
  %v1074 = vsel %vm515, %v513, 0
  %1076 = vmatpush.bf16.msra.mxu0 %v922
  %1077 = vmatpush.bf16.msra.mxu0 %v920
  %1078 = vmatpush.bf16.msra.mxu0 %v918
  %1079 = vmatpush.bf16.msra.mxu0 %v916
  %1080 = vmatpush.bf16.msra.mxu0 %v914
  %1081 = vmatpush.bf16.msra.mxu0 %v912
  %1082 = vmatpush.bf16.msra.mxu0 %v910
  %1083 = vmatpush.bf16.msra.mxu0 %v908
  %1084 = vmatmul.bf16.gmra.mxu0 %v517
  %v1085 = vpop.f32.mrf.mxu0
  %v1086 = vadd.f32 %v724, %v1085
  %v1087 = vpop.f32.mrf.mxu0
  %v1088 = vadd.f32 %v724, %v1087
  %1089 = vmatmul.bf16.gmra.mxu0 %v520
  %v1090 = vpop.f32.mrf.mxu0
  %v1091 = vadd.f32 %v724, %v1090
  %v1092 = vpop.f32.mrf.mxu0
  %v1093 = vadd.f32 %v724, %v1092
  %1094 = vmatmul.bf16.gmra.mxu0 %v523
  %v1095 = vpop.f32.mrf.mxu0
  %v1096 = vadd.f32 %v724, %v1095
  %v1097 = vpop.f32.mrf.mxu0
  %v1098 = vadd.f32 %v724, %v1097
  %1099 = vmatmul.bf16.gmra.mxu0 %v526
  %v1100 = vpop.f32.mrf.mxu0
  %v1101 = vadd.f32 %v724, %v1100
  %v1102 = vpop.f32.mrf.mxu0
  %v1103 = vadd.f32 %v724, %v1102
  %1104 = vmatmul.bf16.gmra.mxu0 %v529
  %v1105 = vpop.f32.mrf.mxu0
  %v1106 = vadd.f32 %v724, %v1105
  %v1107 = vpop.f32.mrf.mxu0
  %v1108 = vadd.f32 %v724, %v1107
  %1109 = vmatmul.bf16.gmra.mxu0 %v532
  %v1110 = vpop.f32.mrf.mxu0
  %v1111 = vadd.f32 %v724, %v1110
  %v1112 = vpop.f32.mrf.mxu0
  %v1113 = vadd.f32 %v724, %v1112
  %1114 = vmatmul.bf16.gmra.mxu0 %v535
  %v1115 = vpop.f32.mrf.mxu0
  %v1116 = vadd.f32 %v724, %v1115
  %v1117 = vpop.f32.mrf.mxu0
  %v1118 = vadd.f32 %v724, %v1117
  %1119 = vmatmul.bf16.gmra.mxu0 %v538
  %v1120 = vpop.f32.mrf.mxu0
  %v1121 = vadd.f32 %v724, %v1120
  %v1122 = vpop.f32.mrf.mxu0
  %v1123 = vadd.f32 %v724, %v1122
  %1124 = vmatmul.bf16.gmra.mxu0 %v541
  %v1125 = vpop.f32.mrf.mxu0
  %v1126 = vadd.f32 %v724, %v1125
  %v1127 = vpop.f32.mrf.mxu0
  %v1128 = vadd.f32 %v724, %v1127
  %1129 = vmatmul.bf16.gmra.mxu0 %v544
  %v1130 = vpop.f32.mrf.mxu0
  %v1131 = vadd.f32 %v724, %v1130
  %v1132 = vpop.f32.mrf.mxu0
  %v1133 = vadd.f32 %v724, %v1132
  %1134 = vmatmul.bf16.gmra.mxu0 %v547
  %v1135 = vpop.f32.mrf.mxu0
  %v1136 = vadd.f32 %v724, %v1135
  %v1137 = vpop.f32.mrf.mxu0
  %v1138 = vadd.f32 %v724, %v1137
  %1139 = vmatmul.bf16.gmra.mxu0 %v550
  %v1140 = vpop.f32.mrf.mxu0
  %v1141 = vadd.f32 %v724, %v1140
  %v1142 = vpop.f32.mrf.mxu0
  %v1143 = vadd.f32 %v724, %v1142
  %1144 = vmatmul.bf16.gmra.mxu0 %v553
  %v1145 = vpop.f32.mrf.mxu0
  %v1146 = vadd.f32 %v724, %v1145
  %v1147 = vpop.f32.mrf.mxu0
  %v1148 = vadd.f32 %v724, %v1147
  %1149 = vmatmul.bf16.gmra.mxu0 %v556
  %v1150 = vpop.f32.mrf.mxu0
  %v1151 = vadd.f32 %v724, %v1150
  %v1152 = vpop.f32.mrf.mxu0
  %v1153 = vadd.f32 %v724, %v1152
  %1154 = vmatmul.bf16.gmra.mxu0 %v559
  %v1155 = vpop.f32.mrf.mxu0
  %v1156 = vadd.f32 %v724, %v1155
  %v1157 = vpop.f32.mrf.mxu0
  %v1158 = vadd.f32 %v724, %v1157
  %1159 = vmatmul.bf16.gmra.mxu0 %v562
  %v1160 = vpop.f32.mrf.mxu0
  %v1161 = vadd.f32 %v724, %v1160
  %v1162 = vpop.f32.mrf.mxu0
  %v1163 = vadd.f32 %v724, %v1162
  %1164 = vdwg.mxu0
  %1165 = vmatpush.bf16.msra.mxu0 %v938
  %1166 = vmatpush.bf16.msra.mxu0 %v936
  %1167 = vmatpush.bf16.msra.mxu0 %v934
  %1168 = vmatpush.bf16.msra.mxu0 %v932
  %1169 = vmatpush.bf16.msra.mxu0 %v930
  %1170 = vmatpush.bf16.msra.mxu0 %v928
  %1171 = vmatpush.bf16.msra.mxu0 %v926
  %1172 = vmatpush.bf16.msra.mxu0 %v924
  %1173 = vmatmul.bf16.gmra.mxu0 %v566
  %v1174 = vpop.f32.mrf.mxu0
  %v1175 = vadd.f32 %v1086, %v1174
  %v1176 = vpop.f32.mrf.mxu0
  %v1177 = vadd.f32 %v1088, %v1176
  %1178 = vmatmul.bf16.gmra.mxu0 %v569
  %v1179 = vpop.f32.mrf.mxu0
  %v1180 = vadd.f32 %v1091, %v1179
  %v1181 = vpop.f32.mrf.mxu0
  %v1182 = vadd.f32 %v1093, %v1181
  %1183 = vmatmul.bf16.gmra.mxu0 %v572
  %v1184 = vpop.f32.mrf.mxu0
  %v1185 = vadd.f32 %v1096, %v1184
  %v1186 = vpop.f32.mrf.mxu0
  %v1187 = vadd.f32 %v1098, %v1186
  %1188 = vmatmul.bf16.gmra.mxu0 %v575
  %v1189 = vpop.f32.mrf.mxu0
  %v1190 = vadd.f32 %v1101, %v1189
  %v1191 = vpop.f32.mrf.mxu0
  %v1192 = vadd.f32 %v1103, %v1191
  %1193 = vmatmul.bf16.gmra.mxu0 %v578
  %v1194 = vpop.f32.mrf.mxu0
  %v1195 = vadd.f32 %v1106, %v1194
  %v1196 = vpop.f32.mrf.mxu0
  %v1197 = vadd.f32 %v1108, %v1196
  %1198 = vmatmul.bf16.gmra.mxu0 %v581
  %v1199 = vpop.f32.mrf.mxu0
  %v1200 = vadd.f32 %v1111, %v1199
  %v1201 = vpop.f32.mrf.mxu0
  %v1202 = vadd.f32 %v1113, %v1201
  %1203 = vmatmul.bf16.gmra.mxu0 %v584
  %v1204 = vpop.f32.mrf.mxu0
  %v1205 = vadd.f32 %v1116, %v1204
  %v1206 = vpop.f32.mrf.mxu0
  %v1207 = vadd.f32 %v1118, %v1206
  %1208 = vmatmul.bf16.gmra.mxu0 %v587
  %v1209 = vpop.f32.mrf.mxu0
  %v1210 = vadd.f32 %v1121, %v1209
  %v1211 = vpop.f32.mrf.mxu0
  %v1212 = vadd.f32 %v1123, %v1211
  %1213 = vmatmul.bf16.gmra.mxu0 %v590
  %v1214 = vpop.f32.mrf.mxu0
  %v1215 = vadd.f32 %v1126, %v1214
  %v1216 = vpop.f32.mrf.mxu0
  %v1217 = vadd.f32 %v1128, %v1216
  %1218 = vmatmul.bf16.gmra.mxu0 %v593
  %v1219 = vpop.f32.mrf.mxu0
  %v1220 = vadd.f32 %v1131, %v1219
  %v1221 = vpop.f32.mrf.mxu0
  %v1222 = vadd.f32 %v1133, %v1221
  %1223 = vmatmul.bf16.gmra.mxu0 %v596
  %v1224 = vpop.f32.mrf.mxu0
  %v1225 = vadd.f32 %v1136, %v1224
  %v1226 = vpop.f32.mrf.mxu0
  %v1227 = vadd.f32 %v1138, %v1226
  %1228 = vmatmul.bf16.gmra.mxu0 %v599
  %v1229 = vpop.f32.mrf.mxu0
  %v1230 = vadd.f32 %v1141, %v1229
  %v1231 = vpop.f32.mrf.mxu0
  %v1232 = vadd.f32 %v1143, %v1231
  %1233 = vmatmul.bf16.gmra.mxu0 %v602
  %v1234 = vpop.f32.mrf.mxu0
  %v1235 = vadd.f32 %v1146, %v1234
  %v1236 = vpop.f32.mrf.mxu0
  %v1237 = vadd.f32 %v1148, %v1236
  %1238 = vmatmul.bf16.gmra.mxu0 %v605
  %v1239 = vpop.f32.mrf.mxu0
  %v1240 = vadd.f32 %v1151, %v1239
  %v1241 = vpop.f32.mrf.mxu0
  %v1242 = vadd.f32 %v1153, %v1241
  %1243 = vmatmul.bf16.gmra.mxu0 %v608
  %v1244 = vpop.f32.mrf.mxu0
  %v1245 = vadd.f32 %v1156, %v1244
  %v1246 = vpop.f32.mrf.mxu0
  %v1247 = vadd.f32 %v1158, %v1246
  %1248 = vmatmul.bf16.gmra.mxu0 %v611
  %v1249 = vpop.f32.mrf.mxu0
  %v1250 = vadd.f32 %v1161, %v1249
  %v1251 = vpop.f32.mrf.mxu0
  %v1252 = vadd.f32 %v1163, %v1251
  %1253 = vdwg.mxu0
  %1254 = vmatpush.bf16.msra.mxu0 %v954
  %1255 = vmatpush.bf16.msra.mxu0 %v952
  %1256 = vmatpush.bf16.msra.mxu0 %v950
  %1257 = vmatpush.bf16.msra.mxu0 %v948
  %1258 = vmatpush.bf16.msra.mxu0 %v946
  %1259 = vmatpush.bf16.msra.mxu0 %v944
  %1260 = vmatpush.bf16.msra.mxu0 %v942
  %1261 = vmatpush.bf16.msra.mxu0 %v940
  %1262 = vmatmul.bf16.gmra.mxu0 %v615
  %v1263 = vpop.f32.mrf.mxu0
  %v1264 = vadd.f32 %v1175, %v1263
  %v1265 = vpop.f32.mrf.mxu0
  %v1266 = vadd.f32 %v1177, %v1265
  %1267 = vmatmul.bf16.gmra.mxu0 %v618
  %v1268 = vpop.f32.mrf.mxu0
  %v1269 = vadd.f32 %v1180, %v1268
  %v1270 = vpop.f32.mrf.mxu0
  %v1271 = vadd.f32 %v1182, %v1270
  %1272 = vmatmul.bf16.gmra.mxu0 %v621
  %v1273 = vpop.f32.mrf.mxu0
  %v1274 = vadd.f32 %v1185, %v1273
  %v1275 = vpop.f32.mrf.mxu0
  %v1276 = vadd.f32 %v1187, %v1275
  %1277 = vmatmul.bf16.gmra.mxu0 %v624
  %v1278 = vpop.f32.mrf.mxu0
  %v1279 = vadd.f32 %v1190, %v1278
  %v1280 = vpop.f32.mrf.mxu0
  %v1281 = vadd.f32 %v1192, %v1280
  %1282 = vmatmul.bf16.gmra.mxu0 %v627
  %v1283 = vpop.f32.mrf.mxu0
  %v1284 = vadd.f32 %v1195, %v1283
  %v1285 = vpop.f32.mrf.mxu0
  %v1286 = vadd.f32 %v1197, %v1285
  %1287 = vmatmul.bf16.gmra.mxu0 %v630
  %v1288 = vpop.f32.mrf.mxu0
  %v1289 = vadd.f32 %v1200, %v1288
  %v1290 = vpop.f32.mrf.mxu0
  %v1291 = vadd.f32 %v1202, %v1290
  %1292 = vmatmul.bf16.gmra.mxu0 %v633
  %v1293 = vpop.f32.mrf.mxu0
  %v1294 = vadd.f32 %v1205, %v1293
  %v1295 = vpop.f32.mrf.mxu0
  %v1296 = vadd.f32 %v1207, %v1295
  %1297 = vmatmul.bf16.gmra.mxu0 %v636
  %v1298 = vpop.f32.mrf.mxu0
  %v1299 = vadd.f32 %v1210, %v1298
  %v1300 = vpop.f32.mrf.mxu0
  %v1301 = vadd.f32 %v1212, %v1300
  %1302 = vmatmul.bf16.gmra.mxu0 %v639
  %v1303 = vpop.f32.mrf.mxu0
  %v1304 = vadd.f32 %v1215, %v1303
  %v1305 = vpop.f32.mrf.mxu0
  %v1306 = vadd.f32 %v1217, %v1305
  %1307 = vmatmul.bf16.gmra.mxu0 %v642
  %v1308 = vpop.f32.mrf.mxu0
  %v1309 = vadd.f32 %v1220, %v1308
  %v1310 = vpop.f32.mrf.mxu0
  %v1311 = vadd.f32 %v1222, %v1310
  %1312 = vmatmul.bf16.gmra.mxu0 %v645
  %v1313 = vpop.f32.mrf.mxu0
  %v1314 = vadd.f32 %v1225, %v1313
  %v1315 = vpop.f32.mrf.mxu0
  %v1316 = vadd.f32 %v1227, %v1315
  %1317 = vmatmul.bf16.gmra.mxu0 %v648
  %v1318 = vpop.f32.mrf.mxu0
  %v1319 = vadd.f32 %v1230, %v1318
  %v1320 = vpop.f32.mrf.mxu0
  %v1321 = vadd.f32 %v1232, %v1320
  %1322 = vmatmul.bf16.gmra.mxu0 %v651
  %v1323 = vpop.f32.mrf.mxu0
  %v1324 = vadd.f32 %v1235, %v1323
  %v1325 = vpop.f32.mrf.mxu0
  %v1326 = vadd.f32 %v1237, %v1325
  %1327 = vmatmul.bf16.gmra.mxu0 %v654
  %v1328 = vpop.f32.mrf.mxu0
  %v1329 = vadd.f32 %v1240, %v1328
  %v1330 = vpop.f32.mrf.mxu0
  %v1331 = vadd.f32 %v1242, %v1330
  %1332 = vmatmul.bf16.gmra.mxu0 %v657
  %v1333 = vpop.f32.mrf.mxu0
  %v1334 = vadd.f32 %v1245, %v1333
  %v1335 = vpop.f32.mrf.mxu0
  %v1336 = vadd.f32 %v1247, %v1335
  %1337 = vmatmul.bf16.gmra.mxu0 %v660
  %v1338 = vpop.f32.mrf.mxu0
  %v1339 = vadd.f32 %v1250, %v1338
  %v1340 = vpop.f32.mrf.mxu0
  %v1341 = vadd.f32 %v1252, %v1340
  %1342 = vdwg.mxu0
  %1343 = vmatpush.bf16.msra.mxu0 0
  %1344 = vmatpush.bf16.msra.mxu0 0
  %1345 = vmatpush.bf16.msra.mxu0 %v966
  %1346 = vmatpush.bf16.msra.mxu0 %v964
  %1347 = vmatpush.bf16.msra.mxu0 %v962
  %1348 = vmatpush.bf16.msra.mxu0 %v960
  %1349 = vmatpush.bf16.msra.mxu0 %v958
  %1350 = vmatpush.bf16.msra.mxu0 %v956
  %1351 = vmatmul.bf16.gmra.mxu0 %v1029
  %v1352 = vpop.f32.mrf.mxu0
  %v1353 = vadd.f32 %v1264, %v1352
  %v1354 = vpop.f32.mrf.mxu0
  %v1355 = vadd.f32 %v1266, %v1354
  %1356 = vmatmul.bf16.gmra.mxu0 %v1032
  %v1357 = vpop.f32.mrf.mxu0
  %v1358 = vadd.f32 %v1269, %v1357
  %v1359 = vpop.f32.mrf.mxu0
  %v1360 = vadd.f32 %v1271, %v1359
  %1361 = vmatmul.bf16.gmra.mxu0 %v1035
  %v1362 = vpop.f32.mrf.mxu0
  %v1363 = vadd.f32 %v1274, %v1362
  %v1364 = vpop.f32.mrf.mxu0
  %v1365 = vadd.f32 %v1276, %v1364
  %1366 = vmatmul.bf16.gmra.mxu0 %v1038
  %v1367 = vpop.f32.mrf.mxu0
  %v1368 = vadd.f32 %v1279, %v1367
  %v1369 = vpop.f32.mrf.mxu0
  %v1370 = vadd.f32 %v1281, %v1369
  %1371 = vmatmul.bf16.gmra.mxu0 %v1041
  %v1372 = vpop.f32.mrf.mxu0
  %v1373 = vadd.f32 %v1284, %v1372
  %v1374 = vpop.f32.mrf.mxu0
  %v1375 = vadd.f32 %v1286, %v1374
  %1376 = vmatmul.bf16.gmra.mxu0 %v1044
  %v1377 = vpop.f32.mrf.mxu0
  %v1378 = vadd.f32 %v1289, %v1377
  %v1379 = vpop.f32.mrf.mxu0
  %v1380 = vadd.f32 %v1291, %v1379
  %1381 = vmatmul.bf16.gmra.mxu0 %v1047
  %v1382 = vpop.f32.mrf.mxu0
  %v1383 = vadd.f32 %v1294, %v1382
  %v1384 = vpop.f32.mrf.mxu0
  %v1385 = vadd.f32 %v1296, %v1384
  %1386 = vmatmul.bf16.gmra.mxu0 %v1050
  %v1387 = vpop.f32.mrf.mxu0
  %v1388 = vadd.f32 %v1299, %v1387
  %v1389 = vpop.f32.mrf.mxu0
  %v1390 = vadd.f32 %v1301, %v1389
  %1391 = vmatmul.bf16.gmra.mxu0 %v1053
  %v1392 = vpop.f32.mrf.mxu0
  %v1393 = vadd.f32 %v1304, %v1392
  %v1394 = vpop.f32.mrf.mxu0
  %v1395 = vadd.f32 %v1306, %v1394
  %1396 = vmatmul.bf16.gmra.mxu0 %v1056
  %v1397 = vpop.f32.mrf.mxu0
  %v1398 = vadd.f32 %v1309, %v1397
  %v1399 = vpop.f32.mrf.mxu0
  %v1400 = vadd.f32 %v1311, %v1399
  %1401 = vmatmul.bf16.gmra.mxu0 %v1059
  %v1402 = vpop.f32.mrf.mxu0
  %v1403 = vadd.f32 %v1314, %v1402
  %v1404 = vpop.f32.mrf.mxu0
  %v1405 = vadd.f32 %v1316, %v1404
  %1406 = vmatmul.bf16.gmra.mxu0 %v1062
  %v1407 = vpop.f32.mrf.mxu0
  %v1408 = vadd.f32 %v1319, %v1407
  %v1409 = vpop.f32.mrf.mxu0
  %v1410 = vadd.f32 %v1321, %v1409
  %1411 = vmatmul.bf16.gmra.mxu0 %v1065
  %v1412 = vpop.f32.mrf.mxu0
  %v1413 = vadd.f32 %v1324, %v1412
  %v1414 = vpop.f32.mrf.mxu0
  %v1415 = vadd.f32 %v1326, %v1414
  %1416 = vmatmul.bf16.gmra.mxu0 %v1068
  %v1417 = vpop.f32.mrf.mxu0
  %v1418 = vadd.f32 %v1329, %v1417
  %v1419 = vpop.f32.mrf.mxu0
  %v1420 = vadd.f32 %v1331, %v1419
  %1421 = vmatmul.bf16.gmra.mxu0 %v1071
  %v1422 = vpop.f32.mrf.mxu0
  %v1423 = vadd.f32 %v1334, %v1422
  %v1424 = vpop.f32.mrf.mxu0
  %v1425 = vadd.f32 %v1336, %v1424
  %1426 = vmatmul.bf16.gmra.mxu0 %v1074
  %v1427 = vpop.f32.mrf.mxu0
  %v1428 = vadd.f32 %v1339, %v1427
  %v1429 = vpop.f32.mrf.mxu0
  %v1430 = vadd.f32 %v1341, %v1429
  %1431 = vdwg.mxu0
  %1432 = vmatpush.bf16.msra.mxu0 %v923
  %1433 = vmatpush.bf16.msra.mxu0 %v921
  %1434 = vmatpush.bf16.msra.mxu0 %v919
  %1435 = vmatpush.bf16.msra.mxu0 %v917
  %1436 = vmatpush.bf16.msra.mxu0 %v915
  %1437 = vmatpush.bf16.msra.mxu0 %v913
  %1438 = vmatpush.bf16.msra.mxu0 %v911
  %1439 = vmatpush.bf16.msra.mxu0 %v909
  %1440 = vmatmul.bf16.gmra.mxu0 %v517
  %v1441 = vpop.f32.mrf.mxu0
  %v1442 = vadd.f32 %v725, %v1441
  %v1443 = vpop.f32.mrf.mxu0
  %v1444 = vadd.f32 %v725, %v1443
  %1445 = vmatmul.bf16.gmra.mxu0 %v520
  %v1446 = vpop.f32.mrf.mxu0
  %v1447 = vadd.f32 %v725, %v1446
  %v1448 = vpop.f32.mrf.mxu0
  %v1449 = vadd.f32 %v725, %v1448
  %1450 = vmatmul.bf16.gmra.mxu0 %v523
  %v1451 = vpop.f32.mrf.mxu0
  %v1452 = vadd.f32 %v725, %v1451
  %v1453 = vpop.f32.mrf.mxu0
  %v1454 = vadd.f32 %v725, %v1453
  %1455 = vmatmul.bf16.gmra.mxu0 %v526
  %v1456 = vpop.f32.mrf.mxu0
  %v1457 = vadd.f32 %v725, %v1456
  %v1458 = vpop.f32.mrf.mxu0
  %v1459 = vadd.f32 %v725, %v1458
  %1460 = vmatmul.bf16.gmra.mxu0 %v529
  %v1461 = vpop.f32.mrf.mxu0
  %v1462 = vadd.f32 %v725, %v1461
  %v1463 = vpop.f32.mrf.mxu0
  %v1464 = vadd.f32 %v725, %v1463
  %1465 = vmatmul.bf16.gmra.mxu0 %v532
  %v1466 = vpop.f32.mrf.mxu0
  %v1467 = vadd.f32 %v725, %v1466
  %v1468 = vpop.f32.mrf.mxu0
  %v1469 = vadd.f32 %v725, %v1468
  %1470 = vmatmul.bf16.gmra.mxu0 %v535
  %v1471 = vpop.f32.mrf.mxu0
  %v1472 = vadd.f32 %v725, %v1471
  %v1473 = vpop.f32.mrf.mxu0
  %v1474 = vadd.f32 %v725, %v1473
  %1475 = vmatmul.bf16.gmra.mxu0 %v538
  %v1476 = vpop.f32.mrf.mxu0
  %v1477 = vadd.f32 %v725, %v1476
  %v1478 = vpop.f32.mrf.mxu0
  %v1479 = vadd.f32 %v725, %v1478
  %1480 = vmatmul.bf16.gmra.mxu0 %v541
  %v1481 = vpop.f32.mrf.mxu0
  %v1482 = vadd.f32 %v725, %v1481
  %v1483 = vpop.f32.mrf.mxu0
  %v1484 = vadd.f32 %v725, %v1483
  %1485 = vmatmul.bf16.gmra.mxu0 %v544
  %v1486 = vpop.f32.mrf.mxu0
  %v1487 = vadd.f32 %v725, %v1486
  %v1488 = vpop.f32.mrf.mxu0
  %v1489 = vadd.f32 %v725, %v1488
  %1490 = vmatmul.bf16.gmra.mxu0 %v547
  %v1491 = vpop.f32.mrf.mxu0
  %v1492 = vadd.f32 %v725, %v1491
  %v1493 = vpop.f32.mrf.mxu0
  %v1494 = vadd.f32 %v725, %v1493
  %1495 = vmatmul.bf16.gmra.mxu0 %v550
  %v1496 = vpop.f32.mrf.mxu0
  %v1497 = vadd.f32 %v725, %v1496
  %v1498 = vpop.f32.mrf.mxu0
  %v1499 = vadd.f32 %v725, %v1498
  %1500 = vmatmul.bf16.gmra.mxu0 %v553
  %v1501 = vpop.f32.mrf.mxu0
  %v1502 = vadd.f32 %v725, %v1501
  %v1503 = vpop.f32.mrf.mxu0
  %v1504 = vadd.f32 %v725, %v1503
  %1505 = vmatmul.bf16.gmra.mxu0 %v556
  %v1506 = vpop.f32.mrf.mxu0
  %v1507 = vadd.f32 %v725, %v1506
  %v1508 = vpop.f32.mrf.mxu0
  %v1509 = vadd.f32 %v725, %v1508
  %1510 = vmatmul.bf16.gmra.mxu0 %v559
  %v1511 = vpop.f32.mrf.mxu0
  %v1512 = vadd.f32 %v725, %v1511
  %v1513 = vpop.f32.mrf.mxu0
  %v1514 = vadd.f32 %v725, %v1513
  %1515 = vmatmul.bf16.gmra.mxu0 %v562
  %v1516 = vpop.f32.mrf.mxu0
  %v1517 = vadd.f32 %v725, %v1516
  %v1518 = vpop.f32.mrf.mxu0
  %v1519 = vadd.f32 %v725, %v1518
  %1520 = vdwg.mxu0
  %1521 = vmatpush.bf16.msra.mxu0 %v939
  %1522 = vmatpush.bf16.msra.mxu0 %v937
  %1523 = vmatpush.bf16.msra.mxu0 %v935
  %1524 = vmatpush.bf16.msra.mxu0 %v933
  %1525 = vmatpush.bf16.msra.mxu0 %v931
  %1526 = vmatpush.bf16.msra.mxu0 %v929
  %1527 = vmatpush.bf16.msra.mxu0 %v927
  %1528 = vmatpush.bf16.msra.mxu0 %v925
  %1529 = vmatmul.bf16.gmra.mxu0 %v566
  %v1530 = vpop.f32.mrf.mxu0
  %v1531 = vadd.f32 %v1442, %v1530
  %v1532 = vpop.f32.mrf.mxu0
  %v1533 = vadd.f32 %v1444, %v1532
  %1534 = vmatmul.bf16.gmra.mxu0 %v569
  %v1535 = vpop.f32.mrf.mxu0
  %v1536 = vadd.f32 %v1447, %v1535
  %v1537 = vpop.f32.mrf.mxu0
  %v1538 = vadd.f32 %v1449, %v1537
  %1539 = vmatmul.bf16.gmra.mxu0 %v572
  %v1540 = vpop.f32.mrf.mxu0
  %v1541 = vadd.f32 %v1452, %v1540
  %v1542 = vpop.f32.mrf.mxu0
  %v1543 = vadd.f32 %v1454, %v1542
  %1544 = vmatmul.bf16.gmra.mxu0 %v575
  %v1545 = vpop.f32.mrf.mxu0
  %v1546 = vadd.f32 %v1457, %v1545
  %v1547 = vpop.f32.mrf.mxu0
  %v1548 = vadd.f32 %v1459, %v1547
  %1549 = vmatmul.bf16.gmra.mxu0 %v578
  %v1550 = vpop.f32.mrf.mxu0
  %v1551 = vadd.f32 %v1462, %v1550
  %v1552 = vpop.f32.mrf.mxu0
  %v1553 = vadd.f32 %v1464, %v1552
  %1554 = vmatmul.bf16.gmra.mxu0 %v581
  %v1555 = vpop.f32.mrf.mxu0
  %v1556 = vadd.f32 %v1467, %v1555
  %v1557 = vpop.f32.mrf.mxu0
  %v1558 = vadd.f32 %v1469, %v1557
  %1559 = vmatmul.bf16.gmra.mxu0 %v584
  %v1560 = vpop.f32.mrf.mxu0
  %v1561 = vadd.f32 %v1472, %v1560
  %v1562 = vpop.f32.mrf.mxu0
  %v1563 = vadd.f32 %v1474, %v1562
  %1564 = vmatmul.bf16.gmra.mxu0 %v587
  %v1565 = vpop.f32.mrf.mxu0
  %v1566 = vadd.f32 %v1477, %v1565
  %v1567 = vpop.f32.mrf.mxu0
  %v1568 = vadd.f32 %v1479, %v1567
  %1569 = vmatmul.bf16.gmra.mxu0 %v590
  %v1570 = vpop.f32.mrf.mxu0
  %v1571 = vadd.f32 %v1482, %v1570
  %v1572 = vpop.f32.mrf.mxu0
  %v1573 = vadd.f32 %v1484, %v1572
  %1574 = vmatmul.bf16.gmra.mxu0 %v593
  %v1575 = vpop.f32.mrf.mxu0
  %v1576 = vadd.f32 %v1487, %v1575
  %v1577 = vpop.f32.mrf.mxu0
  %v1578 = vadd.f32 %v1489, %v1577
  %1579 = vmatmul.bf16.gmra.mxu0 %v596
  %v1580 = vpop.f32.mrf.mxu0
  %v1581 = vadd.f32 %v1492, %v1580
  %v1582 = vpop.f32.mrf.mxu0
  %v1583 = vadd.f32 %v1494, %v1582
  %1584 = vmatmul.bf16.gmra.mxu0 %v599
  %v1585 = vpop.f32.mrf.mxu0
  %v1586 = vadd.f32 %v1497, %v1585
  %v1587 = vpop.f32.mrf.mxu0
  %v1588 = vadd.f32 %v1499, %v1587
  %1589 = vmatmul.bf16.gmra.mxu0 %v602
  %v1590 = vpop.f32.mrf.mxu0
  %v1591 = vadd.f32 %v1502, %v1590
  %v1592 = vpop.f32.mrf.mxu0
  %v1593 = vadd.f32 %v1504, %v1592
  %1594 = vmatmul.bf16.gmra.mxu0 %v605
  %v1595 = vpop.f32.mrf.mxu0
  %v1596 = vadd.f32 %v1507, %v1595
  %v1597 = vpop.f32.mrf.mxu0
  %v1598 = vadd.f32 %v1509, %v1597
  %1599 = vmatmul.bf16.gmra.mxu0 %v608
  %v1600 = vpop.f32.mrf.mxu0
  %v1601 = vadd.f32 %v1512, %v1600
  %v1602 = vpop.f32.mrf.mxu0
  %v1603 = vadd.f32 %v1514, %v1602
  %1604 = vmatmul.bf16.gmra.mxu0 %v611
  %v1605 = vpop.f32.mrf.mxu0
  %v1606 = vadd.f32 %v1517, %v1605
  %v1607 = vpop.f32.mrf.mxu0
  %v1608 = vadd.f32 %v1519, %v1607
  %1609 = vdwg.mxu0
  %1610 = vmatpush.bf16.msra.mxu0 %v955
  %1611 = vmatpush.bf16.msra.mxu0 %v953
  %1612 = vmatpush.bf16.msra.mxu0 %v951
  %1613 = vmatpush.bf16.msra.mxu0 %v949
  %1614 = vmatpush.bf16.msra.mxu0 %v947
  %1615 = vmatpush.bf16.msra.mxu0 %v945
  %1616 = vmatpush.bf16.msra.mxu0 %v943
  %1617 = vmatpush.bf16.msra.mxu0 %v941
  %1618 = vmatmul.bf16.gmra.mxu0 %v615
  %v1619 = vpop.f32.mrf.mxu0
  %v1620 = vadd.f32 %v1531, %v1619
  %v1621 = vpop.f32.mrf.mxu0
  %v1622 = vadd.f32 %v1533, %v1621
  %1623 = vmatmul.bf16.gmra.mxu0 %v618
  %v1624 = vpop.f32.mrf.mxu0
  %v1625 = vadd.f32 %v1536, %v1624
  %v1626 = vpop.f32.mrf.mxu0
  %v1627 = vadd.f32 %v1538, %v1626
  %1628 = vmatmul.bf16.gmra.mxu0 %v621
  %v1629 = vpop.f32.mrf.mxu0
  %v1630 = vadd.f32 %v1541, %v1629
  %v1631 = vpop.f32.mrf.mxu0
  %v1632 = vadd.f32 %v1543, %v1631
  %1633 = vmatmul.bf16.gmra.mxu0 %v624
  %v1634 = vpop.f32.mrf.mxu0
  %v1635 = vadd.f32 %v1546, %v1634
  %v1636 = vpop.f32.mrf.mxu0
  %v1637 = vadd.f32 %v1548, %v1636
  %1638 = vmatmul.bf16.gmra.mxu0 %v627
  %v1639 = vpop.f32.mrf.mxu0
  %v1640 = vadd.f32 %v1551, %v1639
  %v1641 = vpop.f32.mrf.mxu0
  %v1642 = vadd.f32 %v1553, %v1641
  %1643 = vmatmul.bf16.gmra.mxu0 %v630
  %v1644 = vpop.f32.mrf.mxu0
  %v1645 = vadd.f32 %v1556, %v1644
  %v1646 = vpop.f32.mrf.mxu0
  %v1647 = vadd.f32 %v1558, %v1646
  %1648 = vmatmul.bf16.gmra.mxu0 %v633
  %v1649 = vpop.f32.mrf.mxu0
  %v1650 = vadd.f32 %v1561, %v1649
  %v1651 = vpop.f32.mrf.mxu0
  %v1652 = vadd.f32 %v1563, %v1651
  %1653 = vmatmul.bf16.gmra.mxu0 %v636
  %v1654 = vpop.f32.mrf.mxu0
  %v1655 = vadd.f32 %v1566, %v1654
  %v1656 = vpop.f32.mrf.mxu0
  %v1657 = vadd.f32 %v1568, %v1656
  %1658 = vmatmul.bf16.gmra.mxu0 %v639
  %v1659 = vpop.f32.mrf.mxu0
  %v1660 = vadd.f32 %v1571, %v1659
  %v1661 = vpop.f32.mrf.mxu0
  %v1662 = vadd.f32 %v1573, %v1661
  %1663 = vmatmul.bf16.gmra.mxu0 %v642
  %v1664 = vpop.f32.mrf.mxu0
  %v1665 = vadd.f32 %v1576, %v1664
  %v1666 = vpop.f32.mrf.mxu0
  %v1667 = vadd.f32 %v1578, %v1666
  %1668 = vmatmul.bf16.gmra.mxu0 %v645
  %v1669 = vpop.f32.mrf.mxu0
  %v1670 = vadd.f32 %v1581, %v1669
  %v1671 = vpop.f32.mrf.mxu0
  %v1672 = vadd.f32 %v1583, %v1671
  %1673 = vmatmul.bf16.gmra.mxu0 %v648
  %v1674 = vpop.f32.mrf.mxu0
  %v1675 = vadd.f32 %v1586, %v1674
  %v1676 = vpop.f32.mrf.mxu0
  %v1677 = vadd.f32 %v1588, %v1676
  %1678 = vmatmul.bf16.gmra.mxu0 %v651
  %v1679 = vpop.f32.mrf.mxu0
  %v1680 = vadd.f32 %v1591, %v1679
  %v1681 = vpop.f32.mrf.mxu0
  %v1682 = vadd.f32 %v1593, %v1681
  %1683 = vmatmul.bf16.gmra.mxu0 %v654
  %v1684 = vpop.f32.mrf.mxu0
  %v1685 = vadd.f32 %v1596, %v1684
  %v1686 = vpop.f32.mrf.mxu0
  %v1687 = vadd.f32 %v1598, %v1686
  %1688 = vmatmul.bf16.gmra.mxu0 %v657
  %v1689 = vpop.f32.mrf.mxu0
  %v1690 = vadd.f32 %v1601, %v1689
  %v1691 = vpop.f32.mrf.mxu0
  %v1692 = vadd.f32 %v1603, %v1691
  %1693 = vmatmul.bf16.gmra.mxu0 %v660
  %v1694 = vpop.f32.mrf.mxu0
  %v1695 = vadd.f32 %v1606, %v1694
  %v1696 = vpop.f32.mrf.mxu0
  %v1697 = vadd.f32 %v1608, %v1696
  %1698 = vdwg.mxu0
  %1699 = vmatpush.bf16.msra.mxu0 0
  %1700 = vmatpush.bf16.msra.mxu0 0
  %1701 = vmatpush.bf16.msra.mxu0 %v967
  %1702 = vmatpush.bf16.msra.mxu0 %v965
  %1703 = vmatpush.bf16.msra.mxu0 %v963
  %1704 = vmatpush.bf16.msra.mxu0 %v961
  %1705 = vmatpush.bf16.msra.mxu0 %v959
  %1706 = vmatpush.bf16.msra.mxu0 %v957
  %1707 = vmatmul.bf16.gmra.mxu0 %v1029
  %v1708 = vpop.f32.mrf.mxu0
  %v1709 = vadd.f32 %v1620, %v1708
  %v1710 = vpop.f32.mrf.mxu0
  %v1711 = vadd.f32 %v1622, %v1710
  %1712 = vmatmul.bf16.gmra.mxu0 %v1032
  %v1713 = vpop.f32.mrf.mxu0
  %v1714 = vadd.f32 %v1625, %v1713
  %v1715 = vpop.f32.mrf.mxu0
  %v1716 = vadd.f32 %v1627, %v1715
  %1717 = vmatmul.bf16.gmra.mxu0 %v1035
  %v1718 = vpop.f32.mrf.mxu0
  %v1719 = vadd.f32 %v1630, %v1718
  %v1720 = vpop.f32.mrf.mxu0
  %v1721 = vadd.f32 %v1632, %v1720
  %1722 = vmatmul.bf16.gmra.mxu0 %v1038
  %v1723 = vpop.f32.mrf.mxu0
  %v1724 = vadd.f32 %v1635, %v1723
  %v1725 = vpop.f32.mrf.mxu0
  %v1726 = vadd.f32 %v1637, %v1725
  %1727 = vmatmul.bf16.gmra.mxu0 %v1041
  %v1728 = vpop.f32.mrf.mxu0
  %v1729 = vadd.f32 %v1640, %v1728
  %v1730 = vpop.f32.mrf.mxu0
  %v1731 = vadd.f32 %v1642, %v1730
  %1732 = vmatmul.bf16.gmra.mxu0 %v1044
  %v1733 = vpop.f32.mrf.mxu0
  %v1734 = vadd.f32 %v1645, %v1733
  %v1735 = vpop.f32.mrf.mxu0
  %v1736 = vadd.f32 %v1647, %v1735
  %1737 = vmatmul.bf16.gmra.mxu0 %v1047
  %v1738 = vpop.f32.mrf.mxu0
  %v1739 = vadd.f32 %v1650, %v1738
  %v1740 = vpop.f32.mrf.mxu0
  %v1741 = vadd.f32 %v1652, %v1740
  %1742 = vmatmul.bf16.gmra.mxu0 %v1050
  %v1743 = vpop.f32.mrf.mxu0
  %v1744 = vadd.f32 %v1655, %v1743
  %v1745 = vpop.f32.mrf.mxu0
  %v1746 = vadd.f32 %v1657, %v1745
  %1747 = vmatmul.bf16.gmra.mxu0 %v1053
  %v1748 = vpop.f32.mrf.mxu0
  %v1749 = vadd.f32 %v1660, %v1748
  %v1750 = vpop.f32.mrf.mxu0
  %v1751 = vadd.f32 %v1662, %v1750
  %1752 = vmatmul.bf16.gmra.mxu0 %v1056
  %v1753 = vpop.f32.mrf.mxu0
  %v1754 = vadd.f32 %v1665, %v1753
  %v1755 = vpop.f32.mrf.mxu0
  %v1756 = vadd.f32 %v1667, %v1755
  %1757 = vmatmul.bf16.gmra.mxu0 %v1059
  %v1758 = vpop.f32.mrf.mxu0
  %v1759 = vadd.f32 %v1670, %v1758
  %v1760 = vpop.f32.mrf.mxu0
  %v1761 = vadd.f32 %v1672, %v1760
  %1762 = vmatmul.bf16.gmra.mxu0 %v1062
  %v1763 = vpop.f32.mrf.mxu0
  %v1764 = vadd.f32 %v1675, %v1763
  %v1765 = vpop.f32.mrf.mxu0
  %v1766 = vadd.f32 %v1677, %v1765
  %1767 = vmatmul.bf16.gmra.mxu0 %v1065
  %v1768 = vpop.f32.mrf.mxu0
  %v1769 = vadd.f32 %v1680, %v1768
  %v1770 = vpop.f32.mrf.mxu0
  %v1771 = vadd.f32 %v1682, %v1770
  %1772 = vmatmul.bf16.gmra.mxu0 %v1068
  %v1773 = vpop.f32.mrf.mxu0
  %v1774 = vadd.f32 %v1685, %v1773
  %v1775 = vpop.f32.mrf.mxu0
  %v1776 = vadd.f32 %v1687, %v1775
  %1777 = vmatmul.bf16.gmra.mxu0 %v1071
  %v1778 = vpop.f32.mrf.mxu0
  %v1779 = vadd.f32 %v1690, %v1778
  %v1780 = vpop.f32.mrf.mxu0
  %v1781 = vadd.f32 %v1692, %v1780
  %1782 = vmatmul.bf16.gmra.mxu0 %v1074
  %v1783 = vpop.f32.mrf.mxu0
  %v1784 = vadd.f32 %v1695, %v1783
  %v1785 = vpop.f32.mrf.mxu0
  %v1786 = vadd.f32 %v1697, %v1785
  %1787 = vdwg.mxu0
  %v1788 = vmax.f32 %v1353, 0.0
  %v1789 = vmax.f32 %v1709, 0.0
  %v1790 = vmax.f32 %v1355, 0.0
  %v1791 = vmax.f32 %v1711, 0.0
  %v1792 = vmax.f32 %v1358, 0.0
  %v1793 = vmax.f32 %v1714, 0.0
  %v1794 = vmax.f32 %v1360, 0.0
  %v1795 = vmax.f32 %v1716, 0.0
  %v1796 = vmax.f32 %v1363, 0.0
  %v1797 = vmax.f32 %v1719, 0.0
  %v1798 = vmax.f32 %v1365, 0.0
  %v1799 = vmax.f32 %v1721, 0.0
  %v1800 = vmax.f32 %v1368, 0.0
  %v1801 = vmax.f32 %v1724, 0.0
  %v1802 = vmax.f32 %v1370, 0.0
  %v1803 = vmax.f32 %v1726, 0.0
  %v1804 = vmax.f32 %v1373, 0.0
  %v1805 = vmax.f32 %v1729, 0.0
  %v1806 = vmax.f32 %v1375, 0.0
  %v1807 = vmax.f32 %v1731, 0.0
  %v1808 = vmax.f32 %v1378, 0.0
  %v1809 = vmax.f32 %v1734, 0.0
  %v1810 = vmax.f32 %v1380, 0.0
  %v1811 = vmax.f32 %v1736, 0.0
  %v1812 = vmax.f32 %v1383, 0.0
  %v1813 = vmax.f32 %v1739, 0.0
  %v1814 = vmax.f32 %v1385, 0.0
  %v1815 = vmax.f32 %v1741, 0.0
  %v1816 = vmax.f32 %v1388, 0.0
  %v1817 = vmax.f32 %v1744, 0.0
  %v1818 = vmax.f32 %v1390, 0.0
  %v1819 = vmax.f32 %v1746, 0.0
  %v1820 = vmax.f32 %v1393, 0.0
  %v1821 = vmax.f32 %v1749, 0.0
  %v1822 = vmax.f32 %v1395, 0.0
  %v1823 = vmax.f32 %v1751, 0.0
  %v1824 = vmax.f32 %v1398, 0.0
  %v1825 = vmax.f32 %v1754, 0.0
  %v1826 = vmax.f32 %v1400, 0.0
  %v1827 = vmax.f32 %v1756, 0.0
  %v1828 = vmax.f32 %v1403, 0.0
  %v1829 = vmax.f32 %v1759, 0.0
  %v1830 = vmax.f32 %v1405, 0.0
  %v1831 = vmax.f32 %v1761, 0.0
  %v1832 = vmax.f32 %v1408, 0.0
  %v1833 = vmax.f32 %v1764, 0.0
  %v1834 = vmax.f32 %v1410, 0.0
  %v1835 = vmax.f32 %v1766, 0.0
  %v1836 = vmax.f32 %v1413, 0.0
  %v1837 = vmax.f32 %v1769, 0.0
  %v1838 = vmax.f32 %v1415, 0.0
  %v1839 = vmax.f32 %v1771, 0.0
  %v1840 = vmax.f32 %v1418, 0.0
  %v1841 = vmax.f32 %v1774, 0.0
  %v1842 = vmax.f32 %v1420, 0.0
  %v1843 = vmax.f32 %v1776, 0.0
  %v1844 = vmax.f32 %v1423, 0.0
  %v1845 = vmax.f32 %v1779, 0.0
  %v1846 = vmax.f32 %v1425, 0.0
  %v1847 = vmax.f32 %v1781, 0.0
  %v1848 = vmax.f32 %v1428, 0.0
  %v1849 = vmax.f32 %v1784, 0.0
  %v1850 = vmax.f32 %v1430, 0.0
  %v1851 = vmax.f32 %v1786, 0.0
  %v1852 = vpack.c.bf16 %v1790, %v1788
  %v1853 = vpack.c.bf16 %v1791, %v1789
  %v1854 = vpack.c.bf16 %v1794, %v1792
  %v1855 = vpack.c.bf16 %v1795, %v1793
  %v1856 = vpack.c.bf16 %v1798, %v1796
  %v1857 = vpack.c.bf16 %v1799, %v1797
  %v1858 = vpack.c.bf16 %v1802, %v1800
  %v1859 = vpack.c.bf16 %v1803, %v1801
  %v1860 = vpack.c.bf16 %v1806, %v1804
  %v1861 = vpack.c.bf16 %v1807, %v1805
  %v1862 = vpack.c.bf16 %v1810, %v1808
  %v1863 = vpack.c.bf16 %v1811, %v1809
  %v1864 = vpack.c.bf16 %v1814, %v1812
  %v1865 = vpack.c.bf16 %v1815, %v1813
  %v1866 = vpack.c.bf16 %v1818, %v1816
  %v1867 = vpack.c.bf16 %v1819, %v1817
  %v1868 = vpack.c.bf16 %v1822, %v1820
  %v1869 = vpack.c.bf16 %v1823, %v1821
  %v1870 = vpack.c.bf16 %v1826, %v1824
  %v1871 = vpack.c.bf16 %v1827, %v1825
  %v1872 = vpack.c.bf16 %v1830, %v1828
  %v1873 = vpack.c.bf16 %v1831, %v1829
  %v1874 = vpack.c.bf16 %v1834, %v1832
  %v1875 = vpack.c.bf16 %v1835, %v1833
  %v1876 = vpack.c.bf16 %v1838, %v1836
  %v1877 = vpack.c.bf16 %v1839, %v1837
  %v1878 = vpack.c.bf16 %v1842, %v1840
  %v1879 = vpack.c.bf16 %v1843, %v1841
  %v1880 = vpack.c.bf16 %v1846, %v1844
  %v1881 = vpack.c.bf16 %v1847, %v1845
  %v1882 = vpack.c.bf16 %v1850, %v1848
  %v1883 = vpack.c.bf16 %v1851, %v1849
  %v1884 = vld [vmem:[%s3] sm:$0xf]
  %v1885 = vld [vmem:[%s3 + $0x4] sm:$0xf]
  %v1886 = vld [vmem:[%s3 + $0x8] sm:$0xf]
  %v1887 = vld [vmem:[%s3 + $0xc] sm:$0xf]
  %v1888 = vld [vmem:[%s3 + $0x10] sm:$0xf]
  %v1889 = vld [vmem:[%s3 + $0x14] sm:$0xf]
  %v1890 = vld [vmem:[%s3 + $0x18] sm:$0xf]
  %v1891 = vld [vmem:[%s3 + $0x1c] sm:$0xf]
  %v1892 = vld [vmem:[%s3 + $0x20] sm:$0xf]
  %v1893 = vld [vmem:[%s3 + $0x24] sm:$0xf]
  %v1894 = vld [vmem:[%s3 + $0x28] sm:$0xf]
  %v1895 = vld [vmem:[%s3 + $0x2c] sm:$0xf]
  %v1896 = vld [vmem:[%s3 + $0x30] sm:$0xf]
  %v1897 = vld [vmem:[%s3 + $0x34] sm:$0xf]
  %v1898 = vld [vmem:[%s3 + $0x38] sm:$0xf]
  %v1899 = vld [vmem:[%s3 + $0x3c] sm:$0xf]
  %v1900 = vld [vmem:[%s3 + $0x40] sm:$0xf]
  %v1901 = vld [vmem:[%s3 + $0x44] sm:$0xf]
  %v1902 = vld [vmem:[%s3 + $0x48] sm:$0xf]
  %v1903 = vld [vmem:[%s3 + $0x4c] sm:$0xf]
  %v1904 = vld [vmem:[%s3 + $0x50] sm:$0xf]
  %v1926 = vunpack.c.l.b16 %v1884
  %v1927 = vunpack.c.l.b16 %v1885
  %v1928 = vunpack.c.l.b16 %v1886
  %v1929 = vunpack.c.l.b16 %v1887
  %v1930 = vunpack.c.l.b16 %v1888
  %v1931 = vunpack.c.l.b16 %v1889
  %v1932 = vunpack.c.l.b16 %v1890
  %v1933 = vunpack.c.l.b16 %v1891
  %v1934 = vunpack.c.l.b16 %v1892
  %v1935 = vunpack.c.l.b16 %v1893
  %v1936 = vunpack.c.l.b16 %v1894
  %v1937 = vunpack.c.l.b16 %v1895
  %v1938 = vunpack.c.l.b16 %v1896
  %v1939 = vunpack.c.l.b16 %v1897
  %v1940 = vunpack.c.l.b16 %v1898
  %v1941 = vunpack.c.l.b16 %v1899
  %v1942 = vunpack.c.l.b16 %v1900
  %v1943 = vunpack.c.l.b16 %v1901
  %v1944 = vunpack.c.l.b16 %v1902
  %v1945 = vunpack.c.l.b16 %v1903
  %v1946 = vunpack.c.l.b16 %v1904
  %v1947 = vpack.c.b16 %v1927, %v1926
  %v1948 = vpack.c.b16 %v1929, %v1928
  %v1949 = vpack.c.b16 %v1931, %v1930
  %v1950 = vpack.c.b16 %v1933, %v1932
  %v1951 = vpack.c.b16 %v1935, %v1934
  %v1952 = vpack.c.b16 %v1937, %v1936
  %v1953 = vpack.c.b16 %v1939, %v1938
  %v1954 = vpack.c.b16 %v1941, %v1940
  %v1955 = vpack.c.b16 %v1943, %v1942
  %v1956 = vpack.c.b16 %v1945, %v1944
  %v1957 = vpack.c.b16 %v1946, %v1946
  %vm1968 = vcmask 326656
  %v1970 = vsel %vm1968, %v1853, 0
  %v1973 = vsel %vm1968, %v1855, 0
  %v1976 = vsel %vm1968, %v1857, 0
  %v1979 = vsel %vm1968, %v1859, 0
  %v1982 = vsel %vm1968, %v1861, 0
  %v1985 = vsel %vm1968, %v1863, 0
  %v1988 = vsel %vm1968, %v1865, 0
  %v1991 = vsel %vm1968, %v1867, 0
  %v1994 = vsel %vm1968, %v1869, 0
  %v1997 = vsel %vm1968, %v1871, 0
  %v2000 = vsel %vm1968, %v1873, 0
  %v2003 = vsel %vm1968, %v1875, 0
  %v2006 = vsel %vm1968, %v1877, 0
  %v2009 = vsel %vm1968, %v1879, 0
  %v2012 = vsel %vm1968, %v1881, 0
  %v2015 = vsel %vm1968, %v1883, 0
  %vm2017 = vcmask 1043456
  %v2019 = vsel %vm2017, %v1957, 0
  %2021 = vmatpush.bf16.msra.mxu0 %v1954
  %2022 = vmatpush.bf16.msra.mxu0 %v1953
  %2023 = vmatpush.bf16.msra.mxu0 %v1952
  %2024 = vmatpush.bf16.msra.mxu0 %v1951
  %2025 = vmatpush.bf16.msra.mxu0 %v1950
  %2026 = vmatpush.bf16.msra.mxu0 %v1949
  %2027 = vmatpush.bf16.msra.mxu0 %v1948
  %2028 = vmatpush.bf16.msra.mxu0 %v1947
  %2029 = vmatmul.bf16.gmra.mxu0 %v1852
  %v2030 = vpop.f32.mrf.mxu0
  %v2031 = vadd.f32 0.0, %v2030
  %v2032 = vpop.f32.mrf.mxu0
  %v2033 = vadd.f32 0.0, %v2032
  %2034 = vmatmul.bf16.gmra.mxu0 %v1854
  %v2035 = vpop.f32.mrf.mxu0
  %v2036 = vadd.f32 0.0, %v2035
  %v2037 = vpop.f32.mrf.mxu0
  %v2038 = vadd.f32 0.0, %v2037
  %2039 = vmatmul.bf16.gmra.mxu0 %v1856
  %v2040 = vpop.f32.mrf.mxu0
  %v2041 = vadd.f32 0.0, %v2040
  %v2042 = vpop.f32.mrf.mxu0
  %v2043 = vadd.f32 0.0, %v2042
  %2044 = vmatmul.bf16.gmra.mxu0 %v1858
  %v2045 = vpop.f32.mrf.mxu0
  %v2046 = vadd.f32 0.0, %v2045
  %v2047 = vpop.f32.mrf.mxu0
  %v2048 = vadd.f32 0.0, %v2047
  %2049 = vmatmul.bf16.gmra.mxu0 %v1860
  %v2050 = vpop.f32.mrf.mxu0
  %v2051 = vadd.f32 0.0, %v2050
  %v2052 = vpop.f32.mrf.mxu0
  %v2053 = vadd.f32 0.0, %v2052
  %2054 = vmatmul.bf16.gmra.mxu0 %v1862
  %v2055 = vpop.f32.mrf.mxu0
  %v2056 = vadd.f32 0.0, %v2055
  %v2057 = vpop.f32.mrf.mxu0
  %v2058 = vadd.f32 0.0, %v2057
  %2059 = vmatmul.bf16.gmra.mxu0 %v1864
  %v2060 = vpop.f32.mrf.mxu0
  %v2061 = vadd.f32 0.0, %v2060
  %v2062 = vpop.f32.mrf.mxu0
  %v2063 = vadd.f32 0.0, %v2062
  %2064 = vmatmul.bf16.gmra.mxu0 %v1866
  %v2065 = vpop.f32.mrf.mxu0
  %v2066 = vadd.f32 0.0, %v2065
  %v2067 = vpop.f32.mrf.mxu0
  %v2068 = vadd.f32 0.0, %v2067
  %2069 = vmatmul.bf16.gmra.mxu0 %v1868
  %v2070 = vpop.f32.mrf.mxu0
  %v2071 = vadd.f32 0.0, %v2070
  %v2072 = vpop.f32.mrf.mxu0
  %v2073 = vadd.f32 0.0, %v2072
  %2074 = vmatmul.bf16.gmra.mxu0 %v1870
  %v2075 = vpop.f32.mrf.mxu0
  %v2076 = vadd.f32 0.0, %v2075
  %v2077 = vpop.f32.mrf.mxu0
  %v2078 = vadd.f32 0.0, %v2077
  %2079 = vmatmul.bf16.gmra.mxu0 %v1872
  %v2080 = vpop.f32.mrf.mxu0
  %v2081 = vadd.f32 0.0, %v2080
  %v2082 = vpop.f32.mrf.mxu0
  %v2083 = vadd.f32 0.0, %v2082
  %2084 = vmatmul.bf16.gmra.mxu0 %v1874
  %v2085 = vpop.f32.mrf.mxu0
  %v2086 = vadd.f32 0.0, %v2085
  %v2087 = vpop.f32.mrf.mxu0
  %v2088 = vadd.f32 0.0, %v2087
  %2089 = vmatmul.bf16.gmra.mxu0 %v1876
  %v2090 = vpop.f32.mrf.mxu0
  %v2091 = vadd.f32 0.0, %v2090
  %v2092 = vpop.f32.mrf.mxu0
  %v2093 = vadd.f32 0.0, %v2092
  %2094 = vmatmul.bf16.gmra.mxu0 %v1878
  %v2095 = vpop.f32.mrf.mxu0
  %v2096 = vadd.f32 0.0, %v2095
  %v2097 = vpop.f32.mrf.mxu0
  %v2098 = vadd.f32 0.0, %v2097
  %2099 = vmatmul.bf16.gmra.mxu0 %v1880
  %v2100 = vpop.f32.mrf.mxu0
  %v2101 = vadd.f32 0.0, %v2100
  %v2102 = vpop.f32.mrf.mxu0
  %v2103 = vadd.f32 0.0, %v2102
  %2104 = vmatmul.bf16.gmra.mxu0 %v1882
  %v2105 = vpop.f32.mrf.mxu0
  %v2106 = vadd.f32 0.0, %v2105
  %v2107 = vpop.f32.mrf.mxu0
  %v2108 = vadd.f32 0.0, %v2107
  %2109 = vdwg.mxu0
  %2110 = vmatpush.bf16.msra.mxu0 0
  %2111 = vmatpush.bf16.msra.mxu0 0
  %2112 = vmatpush.bf16.msra.mxu0 0
  %2113 = vmatpush.bf16.msra.mxu0 0
  %2114 = vmatpush.bf16.msra.mxu0 0
  %2115 = vmatpush.bf16.msra.mxu0 %v2019
  %2116 = vmatpush.bf16.msra.mxu0 %v1956
  %2117 = vmatpush.bf16.msra.mxu0 %v1955
  %2118 = vmatmul.bf16.gmra.mxu0 %v1970
  %v2119 = vpop.f32.mrf.mxu0
  %v2120 = vadd.f32 %v2031, %v2119
  %v2121 = vpop.f32.mrf.mxu0
  %v2122 = vadd.f32 %v2033, %v2121
  %2123 = vmatmul.bf16.gmra.mxu0 %v1973
  %v2124 = vpop.f32.mrf.mxu0
  %v2125 = vadd.f32 %v2036, %v2124
  %v2126 = vpop.f32.mrf.mxu0
  %v2127 = vadd.f32 %v2038, %v2126
  %2128 = vmatmul.bf16.gmra.mxu0 %v1976
  %v2129 = vpop.f32.mrf.mxu0
  %v2130 = vadd.f32 %v2041, %v2129
  %v2131 = vpop.f32.mrf.mxu0
  %v2132 = vadd.f32 %v2043, %v2131
  %2133 = vmatmul.bf16.gmra.mxu0 %v1979
  %v2134 = vpop.f32.mrf.mxu0
  %v2135 = vadd.f32 %v2046, %v2134
  %v2136 = vpop.f32.mrf.mxu0
  %v2137 = vadd.f32 %v2048, %v2136
  %2138 = vmatmul.bf16.gmra.mxu0 %v1982
  %v2139 = vpop.f32.mrf.mxu0
  %v2140 = vadd.f32 %v2051, %v2139
  %v2141 = vpop.f32.mrf.mxu0
  %v2142 = vadd.f32 %v2053, %v2141
  %2143 = vmatmul.bf16.gmra.mxu0 %v1985
  %v2144 = vpop.f32.mrf.mxu0
  %v2145 = vadd.f32 %v2056, %v2144
  %v2146 = vpop.f32.mrf.mxu0
  %v2147 = vadd.f32 %v2058, %v2146
  %2148 = vmatmul.bf16.gmra.mxu0 %v1988
  %v2149 = vpop.f32.mrf.mxu0
  %v2150 = vadd.f32 %v2061, %v2149
  %v2151 = vpop.f32.mrf.mxu0
  %v2152 = vadd.f32 %v2063, %v2151
  %2153 = vmatmul.bf16.gmra.mxu0 %v1991
  %v2154 = vpop.f32.mrf.mxu0
  %v2155 = vadd.f32 %v2066, %v2154
  %v2156 = vpop.f32.mrf.mxu0
  %v2157 = vadd.f32 %v2068, %v2156
  %2158 = vmatmul.bf16.gmra.mxu0 %v1994
  %v2159 = vpop.f32.mrf.mxu0
  %v2160 = vadd.f32 %v2071, %v2159
  %v2161 = vpop.f32.mrf.mxu0
  %v2162 = vadd.f32 %v2073, %v2161
  %2163 = vmatmul.bf16.gmra.mxu0 %v1997
  %v2164 = vpop.f32.mrf.mxu0
  %v2165 = vadd.f32 %v2076, %v2164
  %v2166 = vpop.f32.mrf.mxu0
  %v2167 = vadd.f32 %v2078, %v2166
  %2168 = vmatmul.bf16.gmra.mxu0 %v2000
  %v2169 = vpop.f32.mrf.mxu0
  %v2170 = vadd.f32 %v2081, %v2169
  %v2171 = vpop.f32.mrf.mxu0
  %v2172 = vadd.f32 %v2083, %v2171
  %2173 = vmatmul.bf16.gmra.mxu0 %v2003
  %v2174 = vpop.f32.mrf.mxu0
  %v2175 = vadd.f32 %v2086, %v2174
  %v2176 = vpop.f32.mrf.mxu0
  %v2177 = vadd.f32 %v2088, %v2176
  %2178 = vmatmul.bf16.gmra.mxu0 %v2006
  %v2179 = vpop.f32.mrf.mxu0
  %v2180 = vadd.f32 %v2091, %v2179
  %v2181 = vpop.f32.mrf.mxu0
  %v2182 = vadd.f32 %v2093, %v2181
  %2183 = vmatmul.bf16.gmra.mxu0 %v2009
  %v2184 = vpop.f32.mrf.mxu0
  %v2185 = vadd.f32 %v2096, %v2184
  %v2186 = vpop.f32.mrf.mxu0
  %v2187 = vadd.f32 %v2098, %v2186
  %2188 = vmatmul.bf16.gmra.mxu0 %v2012
  %v2189 = vpop.f32.mrf.mxu0
  %v2190 = vadd.f32 %v2101, %v2189
  %v2191 = vpop.f32.mrf.mxu0
  %v2192 = vadd.f32 %v2103, %v2191
  %2193 = vmatmul.bf16.gmra.mxu0 %v2015
  %v2194 = vpop.f32.mrf.mxu0
  %v2195 = vadd.f32 %v2106, %v2194
  %v2196 = vpop.f32.mrf.mxu0
  %v2197 = vadd.f32 %v2108, %v2196
  %2198 = vdwg.mxu0
  %v2199 = vld [vmem:[%s4] sm:$0xf]
  %v2200 = vld [vmem:[%s4 + $0x4] sm:$0xf]
  %v2201 = vld [vmem:[%s4 + $0x8] sm:$0xf]
  %v2202 = vld [vmem:[%s4 + $0xc] sm:$0xf]
  %v2203 = vld [vmem:[%s4 + $0x10] sm:$0xf]
  %v2204 = vld [vmem:[%s4 + $0x14] sm:$0xf]
  %v2205 = vld [vmem:[%s4 + $0x18] sm:$0xf]
  %v2206 = vld [vmem:[%s4 + $0x1c] sm:$0xf]
  %v2207 = vld [vmem:[%s4 + $0x20] sm:$0xf]
  %v2208 = vld [vmem:[%s4 + $0x24] sm:$0xf]
  %v2209 = vld [vmem:[%s4 + $0x28] sm:$0xf]
  %v2210 = vld [vmem:[%s4 + $0x2c] sm:$0xf]
  %v2211 = vld [vmem:[%s4 + $0x30] sm:$0xf]
  %v2212 = vld [vmem:[%s4 + $0x34] sm:$0xf]
  %v2213 = vld [vmem:[%s4 + $0x38] sm:$0xf]
  %v2214 = vld [vmem:[%s4 + $0x3c] sm:$0xf]
  %v2215 = vld [vmem:[%s4 + $0x40] sm:$0xf]
  %v2216 = vld [vmem:[%s4 + $0x44] sm:$0xf]
  %v2217 = vld [vmem:[%s4 + $0x48] sm:$0xf]
  %v2218 = vld [vmem:[%s4 + $0x4c] sm:$0xf]
  %v2219 = vld [vmem:[%s4 + $0x50] sm:$0xf]
  %v2241 = vunpack.c.l.b16 %v2199
  %v2242 = vunpack.c.l.b16 %v2200
  %v2243 = vunpack.c.l.b16 %v2201
  %v2244 = vunpack.c.l.b16 %v2202
  %v2245 = vunpack.c.l.b16 %v2203
  %v2246 = vunpack.c.l.b16 %v2204
  %v2247 = vunpack.c.l.b16 %v2205
  %v2248 = vunpack.c.l.b16 %v2206
  %v2249 = vunpack.c.l.b16 %v2207
  %v2250 = vunpack.c.l.b16 %v2208
  %v2251 = vunpack.c.l.b16 %v2209
  %v2252 = vunpack.c.l.b16 %v2210
  %v2253 = vunpack.c.l.b16 %v2211
  %v2254 = vunpack.c.l.b16 %v2212
  %v2255 = vunpack.c.l.b16 %v2213
  %v2256 = vunpack.c.l.b16 %v2214
  %v2257 = vunpack.c.l.b16 %v2215
  %v2258 = vunpack.c.l.b16 %v2216
  %v2259 = vunpack.c.l.b16 %v2217
  %v2260 = vunpack.c.l.b16 %v2218
  %v2261 = vunpack.c.l.b16 %v2219
  %v2262 = vpack.c.b16 %v2242, %v2241
  %v2263 = vpack.c.b16 %v2244, %v2243
  %v2264 = vpack.c.b16 %v2246, %v2245
  %v2265 = vpack.c.b16 %v2248, %v2247
  %v2266 = vpack.c.b16 %v2250, %v2249
  %v2267 = vpack.c.b16 %v2252, %v2251
  %v2268 = vpack.c.b16 %v2254, %v2253
  %v2269 = vpack.c.b16 %v2256, %v2255
  %v2270 = vpack.c.b16 %v2258, %v2257
  %v2271 = vpack.c.b16 %v2260, %v2259
  %v2272 = vpack.c.b16 %v2261, %v2261
  %v2284 = vsel %vm2017, %v2272, 0
  %2286 = vmatpush.bf16.msra.mxu0 %v2269
  %2287 = vmatpush.bf16.msra.mxu0 %v2268
  %2288 = vmatpush.bf16.msra.mxu0 %v2267
  %2289 = vmatpush.bf16.msra.mxu0 %v2266
  %2290 = vmatpush.bf16.msra.mxu0 %v2265
  %2291 = vmatpush.bf16.msra.mxu0 %v2264
  %2292 = vmatpush.bf16.msra.mxu0 %v2263
  %2293 = vmatpush.bf16.msra.mxu0 %v2262
  %2294 = vmatmul.bf16.gmra.mxu0 %v1852
  %v2295 = vpop.f32.mrf.mxu0
  %v2296 = vadd.f32 0.0, %v2295
  %v2297 = vpop.f32.mrf.mxu0
  %v2298 = vadd.f32 0.0, %v2297
  %2299 = vmatmul.bf16.gmra.mxu0 %v1854
  %v2300 = vpop.f32.mrf.mxu0
  %v2301 = vadd.f32 0.0, %v2300
  %v2302 = vpop.f32.mrf.mxu0
  %v2303 = vadd.f32 0.0, %v2302
  %2304 = vmatmul.bf16.gmra.mxu0 %v1856
  %v2305 = vpop.f32.mrf.mxu0
  %v2306 = vadd.f32 0.0, %v2305
  %v2307 = vpop.f32.mrf.mxu0
  %v2308 = vadd.f32 0.0, %v2307
  %2309 = vmatmul.bf16.gmra.mxu0 %v1858
  %v2310 = vpop.f32.mrf.mxu0
  %v2311 = vadd.f32 0.0, %v2310
  %v2312 = vpop.f32.mrf.mxu0
  %v2313 = vadd.f32 0.0, %v2312
  %2314 = vmatmul.bf16.gmra.mxu0 %v1860
  %v2315 = vpop.f32.mrf.mxu0
  %v2316 = vadd.f32 0.0, %v2315
  %v2317 = vpop.f32.mrf.mxu0
  %v2318 = vadd.f32 0.0, %v2317
  %2319 = vmatmul.bf16.gmra.mxu0 %v1862
  %v2320 = vpop.f32.mrf.mxu0
  %v2321 = vadd.f32 0.0, %v2320
  %v2322 = vpop.f32.mrf.mxu0
  %v2323 = vadd.f32 0.0, %v2322
  %2324 = vmatmul.bf16.gmra.mxu0 %v1864
  %v2325 = vpop.f32.mrf.mxu0
  %v2326 = vadd.f32 0.0, %v2325
  %v2327 = vpop.f32.mrf.mxu0
  %v2328 = vadd.f32 0.0, %v2327
  %2329 = vmatmul.bf16.gmra.mxu0 %v1866
  %v2330 = vpop.f32.mrf.mxu0
  %v2331 = vadd.f32 0.0, %v2330
  %v2332 = vpop.f32.mrf.mxu0
  %v2333 = vadd.f32 0.0, %v2332
  %2334 = vmatmul.bf16.gmra.mxu0 %v1868
  %v2335 = vpop.f32.mrf.mxu0
  %v2336 = vadd.f32 0.0, %v2335
  %v2337 = vpop.f32.mrf.mxu0
  %v2338 = vadd.f32 0.0, %v2337
  %2339 = vmatmul.bf16.gmra.mxu0 %v1870
  %v2340 = vpop.f32.mrf.mxu0
  %v2341 = vadd.f32 0.0, %v2340
  %v2342 = vpop.f32.mrf.mxu0
  %v2343 = vadd.f32 0.0, %v2342
  %2344 = vmatmul.bf16.gmra.mxu0 %v1872
  %v2345 = vpop.f32.mrf.mxu0
  %v2346 = vadd.f32 0.0, %v2345
  %v2347 = vpop.f32.mrf.mxu0
  %v2348 = vadd.f32 0.0, %v2347
  %2349 = vmatmul.bf16.gmra.mxu0 %v1874
  %v2350 = vpop.f32.mrf.mxu0
  %v2351 = vadd.f32 0.0, %v2350
  %v2352 = vpop.f32.mrf.mxu0
  %v2353 = vadd.f32 0.0, %v2352
  %2354 = vmatmul.bf16.gmra.mxu0 %v1876
  %v2355 = vpop.f32.mrf.mxu0
  %v2356 = vadd.f32 0.0, %v2355
  %v2357 = vpop.f32.mrf.mxu0
  %v2358 = vadd.f32 0.0, %v2357
  %2359 = vmatmul.bf16.gmra.mxu0 %v1878
  %v2360 = vpop.f32.mrf.mxu0
  %v2361 = vadd.f32 0.0, %v2360
  %v2362 = vpop.f32.mrf.mxu0
  %v2363 = vadd.f32 0.0, %v2362
  %2364 = vmatmul.bf16.gmra.mxu0 %v1880
  %v2365 = vpop.f32.mrf.mxu0
  %v2366 = vadd.f32 0.0, %v2365
  %v2367 = vpop.f32.mrf.mxu0
  %v2368 = vadd.f32 0.0, %v2367
  %2369 = vmatmul.bf16.gmra.mxu0 %v1882
  %v2370 = vpop.f32.mrf.mxu0
  %v2371 = vadd.f32 0.0, %v2370
  %v2372 = vpop.f32.mrf.mxu0
  %v2373 = vadd.f32 0.0, %v2372
  %2374 = vdwg.mxu0
  %2375 = vmatpush.bf16.msra.mxu0 0
  %2376 = vmatpush.bf16.msra.mxu0 0
  %2377 = vmatpush.bf16.msra.mxu0 0
  %2378 = vmatpush.bf16.msra.mxu0 0
  %2379 = vmatpush.bf16.msra.mxu0 0
  %2380 = vmatpush.bf16.msra.mxu0 %v2284
  %2381 = vmatpush.bf16.msra.mxu0 %v2271
  %2382 = vmatpush.bf16.msra.mxu0 %v2270
  %2383 = vmatmul.bf16.gmra.mxu0 %v1970
  %v2384 = vpop.f32.mrf.mxu0
  %v2385 = vadd.f32 %v2296, %v2384
  %v2386 = vpop.f32.mrf.mxu0
  %v2387 = vadd.f32 %v2298, %v2386
  %2388 = vmatmul.bf16.gmra.mxu0 %v1973
  %v2389 = vpop.f32.mrf.mxu0
  %v2390 = vadd.f32 %v2301, %v2389
  %v2391 = vpop.f32.mrf.mxu0
  %v2392 = vadd.f32 %v2303, %v2391
  %2393 = vmatmul.bf16.gmra.mxu0 %v1976
  %v2394 = vpop.f32.mrf.mxu0
  %v2395 = vadd.f32 %v2306, %v2394
  %v2396 = vpop.f32.mrf.mxu0
  %v2397 = vadd.f32 %v2308, %v2396
  %2398 = vmatmul.bf16.gmra.mxu0 %v1979
  %v2399 = vpop.f32.mrf.mxu0
  %v2400 = vadd.f32 %v2311, %v2399
  %v2401 = vpop.f32.mrf.mxu0
  %v2402 = vadd.f32 %v2313, %v2401
  %2403 = vmatmul.bf16.gmra.mxu0 %v1982
  %v2404 = vpop.f32.mrf.mxu0
  %v2405 = vadd.f32 %v2316, %v2404
  %v2406 = vpop.f32.mrf.mxu0
  %v2407 = vadd.f32 %v2318, %v2406
  %2408 = vmatmul.bf16.gmra.mxu0 %v1985
  %v2409 = vpop.f32.mrf.mxu0
  %v2410 = vadd.f32 %v2321, %v2409
  %v2411 = vpop.f32.mrf.mxu0
  %v2412 = vadd.f32 %v2323, %v2411
  %2413 = vmatmul.bf16.gmra.mxu0 %v1988
  %v2414 = vpop.f32.mrf.mxu0
  %v2415 = vadd.f32 %v2326, %v2414
  %v2416 = vpop.f32.mrf.mxu0
  %v2417 = vadd.f32 %v2328, %v2416
  %2418 = vmatmul.bf16.gmra.mxu0 %v1991
  %v2419 = vpop.f32.mrf.mxu0
  %v2420 = vadd.f32 %v2331, %v2419
  %v2421 = vpop.f32.mrf.mxu0
  %v2422 = vadd.f32 %v2333, %v2421
  %2423 = vmatmul.bf16.gmra.mxu0 %v1994
  %v2424 = vpop.f32.mrf.mxu0
  %v2425 = vadd.f32 %v2336, %v2424
  %v2426 = vpop.f32.mrf.mxu0
  %v2427 = vadd.f32 %v2338, %v2426
  %2428 = vmatmul.bf16.gmra.mxu0 %v1997
  %v2429 = vpop.f32.mrf.mxu0
  %v2430 = vadd.f32 %v2341, %v2429
  %v2431 = vpop.f32.mrf.mxu0
  %v2432 = vadd.f32 %v2343, %v2431
  %2433 = vmatmul.bf16.gmra.mxu0 %v2000
  %v2434 = vpop.f32.mrf.mxu0
  %v2435 = vadd.f32 %v2346, %v2434
  %v2436 = vpop.f32.mrf.mxu0
  %v2437 = vadd.f32 %v2348, %v2436
  %2438 = vmatmul.bf16.gmra.mxu0 %v2003
  %v2439 = vpop.f32.mrf.mxu0
  %v2440 = vadd.f32 %v2351, %v2439
  %v2441 = vpop.f32.mrf.mxu0
  %v2442 = vadd.f32 %v2353, %v2441
  %2443 = vmatmul.bf16.gmra.mxu0 %v2006
  %v2444 = vpop.f32.mrf.mxu0
  %v2445 = vadd.f32 %v2356, %v2444
  %v2446 = vpop.f32.mrf.mxu0
  %v2447 = vadd.f32 %v2358, %v2446
  %2448 = vmatmul.bf16.gmra.mxu0 %v2009
  %v2449 = vpop.f32.mrf.mxu0
  %v2450 = vadd.f32 %v2361, %v2449
  %v2451 = vpop.f32.mrf.mxu0
  %v2452 = vadd.f32 %v2363, %v2451
  %2453 = vmatmul.bf16.gmra.mxu0 %v2012
  %v2454 = vpop.f32.mrf.mxu0
  %v2455 = vadd.f32 %v2366, %v2454
  %v2456 = vpop.f32.mrf.mxu0
  %v2457 = vadd.f32 %v2368, %v2456
  %2458 = vmatmul.bf16.gmra.mxu0 %v2015
  %v2459 = vpop.f32.mrf.mxu0
  %v2460 = vadd.f32 %v2371, %v2459
  %v2461 = vpop.f32.mrf.mxu0
  %v2462 = vadd.f32 %v2373, %v2461
  %2463 = vdwg.mxu0
  %v2464 = vmax.f32 %v2120, %v2385
  %v2465 = vmax.f32 %v2122, %v2387
  %v2466 = vmax.f32 %v2125, %v2390
  %v2467 = vmax.f32 %v2127, %v2392
  %v2468 = vmax.f32 %v2130, %v2395
  %v2469 = vmax.f32 %v2132, %v2397
  %v2470 = vmax.f32 %v2135, %v2400
  %v2471 = vmax.f32 %v2137, %v2402
  %v2472 = vmax.f32 %v2140, %v2405
  %v2473 = vmax.f32 %v2142, %v2407
  %v2474 = vmax.f32 %v2145, %v2410
  %v2475 = vmax.f32 %v2147, %v2412
  %v2476 = vmax.f32 %v2150, %v2415
  %v2477 = vmax.f32 %v2152, %v2417
  %v2478 = vmax.f32 %v2155, %v2420
  %v2479 = vmax.f32 %v2157, %v2422
  %v2480 = vmax.f32 %v2160, %v2425
  %v2481 = vmax.f32 %v2162, %v2427
  %v2482 = vmax.f32 %v2165, %v2430
  %v2483 = vmax.f32 %v2167, %v2432
  %v2484 = vmax.f32 %v2170, %v2435
  %v2485 = vmax.f32 %v2172, %v2437
  %v2486 = vmax.f32 %v2175, %v2440
  %v2487 = vmax.f32 %v2177, %v2442
  %v2488 = vmax.f32 %v2180, %v2445
  %v2489 = vmax.f32 %v2182, %v2447
  %v2490 = vmax.f32 %v2185, %v2450
  %v2491 = vmax.f32 %v2187, %v2452
  %v2492 = vmax.f32 %v2190, %v2455
  %v2493 = vmax.f32 %v2192, %v2457
  %v2494 = vmax.f32 %v2195, %v2460
  %v2495 = vmax.f32 %v2197, %v2462
  %vm2528 = vcmask 1046528
  %v2529 = vrot.slane %v2464, 1
  %v2530 = vrot.slane %v2465, 1
  %v2531 = vsel %vm2528, %v2529, %v2530
  %v2532 = vrot.slane %v2466, 1
  %v2533 = vsel %vm2528, %v2530, %v2532
  %v2534 = vrot.slane %v2467, 1
  %v2535 = vsel %vm2528, %v2532, %v2534
  %v2536 = vrot.slane %v2468, 1
  %v2537 = vsel %vm2528, %v2534, %v2536
  %v2538 = vrot.slane %v2469, 1
  %v2539 = vsel %vm2528, %v2536, %v2538
  %v2540 = vrot.slane %v2470, 1
  %v2541 = vsel %vm2528, %v2538, %v2540
  %v2542 = vrot.slane %v2471, 1
  %v2543 = vsel %vm2528, %v2540, %v2542
  %v2544 = vrot.slane %v2472, 1
  %v2545 = vsel %vm2528, %v2542, %v2544
  %v2546 = vrot.slane %v2473, 1
  %v2547 = vsel %vm2528, %v2544, %v2546
  %v2548 = vrot.slane %v2474, 1
  %v2549 = vsel %vm2528, %v2546, %v2548
  %v2550 = vrot.slane %v2475, 1
  %v2551 = vsel %vm2528, %v2548, %v2550
  %v2552 = vrot.slane %v2476, 1
  %v2553 = vsel %vm2528, %v2550, %v2552
  %v2554 = vrot.slane %v2477, 1
  %v2555 = vsel %vm2528, %v2552, %v2554
  %v2556 = vrot.slane %v2478, 1
  %v2557 = vsel %vm2528, %v2554, %v2556
  %v2558 = vrot.slane %v2479, 1
  %v2559 = vsel %vm2528, %v2556, %v2558
  %v2560 = vrot.slane %v2480, 1
  %v2561 = vsel %vm2528, %v2558, %v2560
  %v2562 = vrot.slane %v2481, 1
  %v2563 = vsel %vm2528, %v2560, %v2562
  %v2564 = vrot.slane %v2482, 1
  %v2565 = vsel %vm2528, %v2562, %v2564
  %v2566 = vrot.slane %v2483, 1
  %v2567 = vsel %vm2528, %v2564, %v2566
  %v2568 = vrot.slane %v2484, 1
  %v2569 = vsel %vm2528, %v2566, %v2568
  %v2570 = vrot.slane %v2485, 1
  %v2571 = vsel %vm2528, %v2568, %v2570
  %v2572 = vrot.slane %v2486, 1
  %v2573 = vsel %vm2528, %v2570, %v2572
  %v2574 = vrot.slane %v2487, 1
  %v2575 = vsel %vm2528, %v2572, %v2574
  %v2576 = vrot.slane %v2488, 1
  %v2577 = vsel %vm2528, %v2574, %v2576
  %v2578 = vrot.slane %v2489, 1
  %v2579 = vsel %vm2528, %v2576, %v2578
  %v2580 = vrot.slane %v2490, 1
  %v2581 = vsel %vm2528, %v2578, %v2580
  %v2582 = vrot.slane %v2491, 1
  %v2583 = vsel %vm2528, %v2580, %v2582
  %v2584 = vrot.slane %v2492, 1
  %v2585 = vsel %vm2528, %v2582, %v2584
  %v2586 = vrot.slane %v2493, 1
  %v2587 = vsel %vm2528, %v2584, %v2586
  %v2588 = vrot.slane %v2494, 1
  %v2589 = vsel %vm2528, %v2586, %v2588
  %v2590 = vrot.slane %v2495, 1
  %v2591 = vsel %vm2528, %v2588, %v2590
  %v2624 = vmax.f32 %v2464, %v2531
  %v2625 = vmax.f32 %v2465, %v2533
  %v2626 = vmax.f32 %v2466, %v2535
  %v2627 = vmax.f32 %v2467, %v2537
  %v2628 = vmax.f32 %v2468, %v2539
  %v2629 = vmax.f32 %v2469, %v2541
  %v2630 = vmax.f32 %v2470, %v2543
  %v2631 = vmax.f32 %v2471, %v2545
  %v2632 = vmax.f32 %v2472, %v2547
  %v2633 = vmax.f32 %v2473, %v2549
  %v2634 = vmax.f32 %v2474, %v2551
  %v2635 = vmax.f32 %v2475, %v2553
  %v2636 = vmax.f32 %v2476, %v2555
  %v2637 = vmax.f32 %v2477, %v2557
  %v2638 = vmax.f32 %v2478, %v2559
  %v2639 = vmax.f32 %v2479, %v2561
  %v2640 = vmax.f32 %v2480, %v2563
  %v2641 = vmax.f32 %v2481, %v2565
  %v2642 = vmax.f32 %v2482, %v2567
  %v2643 = vmax.f32 %v2483, %v2569
  %v2644 = vmax.f32 %v2484, %v2571
  %v2645 = vmax.f32 %v2485, %v2573
  %v2646 = vmax.f32 %v2486, %v2575
  %v2647 = vmax.f32 %v2487, %v2577
  %v2648 = vmax.f32 %v2488, %v2579
  %v2649 = vmax.f32 %v2489, %v2581
  %v2650 = vmax.f32 %v2490, %v2583
  %v2651 = vmax.f32 %v2491, %v2585
  %v2652 = vmax.f32 %v2492, %v2587
  %v2653 = vmax.f32 %v2493, %v2589
  %v2654 = vmax.f32 %v2494, %v2591
  %v2655 = vmax.f32 %v2495, %v2590
  %v2656 = vpack.c.bf16 %v2624, %v2624
  %v2657 = vpack.c.bf16 %v2625, %v2625
  %v2658 = vpack.c.bf16 %v2626, %v2626
  %v2659 = vpack.c.bf16 %v2627, %v2627
  %v2660 = vpack.c.bf16 %v2628, %v2628
  %v2661 = vpack.c.bf16 %v2629, %v2629
  %v2662 = vpack.c.bf16 %v2630, %v2630
  %v2663 = vpack.c.bf16 %v2631, %v2631
  %v2664 = vpack.c.bf16 %v2632, %v2632
  %v2665 = vpack.c.bf16 %v2633, %v2633
  %v2666 = vpack.c.bf16 %v2634, %v2634
  %v2667 = vpack.c.bf16 %v2635, %v2635
  %v2668 = vpack.c.bf16 %v2636, %v2636
  %v2669 = vpack.c.bf16 %v2637, %v2637
  %v2670 = vpack.c.bf16 %v2638, %v2638
  %v2671 = vpack.c.bf16 %v2639, %v2639
  %v2672 = vpack.c.bf16 %v2640, %v2640
  %v2673 = vpack.c.bf16 %v2641, %v2641
  %v2674 = vpack.c.bf16 %v2642, %v2642
  %v2675 = vpack.c.bf16 %v2643, %v2643
  %v2676 = vpack.c.bf16 %v2644, %v2644
  %v2677 = vpack.c.bf16 %v2645, %v2645
  %v2678 = vpack.c.bf16 %v2646, %v2646
  %v2679 = vpack.c.bf16 %v2647, %v2647
  %v2680 = vpack.c.bf16 %v2648, %v2648
  %v2681 = vpack.c.bf16 %v2649, %v2649
  %v2682 = vpack.c.bf16 %v2650, %v2650
  %v2683 = vpack.c.bf16 %v2651, %v2651
  %v2684 = vpack.c.bf16 %v2652, %v2652
  %v2685 = vpack.c.bf16 %v2653, %v2653
  %v2686 = vpack.c.bf16 %v2654, %v2654
  %v2687 = vpack.c.bf16 %v2655, %v2655
  %v2719 = vunpack.c.l.b16 %v2656
  %v2720 = vunpack.c.l.b16 %v2657
  %v2721 = vunpack.c.l.b16 %v2658
  %v2722 = vunpack.c.l.b16 %v2659
  %v2723 = vunpack.c.l.b16 %v2660
  %v2724 = vunpack.c.l.b16 %v2661
  %v2725 = vunpack.c.l.b16 %v2662
  %v2726 = vunpack.c.l.b16 %v2663
  %v2727 = vunpack.c.l.b16 %v2664
  %v2728 = vunpack.c.l.b16 %v2665
  %v2729 = vunpack.c.l.b16 %v2666
  %v2730 = vunpack.c.l.b16 %v2667
  %v2731 = vunpack.c.l.b16 %v2668
  %v2732 = vunpack.c.l.b16 %v2669
  %v2733 = vunpack.c.l.b16 %v2670
  %v2734 = vunpack.c.l.b16 %v2671
  %v2735 = vunpack.c.l.b16 %v2672
  %v2736 = vunpack.c.l.b16 %v2673
  %v2737 = vunpack.c.l.b16 %v2674
  %v2738 = vunpack.c.l.b16 %v2675
  %v2739 = vunpack.c.l.b16 %v2676
  %v2740 = vunpack.c.l.b16 %v2677
  %v2741 = vunpack.c.l.b16 %v2678
  %v2742 = vunpack.c.l.b16 %v2679
  %v2743 = vunpack.c.l.b16 %v2680
  %v2744 = vunpack.c.l.b16 %v2681
  %v2745 = vunpack.c.l.b16 %v2682
  %v2746 = vunpack.c.l.b16 %v2683
  %v2747 = vunpack.c.l.b16 %v2684
  %v2748 = vunpack.c.l.b16 %v2685
  %v2749 = vunpack.c.l.b16 %v2686
  %v2750 = vpack.c.b16 %v2720, %v2719
  %v2751 = vpack.c.b16 %v2722, %v2721
  %v2752 = vpack.c.b16 %v2724, %v2723
  %v2753 = vpack.c.b16 %v2726, %v2725
  %v2754 = vpack.c.b16 %v2728, %v2727
  %v2755 = vpack.c.b16 %v2730, %v2729
  %v2756 = vpack.c.b16 %v2732, %v2731
  %v2757 = vpack.c.b16 %v2734, %v2733
  %v2758 = vpack.c.b16 %v2736, %v2735
  %v2759 = vpack.c.b16 %v2738, %v2737
  %v2760 = vpack.c.b16 %v2740, %v2739
  %v2761 = vpack.c.b16 %v2742, %v2741
  %v2762 = vpack.c.b16 %v2744, %v2743
  %v2763 = vpack.c.b16 %v2746, %v2745
  %v2764 = vpack.c.b16 %v2748, %v2747
  %v2765 = vpack.c.b16 %v2749, %v2749
  %v2766 = vrot.slane %v2750, 1
  %v2767 = vrot.slane %v2751, 1
  %v2768 = vsel %vm323, %v2766, %v2767
  %v2769 = vrot.slane %v2752, 1
  %v2770 = vsel %vm323, %v2767, %v2769
  %v2771 = vrot.slane %v2753, 1
  %v2772 = vsel %vm323, %v2769, %v2771
  %v2773 = vrot.slane %v2754, 1
  %v2774 = vsel %vm323, %v2771, %v2773
  %v2775 = vrot.slane %v2755, 1
  %v2776 = vsel %vm323, %v2773, %v2775
  %v2777 = vrot.slane %v2756, 1
  %v2778 = vsel %vm323, %v2775, %v2777
  %v2779 = vrot.slane %v2757, 1
  %v2780 = vsel %vm323, %v2777, %v2779
  %v2781 = vrot.slane %v2758, 1
  %v2782 = vsel %vm323, %v2779, %v2781
  %v2783 = vrot.slane %v2759, 1
  %v2784 = vsel %vm323, %v2781, %v2783
  %v2785 = vrot.slane %v2760, 1
  %v2786 = vsel %vm323, %v2783, %v2785
  %v2787 = vrot.slane %v2761, 1
  %v2788 = vsel %vm323, %v2785, %v2787
  %v2789 = vrot.slane %v2762, 1
  %v2790 = vsel %vm323, %v2787, %v2789
  %v2791 = vrot.slane %v2763, 1
  %v2792 = vsel %vm323, %v2789, %v2791
  %v2793 = vrot.slane %v2764, 1
  %v2794 = vsel %vm323, %v2791, %v2793
  %v2795 = vrot.slane %v2765, 1
  %v2796 = vsel %vm323, %v2793, %v2795
  %2797 = vrot.lane.b32.xlu0 %v2768, 84
  %v2798 = vpop.permute.xlu0 %2797
  %2799 = vrot.lane.b32.xlu0 %v2770, 84
  %v2800 = vpop.permute.xlu0 %2799
  %2801 = vrot.lane.b32.xlu0 %v2772, 84
  %v2802 = vpop.permute.xlu0 %2801
  %2803 = vrot.lane.b32.xlu0 %v2774, 84
  %v2804 = vpop.permute.xlu0 %2803
  %2805 = vrot.lane.b32.xlu0 %v2776, 84
  %v2806 = vpop.permute.xlu0 %2805
  %2807 = vrot.lane.b32.xlu0 %v2778, 84
  %v2808 = vpop.permute.xlu0 %2807
  %2809 = vrot.lane.b32.xlu0 %v2780, 84
  %v2810 = vpop.permute.xlu0 %2809
  %2811 = vrot.lane.b32.xlu0 %v2782, 84
  %v2812 = vpop.permute.xlu0 %2811
  %2813 = vrot.lane.b32.xlu0 %v2784, 84
  %v2814 = vpop.permute.xlu0 %2813
  %2815 = vrot.lane.b32.xlu0 %v2786, 84
  %v2816 = vpop.permute.xlu0 %2815
  %2817 = vrot.lane.b32.xlu0 %v2788, 84
  %v2818 = vpop.permute.xlu0 %2817
  %2819 = vrot.lane.b32.xlu0 %v2790, 84
  %v2820 = vpop.permute.xlu0 %2819
  %2821 = vrot.lane.b32.xlu0 %v2792, 84
  %v2822 = vpop.permute.xlu0 %2821
  %2823 = vrot.lane.b32.xlu0 %v2794, 84
  %v2824 = vpop.permute.xlu0 %2823
  %2825 = vrot.lane.b32.xlu0 %v2796, 84
  %v2826 = vpop.permute.xlu0 %2825
  %2827 = vrot.lane.b32.xlu0 %v2795, 84
  %v2828 = vpop.permute.xlu0 %2827
  %v2829 = vrot.slane %v2750, 2
  %v2830 = vrot.slane %v2751, 2
  %v2831 = vsel %vm483, %v2829, %v2830
  %v2832 = vrot.slane %v2752, 2
  %v2833 = vsel %vm483, %v2830, %v2832
  %v2834 = vrot.slane %v2753, 2
  %v2835 = vsel %vm483, %v2832, %v2834
  %v2836 = vrot.slane %v2754, 2
  %v2837 = vsel %vm483, %v2834, %v2836
  %v2838 = vrot.slane %v2755, 2
  %v2839 = vsel %vm483, %v2836, %v2838
  %v2840 = vrot.slane %v2756, 2
  %v2841 = vsel %vm483, %v2838, %v2840
  %v2842 = vrot.slane %v2757, 2
  %v2843 = vsel %vm483, %v2840, %v2842
  %v2844 = vrot.slane %v2758, 2
  %v2845 = vsel %vm483, %v2842, %v2844
  %v2846 = vrot.slane %v2759, 2
  %v2847 = vsel %vm483, %v2844, %v2846
  %v2848 = vrot.slane %v2760, 2
  %v2849 = vsel %vm483, %v2846, %v2848
  %v2850 = vrot.slane %v2761, 2
  %v2851 = vsel %vm483, %v2848, %v2850
  %v2852 = vrot.slane %v2762, 2
  %v2853 = vsel %vm483, %v2850, %v2852
  %v2854 = vrot.slane %v2763, 2
  %v2855 = vsel %vm483, %v2852, %v2854
  %v2856 = vrot.slane %v2764, 2
  %v2857 = vsel %vm483, %v2854, %v2856
  %v2858 = vrot.slane %v2765, 2
  %v2859 = vsel %vm483, %v2856, %v2858
  %2860 = vrot.lane.b32.xlu0 %v2831, 40
  %v2861 = vpop.permute.xlu0 %2860
  %2862 = vrot.lane.b32.xlu0 %v2833, 40
  %v2863 = vpop.permute.xlu0 %2862
  %2864 = vrot.lane.b32.xlu0 %v2835, 40
  %v2865 = vpop.permute.xlu0 %2864
  %2866 = vrot.lane.b32.xlu0 %v2837, 40
  %v2867 = vpop.permute.xlu0 %2866
  %2868 = vrot.lane.b32.xlu0 %v2839, 40
  %v2869 = vpop.permute.xlu0 %2868
  %2870 = vrot.lane.b32.xlu0 %v2841, 40
  %v2871 = vpop.permute.xlu0 %2870
  %2872 = vrot.lane.b32.xlu0 %v2843, 40
  %v2873 = vpop.permute.xlu0 %2872
  %2874 = vrot.lane.b32.xlu0 %v2845, 40
  %v2875 = vpop.permute.xlu0 %2874
  %2876 = vrot.lane.b32.xlu0 %v2847, 40
  %v2877 = vpop.permute.xlu0 %2876
  %2878 = vrot.lane.b32.xlu0 %v2849, 40
  %v2879 = vpop.permute.xlu0 %2878
  %2880 = vrot.lane.b32.xlu0 %v2851, 40
  %v2881 = vpop.permute.xlu0 %2880
  %2882 = vrot.lane.b32.xlu0 %v2853, 40
  %v2883 = vpop.permute.xlu0 %2882
  %2884 = vrot.lane.b32.xlu0 %v2855, 40
  %v2885 = vpop.permute.xlu0 %2884
  %2886 = vrot.lane.b32.xlu0 %v2857, 40
  %v2887 = vpop.permute.xlu0 %2886
  %2888 = vrot.lane.b32.xlu0 %v2859, 40
  %v2889 = vpop.permute.xlu0 %2888
  %2890 = vrot.lane.b32.xlu0 %v2858, 40
  %v2891 = vpop.permute.xlu0 %2890
  %v2893 = vunpack.c.l.b16 %v2687
  %v2894 = vpack.c.b16 %v2893, %v2749
  %vm2895 = vcmask 1044480
  %v2896 = vrot.slane %v2750, 3
  %v2897 = vrot.slane %v2751, 3
  %v2898 = vsel %vm2895, %v2896, %v2897
  %v2899 = vrot.slane %v2752, 3
  %v2900 = vsel %vm2895, %v2897, %v2899
  %v2901 = vrot.slane %v2753, 3
  %v2902 = vsel %vm2895, %v2899, %v2901
  %v2903 = vrot.slane %v2754, 3
  %v2904 = vsel %vm2895, %v2901, %v2903
  %v2905 = vrot.slane %v2755, 3
  %v2906 = vsel %vm2895, %v2903, %v2905
  %v2907 = vrot.slane %v2756, 3
  %v2908 = vsel %vm2895, %v2905, %v2907
  %v2909 = vrot.slane %v2757, 3
  %v2910 = vsel %vm2895, %v2907, %v2909
  %v2911 = vrot.slane %v2758, 3
  %v2912 = vsel %vm2895, %v2909, %v2911
  %v2913 = vrot.slane %v2759, 3
  %v2914 = vsel %vm2895, %v2911, %v2913
  %v2915 = vrot.slane %v2760, 3
  %v2916 = vsel %vm2895, %v2913, %v2915
  %v2917 = vrot.slane %v2761, 3
  %v2918 = vsel %vm2895, %v2915, %v2917
  %v2919 = vrot.slane %v2762, 3
  %v2920 = vsel %vm2895, %v2917, %v2919
  %v2921 = vrot.slane %v2763, 3
  %v2922 = vsel %vm2895, %v2919, %v2921
  %v2923 = vrot.slane %v2764, 3
  %v2924 = vsel %vm2895, %v2921, %v2923
  %v2925 = vrot.slane %v2894, 3
  %v2926 = vsel %vm2895, %v2923, %v2925
  %2927 = vrot.lane.b32.xlu0 %v2898, 124
  %v2928 = vpop.permute.xlu0 %2927
  %2929 = vrot.lane.b32.xlu0 %v2900, 124
  %v2930 = vpop.permute.xlu0 %2929
  %2931 = vrot.lane.b32.xlu0 %v2902, 124
  %v2932 = vpop.permute.xlu0 %2931
  %2933 = vrot.lane.b32.xlu0 %v2904, 124
  %v2934 = vpop.permute.xlu0 %2933
  %2935 = vrot.lane.b32.xlu0 %v2906, 124
  %v2936 = vpop.permute.xlu0 %2935
  %2937 = vrot.lane.b32.xlu0 %v2908, 124
  %v2938 = vpop.permute.xlu0 %2937
  %2939 = vrot.lane.b32.xlu0 %v2910, 124
  %v2940 = vpop.permute.xlu0 %2939
  %2941 = vrot.lane.b32.xlu0 %v2912, 124
  %v2942 = vpop.permute.xlu0 %2941
  %2943 = vrot.lane.b32.xlu0 %v2914, 124
  %v2944 = vpop.permute.xlu0 %2943
  %2945 = vrot.lane.b32.xlu0 %v2916, 124
  %v2946 = vpop.permute.xlu0 %2945
  %2947 = vrot.lane.b32.xlu0 %v2918, 124
  %v2948 = vpop.permute.xlu0 %2947
  %2949 = vrot.lane.b32.xlu0 %v2920, 124
  %v2950 = vpop.permute.xlu0 %2949
  %2951 = vrot.lane.b32.xlu0 %v2922, 124
  %v2952 = vpop.permute.xlu0 %2951
  %2953 = vrot.lane.b32.xlu0 %v2924, 124
  %v2954 = vpop.permute.xlu0 %2953
  %2955 = vrot.lane.b32.xlu0 %v2926, 124
  %v2956 = vpop.permute.xlu0 %2955
  %2957 = vrot.lane.b32.xlu0 %v2925, 124
  %v2958 = vpop.permute.xlu0 %2957
  %v2959 = vpack.c.b16 %v2721, %v2720
  %v2960 = vpack.c.b16 %v2723, %v2722
  %v2961 = vpack.c.b16 %v2725, %v2724
  %v2962 = vpack.c.b16 %v2727, %v2726
  %v2963 = vpack.c.b16 %v2729, %v2728
  %v2964 = vpack.c.b16 %v2731, %v2730
  %v2965 = vpack.c.b16 %v2733, %v2732
  %v2966 = vpack.c.b16 %v2735, %v2734
  %v2967 = vpack.c.b16 %v2737, %v2736
  %v2968 = vpack.c.b16 %v2739, %v2738
  %v2969 = vpack.c.b16 %v2741, %v2740
  %v2970 = vpack.c.b16 %v2743, %v2742
  %v2971 = vpack.c.b16 %v2745, %v2744
  %v2972 = vpack.c.b16 %v2747, %v2746
  %v2973 = vpack.c.b16 %v2749, %v2748
  %v2974 = vpack.c.b16 %v2893, %v2893
  %2975 = vrot.lane.b32.xlu0 %v2959, 80
  %v2976 = vpop.permute.xlu0 %2975
  %2977 = vrot.lane.b32.xlu0 %v2960, 80
  %v2978 = vpop.permute.xlu0 %2977
  %2979 = vrot.lane.b32.xlu0 %v2961, 80
  %v2980 = vpop.permute.xlu0 %2979
  %2981 = vrot.lane.b32.xlu0 %v2962, 80
  %v2982 = vpop.permute.xlu0 %2981
  %2983 = vrot.lane.b32.xlu0 %v2963, 80
  %v2984 = vpop.permute.xlu0 %2983
  %2985 = vrot.lane.b32.xlu0 %v2964, 80
  %v2986 = vpop.permute.xlu0 %2985
  %2987 = vrot.lane.b32.xlu0 %v2965, 80
  %v2988 = vpop.permute.xlu0 %2987
  %2989 = vrot.lane.b32.xlu0 %v2966, 80
  %v2990 = vpop.permute.xlu0 %2989
  %2991 = vrot.lane.b32.xlu0 %v2967, 80
  %v2992 = vpop.permute.xlu0 %2991
  %2993 = vrot.lane.b32.xlu0 %v2968, 80
  %v2994 = vpop.permute.xlu0 %2993
  %2995 = vrot.lane.b32.xlu0 %v2969, 80
  %v2996 = vpop.permute.xlu0 %2995
  %2997 = vrot.lane.b32.xlu0 %v2970, 80
  %v2998 = vpop.permute.xlu0 %2997
  %2999 = vrot.lane.b32.xlu0 %v2971, 80
  %v3000 = vpop.permute.xlu0 %2999
  %3001 = vrot.lane.b32.xlu0 %v2972, 80
  %v3002 = vpop.permute.xlu0 %3001
  %3003 = vrot.lane.b32.xlu0 %v2973, 80
  %v3004 = vpop.permute.xlu0 %3003
  %3005 = vrot.lane.b32.xlu0 %v2974, 80
  %v3006 = vpop.permute.xlu0 %3005
  %vm3007 = vcmask 687104
  %v3010 = vsel %vm3007, %v2750, %v2798
  %v3014 = vsel %vm3007, %v2751, %v2800
  %v3018 = vsel %vm3007, %v2752, %v2802
  %v3022 = vsel %vm3007, %v2753, %v2804
  %v3026 = vsel %vm3007, %v2754, %v2806
  %v3030 = vsel %vm3007, %v2755, %v2808
  %v3034 = vsel %vm3007, %v2756, %v2810
  %v3038 = vsel %vm3007, %v2757, %v2812
  %v3042 = vsel %vm3007, %v2758, %v2814
  %v3046 = vsel %vm3007, %v2759, %v2816
  %v3050 = vsel %vm3007, %v2760, %v2818
  %v3054 = vsel %vm3007, %v2761, %v2820
  %v3058 = vsel %vm3007, %v2762, %v2822
  %v3062 = vsel %vm3007, %v2763, %v2824
  %v3066 = vsel %vm3007, %v2764, %v2826
  %v3070 = vsel %vm3007, %v2765, %v2828
  %v3073 = vsel %vm1968, %v2798, %v2861
  %v3075 = vsel %vm1968, %v2800, %v2863
  %v3077 = vsel %vm1968, %v2802, %v2865
  %v3079 = vsel %vm1968, %v2804, %v2867
  %v3081 = vsel %vm1968, %v2806, %v2869
  %v3083 = vsel %vm1968, %v2808, %v2871
  %v3085 = vsel %vm1968, %v2810, %v2873
  %v3087 = vsel %vm1968, %v2812, %v2875
  %v3089 = vsel %vm1968, %v2814, %v2877
  %v3091 = vsel %vm1968, %v2816, %v2879
  %v3093 = vsel %vm1968, %v2818, %v2881
  %v3095 = vsel %vm1968, %v2820, %v2883
  %v3097 = vsel %vm1968, %v2822, %v2885
  %v3099 = vsel %vm1968, %v2824, %v2887
  %v3101 = vsel %vm1968, %v2826, %v2889
  %v3103 = vsel %vm1968, %v2828, %v2891
  %vm3104 = vcmask 1014784
  %v3106 = vsel %vm3104, %v3073, %v2928
  %v3109 = vsel %vm3104, %v3075, %v2930
  %v3112 = vsel %vm3104, %v3077, %v2932
  %v3115 = vsel %vm3104, %v3079, %v2934
  %v3118 = vsel %vm3104, %v3081, %v2936
  %v3121 = vsel %vm3104, %v3083, %v2938
  %v3124 = vsel %vm3104, %v3085, %v2940
  %v3127 = vsel %vm3104, %v3087, %v2942
  %v3130 = vsel %vm3104, %v3089, %v2944
  %v3133 = vsel %vm3104, %v3091, %v2946
  %v3136 = vsel %vm3104, %v3093, %v2948
  %v3139 = vsel %vm3104, %v3095, %v2950
  %v3142 = vsel %vm3104, %v3097, %v2952
  %v3145 = vsel %vm3104, %v3099, %v2954
  %v3148 = vsel %vm3104, %v3101, %v2956
  %v3151 = vsel %vm3104, %v3103, %v2958
  %vm3153 = vcmask 654336
  %v3155 = vsel %vm3153, %v2928, %v2976
  %v3158 = vsel %vm3153, %v2930, %v2978
  %v3161 = vsel %vm3153, %v2932, %v2980
  %v3164 = vsel %vm3153, %v2934, %v2982
  %v3167 = vsel %vm3153, %v2936, %v2984
  %v3170 = vsel %vm3153, %v2938, %v2986
  %v3173 = vsel %vm3153, %v2940, %v2988
  %v3176 = vsel %vm3153, %v2942, %v2990
  %v3179 = vsel %vm3153, %v2944, %v2992
  %v3182 = vsel %vm3153, %v2946, %v2994
  %v3185 = vsel %vm3153, %v2948, %v2996
  %v3188 = vsel %vm3153, %v2950, %v2998
  %v3191 = vsel %vm3153, %v2952, %v3000
  %v3194 = vsel %vm3153, %v2954, %v3002
  %v3197 = vsel %vm3153, %v2956, %v3004
  %v3200 = vsel %vm3153, %v2958, %v3006
  %v3202 = vld [vmem:[%s5] sm:$0xff]
  %v3203 = vld [vmem:[%s5 + $0x8] sm:$0xff]
  %v3204 = vld [vmem:[%s5 + $0x10] sm:$0xff]
  %v3205 = vld [vmem:[%s5 + $0x18] sm:$0xff]
  %v3206 = vld [vmem:[%s5 + $0x20] sm:$0xff]
  %v3207 = vld [vmem:[%s5 + $0x28] sm:$0xff]
  %v3208 = vld [vmem:[%s5 + $0x30] sm:$0xff]
  %v3209 = vld [vmem:[%s5 + $0x38] sm:$0xff]
  %v3210 = vld [vmem:[%s5 + $0x40] sm:$0xff]
  %v3211 = vld [vmem:[%s5 + $0x48] sm:$0xff]
  %v3212 = vld [vmem:[%s5 + $0x50] sm:$0xff]
  %v3213 = vld [vmem:[%s5 + $0x58] sm:$0xff]
  %v3214 = vld [vmem:[%s5 + $0x60] sm:$0xff]
  %v3215 = vld [vmem:[%s5 + $0x68] sm:$0xff]
  %v3216 = vld [vmem:[%s5 + $0x70] sm:$0xff]
  %v3217 = vld [vmem:[%s5 + $0x78] sm:$0xff]
  %v3218 = vld [vmem:[%s5 + $0x80] sm:$0xff]
  %v3219 = vld [vmem:[%s5 + $0x88] sm:$0xff]
  %v3220 = vld [vmem:[%s5 + $0x90] sm:$0xff]
  %v3221 = vld [vmem:[%s5 + $0x98] sm:$0xff]
  %v3222 = vld [vmem:[%s5 + $0xa0] sm:$0xff]
  %v3223 = vld [vmem:[%s5 + $0xa8] sm:$0xff]
  %v3224 = vld [vmem:[%s5 + $0xb0] sm:$0xff]
  %v3225 = vld [vmem:[%s5 + $0xb8] sm:$0xff]
  %v3226 = vld [vmem:[%s5 + $0xc0] sm:$0xff]
  %v3227 = vld [vmem:[%s5 + $0xc8] sm:$0xff]
  %v3228 = vld [vmem:[%s5 + $0xd0] sm:$0xff]
  %v3229 = vld [vmem:[%s5 + $0xd8] sm:$0xff]
  %v3230 = vld [vmem:[%s5 + $0xe0] sm:$0xff]
  %v3231 = vld [vmem:[%s5 + $0xe8] sm:$0xff]
  %v3232 = vld [vmem:[%s5 + $0xf0] sm:$0xff]
  %v3233 = vld [vmem:[%s5 + $0xf8] sm:$0xff]
  %v3234 = vld [vmem:[%s5 + $0x100] sm:$0xff]
  %v3235 = vld [vmem:[%s5 + $0x108] sm:$0xff]
  %v3236 = vld [vmem:[%s5 + $0x110] sm:$0xff]
  %v3237 = vld [vmem:[%s5 + $0x118] sm:$0xff]
  %v3238 = vld [vmem:[%s5 + $0x120] sm:$0xff]
  %v3239 = vld [vmem:[%s5 + $0x128] sm:$0xff]
  %v3240 = vld [vmem:[%s5 + $0x130] sm:$0xff]
  %v3241 = vld [vmem:[%s5 + $0x138] sm:$0xff]
  %v3242 = vld [vmem:[%s5 + $0x140] sm:$0xff]
  %v3243 = vld [vmem:[%s5 + $0x148] sm:$0xff]
  %v3244 = vld [vmem:[%s5 + $0x150] sm:$0xff]
  %v3245 = vld [vmem:[%s5 + $0x158] sm:$0xff]
  %v3246 = vld [vmem:[%s5 + $0x160] sm:$0xff]
  %v3247 = vld [vmem:[%s5 + $0x168] sm:$0xff]
  %v3248 = vld [vmem:[%s5 + $0x170] sm:$0xff]
  %v3249 = vld [vmem:[%s5 + $0x178] sm:$0xff]
  %v3250 = vld [vmem:[%s5 + $0x180] sm:$0xff]
  %v3251 = vld [vmem:[%s5 + $0x188] sm:$0xff]
  %v3252 = vld [vmem:[%s5 + $0x190] sm:$0xff]
  %v3253 = vld [vmem:[%s5 + $0x198] sm:$0xff]
  %v3254 = vld [vmem:[%s5 + $0x1a0] sm:$0x33]
  %v3255 = vld [vmem:[%s6] sm:$0x3]
  %v3257 = vperm.slane %v3255, 0
  %v3258 = vperm.slane %v3255, 1
  %v3314 = vunpack.c.l.b16 %v3202
  %v3315 = vunpack.c.h.b16 %v3202
  %v3316 = vunpack.c.l.b16 %v3203
  %v3317 = vunpack.c.h.b16 %v3203
  %v3318 = vunpack.c.l.b16 %v3204
  %v3319 = vunpack.c.h.b16 %v3204
  %v3320 = vunpack.c.l.b16 %v3205
  %v3321 = vunpack.c.h.b16 %v3205
  %v3322 = vunpack.c.l.b16 %v3206
  %v3323 = vunpack.c.h.b16 %v3206
  %v3324 = vunpack.c.l.b16 %v3207
  %v3325 = vunpack.c.h.b16 %v3207
  %v3326 = vunpack.c.l.b16 %v3208
  %v3327 = vunpack.c.h.b16 %v3208
  %v3328 = vunpack.c.l.b16 %v3209
  %v3329 = vunpack.c.h.b16 %v3209
  %v3330 = vunpack.c.l.b16 %v3210
  %v3331 = vunpack.c.h.b16 %v3210
  %v3332 = vunpack.c.l.b16 %v3211
  %v3333 = vunpack.c.h.b16 %v3211
  %v3334 = vunpack.c.l.b16 %v3212
  %v3335 = vunpack.c.h.b16 %v3212
  %v3336 = vunpack.c.l.b16 %v3213
  %v3337 = vunpack.c.h.b16 %v3213
  %v3338 = vunpack.c.l.b16 %v3214
  %v3339 = vunpack.c.h.b16 %v3214
  %v3340 = vunpack.c.l.b16 %v3215
  %v3341 = vunpack.c.h.b16 %v3215
  %v3342 = vunpack.c.l.b16 %v3216
  %v3343 = vunpack.c.h.b16 %v3216
  %v3344 = vunpack.c.l.b16 %v3217
  %v3345 = vunpack.c.h.b16 %v3217
  %v3346 = vunpack.c.l.b16 %v3218
  %v3347 = vunpack.c.h.b16 %v3218
  %v3348 = vunpack.c.l.b16 %v3219
  %v3349 = vunpack.c.h.b16 %v3219
  %v3350 = vunpack.c.l.b16 %v3220
  %v3351 = vunpack.c.h.b16 %v3220
  %v3352 = vunpack.c.l.b16 %v3221
  %v3353 = vunpack.c.h.b16 %v3221
  %v3354 = vunpack.c.l.b16 %v3222
  %v3355 = vunpack.c.h.b16 %v3222
  %v3356 = vunpack.c.l.b16 %v3223
  %v3357 = vunpack.c.h.b16 %v3223
  %v3358 = vunpack.c.l.b16 %v3224
  %v3359 = vunpack.c.h.b16 %v3224
  %v3360 = vunpack.c.l.b16 %v3225
  %v3361 = vunpack.c.h.b16 %v3225
  %v3362 = vunpack.c.l.b16 %v3226
  %v3363 = vunpack.c.h.b16 %v3226
  %v3364 = vunpack.c.l.b16 %v3227
  %v3365 = vunpack.c.h.b16 %v3227
  %v3366 = vunpack.c.l.b16 %v3228
  %v3367 = vunpack.c.h.b16 %v3228
  %v3368 = vunpack.c.l.b16 %v3229
  %v3369 = vunpack.c.h.b16 %v3229
  %v3370 = vunpack.c.l.b16 %v3230
  %v3371 = vunpack.c.h.b16 %v3230
  %v3372 = vunpack.c.l.b16 %v3231
  %v3373 = vunpack.c.h.b16 %v3231
  %v3374 = vunpack.c.l.b16 %v3232
  %v3375 = vunpack.c.h.b16 %v3232
  %v3376 = vunpack.c.l.b16 %v3233
  %v3377 = vunpack.c.h.b16 %v3233
  %v3378 = vunpack.c.l.b16 %v3234
  %v3379 = vunpack.c.h.b16 %v3234
  %v3380 = vunpack.c.l.b16 %v3235
  %v3381 = vunpack.c.h.b16 %v3235
  %v3382 = vunpack.c.l.b16 %v3236
  %v3383 = vunpack.c.h.b16 %v3236
  %v3384 = vunpack.c.l.b16 %v3237
  %v3385 = vunpack.c.h.b16 %v3237
  %v3386 = vunpack.c.l.b16 %v3238
  %v3387 = vunpack.c.h.b16 %v3238
  %v3388 = vunpack.c.l.b16 %v3239
  %v3389 = vunpack.c.h.b16 %v3239
  %v3390 = vunpack.c.l.b16 %v3240
  %v3391 = vunpack.c.h.b16 %v3240
  %v3392 = vunpack.c.l.b16 %v3241
  %v3393 = vunpack.c.h.b16 %v3241
  %v3394 = vunpack.c.l.b16 %v3242
  %v3395 = vunpack.c.h.b16 %v3242
  %v3396 = vunpack.c.l.b16 %v3243
  %v3397 = vunpack.c.h.b16 %v3243
  %v3398 = vunpack.c.l.b16 %v3244
  %v3399 = vunpack.c.h.b16 %v3244
  %v3400 = vunpack.c.l.b16 %v3245
  %v3401 = vunpack.c.h.b16 %v3245
  %v3402 = vunpack.c.l.b16 %v3246
  %v3403 = vunpack.c.h.b16 %v3246
  %v3404 = vunpack.c.l.b16 %v3247
  %v3405 = vunpack.c.h.b16 %v3247
  %v3406 = vunpack.c.l.b16 %v3248
  %v3407 = vunpack.c.h.b16 %v3248
  %v3408 = vunpack.c.l.b16 %v3249
  %v3409 = vunpack.c.h.b16 %v3249
  %v3410 = vunpack.c.l.b16 %v3250
  %v3411 = vunpack.c.h.b16 %v3250
  %v3412 = vunpack.c.l.b16 %v3251
  %v3413 = vunpack.c.h.b16 %v3251
  %v3414 = vunpack.c.l.b16 %v3252
  %v3415 = vunpack.c.h.b16 %v3252
  %v3416 = vunpack.c.l.b16 %v3253
  %v3417 = vunpack.c.h.b16 %v3253
  %v3418 = vunpack.c.l.b16 %v3254
  %v3419 = vunpack.c.h.b16 %v3254
  %v3420 = vpack.c.b16 %v3316, %v3314
  %v3421 = vpack.c.b16 %v3317, %v3315
  %v3422 = vpack.c.b16 %v3320, %v3318
  %v3423 = vpack.c.b16 %v3321, %v3319
  %v3424 = vpack.c.b16 %v3324, %v3322
  %v3425 = vpack.c.b16 %v3325, %v3323
  %v3426 = vpack.c.b16 %v3328, %v3326
  %v3427 = vpack.c.b16 %v3329, %v3327
  %v3428 = vpack.c.b16 %v3332, %v3330
  %v3429 = vpack.c.b16 %v3333, %v3331
  %v3430 = vpack.c.b16 %v3336, %v3334
  %v3431 = vpack.c.b16 %v3337, %v3335
  %v3432 = vpack.c.b16 %v3340, %v3338
  %v3433 = vpack.c.b16 %v3341, %v3339
  %v3434 = vpack.c.b16 %v3344, %v3342
  %v3435 = vpack.c.b16 %v3345, %v3343
  %v3436 = vpack.c.b16 %v3348, %v3346
  %v3437 = vpack.c.b16 %v3349, %v3347
  %v3438 = vpack.c.b16 %v3352, %v3350
  %v3439 = vpack.c.b16 %v3353, %v3351
  %v3440 = vpack.c.b16 %v3356, %v3354
  %v3441 = vpack.c.b16 %v3357, %v3355
  %v3442 = vpack.c.b16 %v3360, %v3358
  %v3443 = vpack.c.b16 %v3361, %v3359
  %v3444 = vpack.c.b16 %v3364, %v3362
  %v3445 = vpack.c.b16 %v3365, %v3363
  %v3446 = vpack.c.b16 %v3368, %v3366
  %v3447 = vpack.c.b16 %v3369, %v3367
  %v3448 = vpack.c.b16 %v3372, %v3370
  %v3449 = vpack.c.b16 %v3373, %v3371
  %v3450 = vpack.c.b16 %v3376, %v3374
  %v3451 = vpack.c.b16 %v3377, %v3375
  %v3452 = vpack.c.b16 %v3380, %v3378
  %v3453 = vpack.c.b16 %v3381, %v3379
  %v3454 = vpack.c.b16 %v3384, %v3382
  %v3455 = vpack.c.b16 %v3385, %v3383
  %v3456 = vpack.c.b16 %v3388, %v3386
  %v3457 = vpack.c.b16 %v3389, %v3387
  %v3458 = vpack.c.b16 %v3392, %v3390
  %v3459 = vpack.c.b16 %v3393, %v3391
  %v3460 = vpack.c.b16 %v3396, %v3394
  %v3461 = vpack.c.b16 %v3397, %v3395
  %v3462 = vpack.c.b16 %v3400, %v3398
  %v3463 = vpack.c.b16 %v3401, %v3399
  %v3464 = vpack.c.b16 %v3404, %v3402
  %v3465 = vpack.c.b16 %v3405, %v3403
  %v3466 = vpack.c.b16 %v3408, %v3406
  %v3467 = vpack.c.b16 %v3409, %v3407
  %v3468 = vpack.c.b16 %v3412, %v3410
  %v3469 = vpack.c.b16 %v3413, %v3411
  %v3470 = vpack.c.b16 %v3416, %v3414
  %v3471 = vpack.c.b16 %v3417, %v3415
  %v3472 = vpack.c.b16 %v3418, %v3418
  %v3473 = vpack.c.b16 %v3419, %v3419
  %vm3526 = vcmask 293888
  %v3527 = vsel %vm3526, %v2976, 0
  %v3529 = vsel %vm3526, %v2978, 0
  %v3531 = vsel %vm3526, %v2980, 0
  %v3533 = vsel %vm3526, %v2982, 0
  %v3535 = vsel %vm3526, %v2984, 0
  %v3537 = vsel %vm3526, %v2986, 0
  %v3539 = vsel %vm3526, %v2988, 0
  %v3541 = vsel %vm3526, %v2990, 0
  %v3543 = vsel %vm3526, %v2992, 0
  %v3545 = vsel %vm3526, %v2994, 0
  %v3547 = vsel %vm3526, %v2996, 0
  %v3549 = vsel %vm3526, %v2998, 0
  %v3551 = vsel %vm3526, %v3000, 0
  %v3553 = vsel %vm3526, %v3002, 0
  %v3555 = vsel %vm3526, %v3004, 0
  %v3557 = vsel %vm3526, %v3006, 0
  %vm3559 = vcmask 1041408
  %v3561 = vsel %vm3559, %v3472, 0
  %v3564 = vsel %vm3559, %v3473, 0
  %3566 = vmatpush.bf16.msra.mxu0 %v3434
  %3567 = vmatpush.bf16.msra.mxu0 %v3432
  %3568 = vmatpush.bf16.msra.mxu0 %v3430
  %3569 = vmatpush.bf16.msra.mxu0 %v3428
  %3570 = vmatpush.bf16.msra.mxu0 %v3426
  %3571 = vmatpush.bf16.msra.mxu0 %v3424
  %3572 = vmatpush.bf16.msra.mxu0 %v3422
  %3573 = vmatpush.bf16.msra.mxu0 %v3420
  %3574 = vmatmul.bf16.gmra.mxu0 %v3010
  %v3575 = vpop.f32.mrf.mxu0
  %v3576 = vadd.f32 %v3257, %v3575
  %v3577 = vpop.f32.mrf.mxu0
  %v3578 = vadd.f32 %v3257, %v3577
  %3579 = vmatmul.bf16.gmra.mxu0 %v3014
  %v3580 = vpop.f32.mrf.mxu0
  %v3581 = vadd.f32 %v3257, %v3580
  %v3582 = vpop.f32.mrf.mxu0
  %v3583 = vadd.f32 %v3257, %v3582
  %3584 = vmatmul.bf16.gmra.mxu0 %v3018
  %v3585 = vpop.f32.mrf.mxu0
  %v3586 = vadd.f32 %v3257, %v3585
  %v3587 = vpop.f32.mrf.mxu0
  %v3588 = vadd.f32 %v3257, %v3587
  %3589 = vmatmul.bf16.gmra.mxu0 %v3022
  %v3590 = vpop.f32.mrf.mxu0
  %v3591 = vadd.f32 %v3257, %v3590
  %v3592 = vpop.f32.mrf.mxu0
  %v3593 = vadd.f32 %v3257, %v3592
  %3594 = vmatmul.bf16.gmra.mxu0 %v3026
  %v3595 = vpop.f32.mrf.mxu0
  %v3596 = vadd.f32 %v3257, %v3595
  %v3597 = vpop.f32.mrf.mxu0
  %v3598 = vadd.f32 %v3257, %v3597
  %3599 = vmatmul.bf16.gmra.mxu0 %v3030
  %v3600 = vpop.f32.mrf.mxu0
  %v3601 = vadd.f32 %v3257, %v3600
  %v3602 = vpop.f32.mrf.mxu0
  %v3603 = vadd.f32 %v3257, %v3602
  %3604 = vmatmul.bf16.gmra.mxu0 %v3034
  %v3605 = vpop.f32.mrf.mxu0
  %v3606 = vadd.f32 %v3257, %v3605
  %v3607 = vpop.f32.mrf.mxu0
  %v3608 = vadd.f32 %v3257, %v3607
  %3609 = vmatmul.bf16.gmra.mxu0 %v3038
  %v3610 = vpop.f32.mrf.mxu0
  %v3611 = vadd.f32 %v3257, %v3610
  %v3612 = vpop.f32.mrf.mxu0
  %v3613 = vadd.f32 %v3257, %v3612
  %3614 = vmatmul.bf16.gmra.mxu0 %v3042
  %v3615 = vpop.f32.mrf.mxu0
  %v3616 = vadd.f32 %v3257, %v3615
  %v3617 = vpop.f32.mrf.mxu0
  %v3618 = vadd.f32 %v3257, %v3617
  %3619 = vmatmul.bf16.gmra.mxu0 %v3046
  %v3620 = vpop.f32.mrf.mxu0
  %v3621 = vadd.f32 %v3257, %v3620
  %v3622 = vpop.f32.mrf.mxu0
  %v3623 = vadd.f32 %v3257, %v3622
  %3624 = vmatmul.bf16.gmra.mxu0 %v3050
  %v3625 = vpop.f32.mrf.mxu0
  %v3626 = vadd.f32 %v3257, %v3625
  %v3627 = vpop.f32.mrf.mxu0
  %v3628 = vadd.f32 %v3257, %v3627
  %3629 = vmatmul.bf16.gmra.mxu0 %v3054
  %v3630 = vpop.f32.mrf.mxu0
  %v3631 = vadd.f32 %v3257, %v3630
  %v3632 = vpop.f32.mrf.mxu0
  %v3633 = vadd.f32 %v3257, %v3632
  %3634 = vmatmul.bf16.gmra.mxu0 %v3058
  %v3635 = vpop.f32.mrf.mxu0
  %v3636 = vadd.f32 %v3257, %v3635
  %v3637 = vpop.f32.mrf.mxu0
  %v3638 = vadd.f32 %v3257, %v3637
  %3639 = vmatmul.bf16.gmra.mxu0 %v3062
  %v3640 = vpop.f32.mrf.mxu0
  %v3641 = vadd.f32 %v3257, %v3640
  %v3642 = vpop.f32.mrf.mxu0
  %v3643 = vadd.f32 %v3257, %v3642
  %3644 = vmatmul.bf16.gmra.mxu0 %v3066
  %v3645 = vpop.f32.mrf.mxu0
  %v3646 = vadd.f32 %v3257, %v3645
  %v3647 = vpop.f32.mrf.mxu0
  %v3648 = vadd.f32 %v3257, %v3647
  %3649 = vmatmul.bf16.gmra.mxu0 %v3070
  %v3650 = vpop.f32.mrf.mxu0
  %v3651 = vadd.f32 %v3257, %v3650
  %v3652 = vpop.f32.mrf.mxu0
  %3653 = vdwg.mxu0
  %3654 = vmatpush.bf16.msra.mxu0 %v3450
  %3655 = vmatpush.bf16.msra.mxu0 %v3448
  %3656 = vmatpush.bf16.msra.mxu0 %v3446
  %3657 = vmatpush.bf16.msra.mxu0 %v3444
  %3658 = vmatpush.bf16.msra.mxu0 %v3442
  %3659 = vmatpush.bf16.msra.mxu0 %v3440
  %3660 = vmatpush.bf16.msra.mxu0 %v3438
  %3661 = vmatpush.bf16.msra.mxu0 %v3436
  %3662 = vmatmul.bf16.gmra.mxu0 %v3106
  %v3663 = vpop.f32.mrf.mxu0
  %v3664 = vadd.f32 %v3576, %v3663
  %v3665 = vpop.f32.mrf.mxu0
  %v3666 = vadd.f32 %v3578, %v3665
  %3667 = vmatmul.bf16.gmra.mxu0 %v3109
  %v3668 = vpop.f32.mrf.mxu0
  %v3669 = vadd.f32 %v3581, %v3668
  %v3670 = vpop.f32.mrf.mxu0
  %v3671 = vadd.f32 %v3583, %v3670
  %3672 = vmatmul.bf16.gmra.mxu0 %v3112
  %v3673 = vpop.f32.mrf.mxu0
  %v3674 = vadd.f32 %v3586, %v3673
  %v3675 = vpop.f32.mrf.mxu0
  %v3676 = vadd.f32 %v3588, %v3675
  %3677 = vmatmul.bf16.gmra.mxu0 %v3115
  %v3678 = vpop.f32.mrf.mxu0
  %v3679 = vadd.f32 %v3591, %v3678
  %v3680 = vpop.f32.mrf.mxu0
  %v3681 = vadd.f32 %v3593, %v3680
  %3682 = vmatmul.bf16.gmra.mxu0 %v3118
  %v3683 = vpop.f32.mrf.mxu0
  %v3684 = vadd.f32 %v3596, %v3683
  %v3685 = vpop.f32.mrf.mxu0
  %v3686 = vadd.f32 %v3598, %v3685
  %3687 = vmatmul.bf16.gmra.mxu0 %v3121
  %v3688 = vpop.f32.mrf.mxu0
  %v3689 = vadd.f32 %v3601, %v3688
  %v3690 = vpop.f32.mrf.mxu0
  %v3691 = vadd.f32 %v3603, %v3690
  %3692 = vmatmul.bf16.gmra.mxu0 %v3124
  %v3693 = vpop.f32.mrf.mxu0
  %v3694 = vadd.f32 %v3606, %v3693
  %v3695 = vpop.f32.mrf.mxu0
  %v3696 = vadd.f32 %v3608, %v3695
  %3697 = vmatmul.bf16.gmra.mxu0 %v3127
  %v3698 = vpop.f32.mrf.mxu0
  %v3699 = vadd.f32 %v3611, %v3698
  %v3700 = vpop.f32.mrf.mxu0
  %v3701 = vadd.f32 %v3613, %v3700
  %3702 = vmatmul.bf16.gmra.mxu0 %v3130
  %v3703 = vpop.f32.mrf.mxu0
  %v3704 = vadd.f32 %v3616, %v3703
  %v3705 = vpop.f32.mrf.mxu0
  %v3706 = vadd.f32 %v3618, %v3705
  %3707 = vmatmul.bf16.gmra.mxu0 %v3133
  %v3708 = vpop.f32.mrf.mxu0
  %v3709 = vadd.f32 %v3621, %v3708
  %v3710 = vpop.f32.mrf.mxu0
  %v3711 = vadd.f32 %v3623, %v3710
  %3712 = vmatmul.bf16.gmra.mxu0 %v3136
  %v3713 = vpop.f32.mrf.mxu0
  %v3714 = vadd.f32 %v3626, %v3713
  %v3715 = vpop.f32.mrf.mxu0
  %v3716 = vadd.f32 %v3628, %v3715
  %3717 = vmatmul.bf16.gmra.mxu0 %v3139
  %v3718 = vpop.f32.mrf.mxu0
  %v3719 = vadd.f32 %v3631, %v3718
  %v3720 = vpop.f32.mrf.mxu0
  %v3721 = vadd.f32 %v3633, %v3720
  %3722 = vmatmul.bf16.gmra.mxu0 %v3142
  %v3723 = vpop.f32.mrf.mxu0
  %v3724 = vadd.f32 %v3636, %v3723
  %v3725 = vpop.f32.mrf.mxu0
  %v3726 = vadd.f32 %v3638, %v3725
  %3727 = vmatmul.bf16.gmra.mxu0 %v3145
  %v3728 = vpop.f32.mrf.mxu0
  %v3729 = vadd.f32 %v3641, %v3728
  %v3730 = vpop.f32.mrf.mxu0
  %v3731 = vadd.f32 %v3643, %v3730
  %3732 = vmatmul.bf16.gmra.mxu0 %v3148
  %v3733 = vpop.f32.mrf.mxu0
  %v3734 = vadd.f32 %v3646, %v3733
  %v3735 = vpop.f32.mrf.mxu0
  %v3736 = vadd.f32 %v3648, %v3735
  %3737 = vmatmul.bf16.gmra.mxu0 %v3151
  %v3738 = vpop.f32.mrf.mxu0
  %v3739 = vadd.f32 %v3651, %v3738
  %v3740 = vpop.f32.mrf.mxu0
  %3741 = vdwg.mxu0
  %3742 = vmatpush.bf16.msra.mxu0 %v3466
  %3743 = vmatpush.bf16.msra.mxu0 %v3464
  %3744 = vmatpush.bf16.msra.mxu0 %v3462
  %3745 = vmatpush.bf16.msra.mxu0 %v3460
  %3746 = vmatpush.bf16.msra.mxu0 %v3458
  %3747 = vmatpush.bf16.msra.mxu0 %v3456
  %3748 = vmatpush.bf16.msra.mxu0 %v3454
  %3749 = vmatpush.bf16.msra.mxu0 %v3452
  %3750 = vmatmul.bf16.gmra.mxu0 %v3155
  %v3751 = vpop.f32.mrf.mxu0
  %v3752 = vadd.f32 %v3664, %v3751
  %v3753 = vpop.f32.mrf.mxu0
  %v3754 = vadd.f32 %v3666, %v3753
  %3755 = vmatmul.bf16.gmra.mxu0 %v3158
  %v3756 = vpop.f32.mrf.mxu0
  %v3757 = vadd.f32 %v3669, %v3756
  %v3758 = vpop.f32.mrf.mxu0
  %v3759 = vadd.f32 %v3671, %v3758
  %3760 = vmatmul.bf16.gmra.mxu0 %v3161
  %v3761 = vpop.f32.mrf.mxu0
  %v3762 = vadd.f32 %v3674, %v3761
  %v3763 = vpop.f32.mrf.mxu0
  %v3764 = vadd.f32 %v3676, %v3763
  %3765 = vmatmul.bf16.gmra.mxu0 %v3164
  %v3766 = vpop.f32.mrf.mxu0
  %v3767 = vadd.f32 %v3679, %v3766
  %v3768 = vpop.f32.mrf.mxu0
  %v3769 = vadd.f32 %v3681, %v3768
  %3770 = vmatmul.bf16.gmra.mxu0 %v3167
  %v3771 = vpop.f32.mrf.mxu0
  %v3772 = vadd.f32 %v3684, %v3771
  %v3773 = vpop.f32.mrf.mxu0
  %v3774 = vadd.f32 %v3686, %v3773
  %3775 = vmatmul.bf16.gmra.mxu0 %v3170
  %v3776 = vpop.f32.mrf.mxu0
  %v3777 = vadd.f32 %v3689, %v3776
  %v3778 = vpop.f32.mrf.mxu0
  %v3779 = vadd.f32 %v3691, %v3778
  %3780 = vmatmul.bf16.gmra.mxu0 %v3173
  %v3781 = vpop.f32.mrf.mxu0
  %v3782 = vadd.f32 %v3694, %v3781
  %v3783 = vpop.f32.mrf.mxu0
  %v3784 = vadd.f32 %v3696, %v3783
  %3785 = vmatmul.bf16.gmra.mxu0 %v3176
  %v3786 = vpop.f32.mrf.mxu0
  %v3787 = vadd.f32 %v3699, %v3786
  %v3788 = vpop.f32.mrf.mxu0
  %v3789 = vadd.f32 %v3701, %v3788
  %3790 = vmatmul.bf16.gmra.mxu0 %v3179
  %v3791 = vpop.f32.mrf.mxu0
  %v3792 = vadd.f32 %v3704, %v3791
  %v3793 = vpop.f32.mrf.mxu0
  %v3794 = vadd.f32 %v3706, %v3793
  %3795 = vmatmul.bf16.gmra.mxu0 %v3182
  %v3796 = vpop.f32.mrf.mxu0
  %v3797 = vadd.f32 %v3709, %v3796
  %v3798 = vpop.f32.mrf.mxu0
  %v3799 = vadd.f32 %v3711, %v3798
  %3800 = vmatmul.bf16.gmra.mxu0 %v3185
  %v3801 = vpop.f32.mrf.mxu0
  %v3802 = vadd.f32 %v3714, %v3801
  %v3803 = vpop.f32.mrf.mxu0
  %v3804 = vadd.f32 %v3716, %v3803
  %3805 = vmatmul.bf16.gmra.mxu0 %v3188
  %v3806 = vpop.f32.mrf.mxu0
  %v3807 = vadd.f32 %v3719, %v3806
  %v3808 = vpop.f32.mrf.mxu0
  %v3809 = vadd.f32 %v3721, %v3808
  %3810 = vmatmul.bf16.gmra.mxu0 %v3191
  %v3811 = vpop.f32.mrf.mxu0
  %v3812 = vadd.f32 %v3724, %v3811
  %v3813 = vpop.f32.mrf.mxu0
  %v3814 = vadd.f32 %v3726, %v3813
  %3815 = vmatmul.bf16.gmra.mxu0 %v3194
  %v3816 = vpop.f32.mrf.mxu0
  %v3817 = vadd.f32 %v3729, %v3816
  %v3818 = vpop.f32.mrf.mxu0
  %v3819 = vadd.f32 %v3731, %v3818
  %3820 = vmatmul.bf16.gmra.mxu0 %v3197
  %v3821 = vpop.f32.mrf.mxu0
  %v3822 = vadd.f32 %v3734, %v3821
  %v3823 = vpop.f32.mrf.mxu0
  %v3824 = vadd.f32 %v3736, %v3823
  %3825 = vmatmul.bf16.gmra.mxu0 %v3200
  %v3826 = vpop.f32.mrf.mxu0
  %v3827 = vadd.f32 %v3739, %v3826
  %v3828 = vpop.f32.mrf.mxu0
  %3829 = vdwg.mxu0
  %3830 = vmatpush.bf16.msra.mxu0 0
  %3831 = vmatpush.bf16.msra.mxu0 0
  %3832 = vmatpush.bf16.msra.mxu0 0
  %3833 = vmatpush.bf16.msra.mxu0 0
  %3834 = vmatpush.bf16.msra.mxu0 0
  %3835 = vmatpush.bf16.msra.mxu0 %v3561
  %3836 = vmatpush.bf16.msra.mxu0 %v3470
  %3837 = vmatpush.bf16.msra.mxu0 %v3468
  %3838 = vmatmul.bf16.gmra.mxu0 %v3527
  %v3839 = vpop.f32.mrf.mxu0
  %v3840 = vadd.f32 %v3752, %v3839
  %v3841 = vpop.f32.mrf.mxu0
  %v3842 = vadd.f32 %v3754, %v3841
  %3843 = vmatmul.bf16.gmra.mxu0 %v3529
  %v3844 = vpop.f32.mrf.mxu0
  %v3845 = vadd.f32 %v3757, %v3844
  %v3846 = vpop.f32.mrf.mxu0
  %v3847 = vadd.f32 %v3759, %v3846
  %3848 = vmatmul.bf16.gmra.mxu0 %v3531
  %v3849 = vpop.f32.mrf.mxu0
  %v3850 = vadd.f32 %v3762, %v3849
  %v3851 = vpop.f32.mrf.mxu0
  %v3852 = vadd.f32 %v3764, %v3851
  %3853 = vmatmul.bf16.gmra.mxu0 %v3533
  %v3854 = vpop.f32.mrf.mxu0
  %v3855 = vadd.f32 %v3767, %v3854
  %v3856 = vpop.f32.mrf.mxu0
  %v3857 = vadd.f32 %v3769, %v3856
  %3858 = vmatmul.bf16.gmra.mxu0 %v3535
  %v3859 = vpop.f32.mrf.mxu0
  %v3860 = vadd.f32 %v3772, %v3859
  %v3861 = vpop.f32.mrf.mxu0
  %v3862 = vadd.f32 %v3774, %v3861
  %3863 = vmatmul.bf16.gmra.mxu0 %v3537
  %v3864 = vpop.f32.mrf.mxu0
  %v3865 = vadd.f32 %v3777, %v3864
  %v3866 = vpop.f32.mrf.mxu0
  %v3867 = vadd.f32 %v3779, %v3866
  %3868 = vmatmul.bf16.gmra.mxu0 %v3539
  %v3869 = vpop.f32.mrf.mxu0
  %v3870 = vadd.f32 %v3782, %v3869
  %v3871 = vpop.f32.mrf.mxu0
  %v3872 = vadd.f32 %v3784, %v3871
  %3873 = vmatmul.bf16.gmra.mxu0 %v3541
  %v3874 = vpop.f32.mrf.mxu0
  %v3875 = vadd.f32 %v3787, %v3874
  %v3876 = vpop.f32.mrf.mxu0
  %v3877 = vadd.f32 %v3789, %v3876
  %3878 = vmatmul.bf16.gmra.mxu0 %v3543
  %v3879 = vpop.f32.mrf.mxu0
  %v3880 = vadd.f32 %v3792, %v3879
  %v3881 = vpop.f32.mrf.mxu0
  %v3882 = vadd.f32 %v3794, %v3881
  %3883 = vmatmul.bf16.gmra.mxu0 %v3545
  %v3884 = vpop.f32.mrf.mxu0
  %v3885 = vadd.f32 %v3797, %v3884
  %v3886 = vpop.f32.mrf.mxu0
  %v3887 = vadd.f32 %v3799, %v3886
  %3888 = vmatmul.bf16.gmra.mxu0 %v3547
  %v3889 = vpop.f32.mrf.mxu0
  %v3890 = vadd.f32 %v3802, %v3889
  %v3891 = vpop.f32.mrf.mxu0
  %v3892 = vadd.f32 %v3804, %v3891
  %3893 = vmatmul.bf16.gmra.mxu0 %v3549
  %v3894 = vpop.f32.mrf.mxu0
  %v3895 = vadd.f32 %v3807, %v3894
  %v3896 = vpop.f32.mrf.mxu0
  %v3897 = vadd.f32 %v3809, %v3896
  %3898 = vmatmul.bf16.gmra.mxu0 %v3551
  %v3899 = vpop.f32.mrf.mxu0
  %v3900 = vadd.f32 %v3812, %v3899
  %v3901 = vpop.f32.mrf.mxu0
  %v3902 = vadd.f32 %v3814, %v3901
  %3903 = vmatmul.bf16.gmra.mxu0 %v3553
  %v3904 = vpop.f32.mrf.mxu0
  %v3905 = vadd.f32 %v3817, %v3904
  %v3906 = vpop.f32.mrf.mxu0
  %v3907 = vadd.f32 %v3819, %v3906
  %3908 = vmatmul.bf16.gmra.mxu0 %v3555
  %v3909 = vpop.f32.mrf.mxu0
  %v3910 = vadd.f32 %v3822, %v3909
  %v3911 = vpop.f32.mrf.mxu0
  %v3912 = vadd.f32 %v3824, %v3911
  %3913 = vmatmul.bf16.gmra.mxu0 %v3557
  %v3914 = vpop.f32.mrf.mxu0
  %v3915 = vadd.f32 %v3827, %v3914
  %v3916 = vpop.f32.mrf.mxu0
  %3917 = vdwg.mxu0
  %3918 = vmatpush.bf16.msra.mxu0 %v3435
  %3919 = vmatpush.bf16.msra.mxu0 %v3433
  %3920 = vmatpush.bf16.msra.mxu0 %v3431
  %3921 = vmatpush.bf16.msra.mxu0 %v3429
  %3922 = vmatpush.bf16.msra.mxu0 %v3427
  %3923 = vmatpush.bf16.msra.mxu0 %v3425
  %3924 = vmatpush.bf16.msra.mxu0 %v3423
  %3925 = vmatpush.bf16.msra.mxu0 %v3421
  %3926 = vmatmul.bf16.gmra.mxu0 %v3010
  %v3927 = vpop.f32.mrf.mxu0
  %v3928 = vadd.f32 %v3258, %v3927
  %v3929 = vpop.f32.mrf.mxu0
  %v3930 = vadd.f32 %v3258, %v3929
  %3931 = vmatmul.bf16.gmra.mxu0 %v3014
  %v3932 = vpop.f32.mrf.mxu0
  %v3933 = vadd.f32 %v3258, %v3932
  %v3934 = vpop.f32.mrf.mxu0
  %v3935 = vadd.f32 %v3258, %v3934
  %3936 = vmatmul.bf16.gmra.mxu0 %v3018
  %v3937 = vpop.f32.mrf.mxu0
  %v3938 = vadd.f32 %v3258, %v3937
  %v3939 = vpop.f32.mrf.mxu0
  %v3940 = vadd.f32 %v3258, %v3939
  %3941 = vmatmul.bf16.gmra.mxu0 %v3022
  %v3942 = vpop.f32.mrf.mxu0
  %v3943 = vadd.f32 %v3258, %v3942
  %v3944 = vpop.f32.mrf.mxu0
  %v3945 = vadd.f32 %v3258, %v3944
  %3946 = vmatmul.bf16.gmra.mxu0 %v3026
  %v3947 = vpop.f32.mrf.mxu0
  %v3948 = vadd.f32 %v3258, %v3947
  %v3949 = vpop.f32.mrf.mxu0
  %v3950 = vadd.f32 %v3258, %v3949
  %3951 = vmatmul.bf16.gmra.mxu0 %v3030
  %v3952 = vpop.f32.mrf.mxu0
  %v3953 = vadd.f32 %v3258, %v3952
  %v3954 = vpop.f32.mrf.mxu0
  %v3955 = vadd.f32 %v3258, %v3954
  %3956 = vmatmul.bf16.gmra.mxu0 %v3034
  %v3957 = vpop.f32.mrf.mxu0
  %v3958 = vadd.f32 %v3258, %v3957
  %v3959 = vpop.f32.mrf.mxu0
  %v3960 = vadd.f32 %v3258, %v3959
  %3961 = vmatmul.bf16.gmra.mxu0 %v3038
  %v3962 = vpop.f32.mrf.mxu0
  %v3963 = vadd.f32 %v3258, %v3962
  %v3964 = vpop.f32.mrf.mxu0
  %v3965 = vadd.f32 %v3258, %v3964
  %3966 = vmatmul.bf16.gmra.mxu0 %v3042
  %v3967 = vpop.f32.mrf.mxu0
  %v3968 = vadd.f32 %v3258, %v3967
  %v3969 = vpop.f32.mrf.mxu0
  %v3970 = vadd.f32 %v3258, %v3969
  %3971 = vmatmul.bf16.gmra.mxu0 %v3046
  %v3972 = vpop.f32.mrf.mxu0
  %v3973 = vadd.f32 %v3258, %v3972
  %v3974 = vpop.f32.mrf.mxu0
  %v3975 = vadd.f32 %v3258, %v3974
  %3976 = vmatmul.bf16.gmra.mxu0 %v3050
  %v3977 = vpop.f32.mrf.mxu0
  %v3978 = vadd.f32 %v3258, %v3977
  %v3979 = vpop.f32.mrf.mxu0
  %v3980 = vadd.f32 %v3258, %v3979
  %3981 = vmatmul.bf16.gmra.mxu0 %v3054
  %v3982 = vpop.f32.mrf.mxu0
  %v3983 = vadd.f32 %v3258, %v3982
  %v3984 = vpop.f32.mrf.mxu0
  %v3985 = vadd.f32 %v3258, %v3984
  %3986 = vmatmul.bf16.gmra.mxu0 %v3058
  %v3987 = vpop.f32.mrf.mxu0
  %v3988 = vadd.f32 %v3258, %v3987
  %v3989 = vpop.f32.mrf.mxu0
  %v3990 = vadd.f32 %v3258, %v3989
  %3991 = vmatmul.bf16.gmra.mxu0 %v3062
  %v3992 = vpop.f32.mrf.mxu0
  %v3993 = vadd.f32 %v3258, %v3992
  %v3994 = vpop.f32.mrf.mxu0
  %v3995 = vadd.f32 %v3258, %v3994
  %3996 = vmatmul.bf16.gmra.mxu0 %v3066
  %v3997 = vpop.f32.mrf.mxu0
  %v3998 = vadd.f32 %v3258, %v3997
  %v3999 = vpop.f32.mrf.mxu0
  %v4000 = vadd.f32 %v3258, %v3999
  %4001 = vmatmul.bf16.gmra.mxu0 %v3070
  %v4002 = vpop.f32.mrf.mxu0
  %v4003 = vadd.f32 %v3258, %v4002
  %v4004 = vpop.f32.mrf.mxu0
  %4005 = vdwg.mxu0
  %4006 = vmatpush.bf16.msra.mxu0 %v3451
  %4007 = vmatpush.bf16.msra.mxu0 %v3449
  %4008 = vmatpush.bf16.msra.mxu0 %v3447
  %4009 = vmatpush.bf16.msra.mxu0 %v3445
  %4010 = vmatpush.bf16.msra.mxu0 %v3443
  %4011 = vmatpush.bf16.msra.mxu0 %v3441
  %4012 = vmatpush.bf16.msra.mxu0 %v3439
  %4013 = vmatpush.bf16.msra.mxu0 %v3437
  %4014 = vmatmul.bf16.gmra.mxu0 %v3106
  %v4015 = vpop.f32.mrf.mxu0
  %v4016 = vadd.f32 %v3928, %v4015
  %v4017 = vpop.f32.mrf.mxu0
  %v4018 = vadd.f32 %v3930, %v4017
  %4019 = vmatmul.bf16.gmra.mxu0 %v3109
  %v4020 = vpop.f32.mrf.mxu0
  %v4021 = vadd.f32 %v3933, %v4020
  %v4022 = vpop.f32.mrf.mxu0
  %v4023 = vadd.f32 %v3935, %v4022
  %4024 = vmatmul.bf16.gmra.mxu0 %v3112
  %v4025 = vpop.f32.mrf.mxu0
  %v4026 = vadd.f32 %v3938, %v4025
  %v4027 = vpop.f32.mrf.mxu0
  %v4028 = vadd.f32 %v3940, %v4027
  %4029 = vmatmul.bf16.gmra.mxu0 %v3115
  %v4030 = vpop.f32.mrf.mxu0
  %v4031 = vadd.f32 %v3943, %v4030
  %v4032 = vpop.f32.mrf.mxu0
  %v4033 = vadd.f32 %v3945, %v4032
  %4034 = vmatmul.bf16.gmra.mxu0 %v3118
  %v4035 = vpop.f32.mrf.mxu0
  %v4036 = vadd.f32 %v3948, %v4035
  %v4037 = vpop.f32.mrf.mxu0
  %v4038 = vadd.f32 %v3950, %v4037
  %4039 = vmatmul.bf16.gmra.mxu0 %v3121
  %v4040 = vpop.f32.mrf.mxu0
  %v4041 = vadd.f32 %v3953, %v4040
  %v4042 = vpop.f32.mrf.mxu0
  %v4043 = vadd.f32 %v3955, %v4042
  %4044 = vmatmul.bf16.gmra.mxu0 %v3124
  %v4045 = vpop.f32.mrf.mxu0
  %v4046 = vadd.f32 %v3958, %v4045
  %v4047 = vpop.f32.mrf.mxu0
  %v4048 = vadd.f32 %v3960, %v4047
  %4049 = vmatmul.bf16.gmra.mxu0 %v3127
  %v4050 = vpop.f32.mrf.mxu0
  %v4051 = vadd.f32 %v3963, %v4050
  %v4052 = vpop.f32.mrf.mxu0
  %v4053 = vadd.f32 %v3965, %v4052
  %4054 = vmatmul.bf16.gmra.mxu0 %v3130
  %v4055 = vpop.f32.mrf.mxu0
  %v4056 = vadd.f32 %v3968, %v4055
  %v4057 = vpop.f32.mrf.mxu0
  %v4058 = vadd.f32 %v3970, %v4057
  %4059 = vmatmul.bf16.gmra.mxu0 %v3133
  %v4060 = vpop.f32.mrf.mxu0
  %v4061 = vadd.f32 %v3973, %v4060
  %v4062 = vpop.f32.mrf.mxu0
  %v4063 = vadd.f32 %v3975, %v4062
  %4064 = vmatmul.bf16.gmra.mxu0 %v3136
  %v4065 = vpop.f32.mrf.mxu0
  %v4066 = vadd.f32 %v3978, %v4065
  %v4067 = vpop.f32.mrf.mxu0
  %v4068 = vadd.f32 %v3980, %v4067
  %4069 = vmatmul.bf16.gmra.mxu0 %v3139
  %v4070 = vpop.f32.mrf.mxu0
  %v4071 = vadd.f32 %v3983, %v4070
  %v4072 = vpop.f32.mrf.mxu0
  %v4073 = vadd.f32 %v3985, %v4072
  %4074 = vmatmul.bf16.gmra.mxu0 %v3142
  %v4075 = vpop.f32.mrf.mxu0
  %v4076 = vadd.f32 %v3988, %v4075
  %v4077 = vpop.f32.mrf.mxu0
  %v4078 = vadd.f32 %v3990, %v4077
  %4079 = vmatmul.bf16.gmra.mxu0 %v3145
  %v4080 = vpop.f32.mrf.mxu0
  %v4081 = vadd.f32 %v3993, %v4080
  %v4082 = vpop.f32.mrf.mxu0
  %v4083 = vadd.f32 %v3995, %v4082
  %4084 = vmatmul.bf16.gmra.mxu0 %v3148
  %v4085 = vpop.f32.mrf.mxu0
  %v4086 = vadd.f32 %v3998, %v4085
  %v4087 = vpop.f32.mrf.mxu0
  %v4088 = vadd.f32 %v4000, %v4087
  %4089 = vmatmul.bf16.gmra.mxu0 %v3151
  %v4090 = vpop.f32.mrf.mxu0
  %v4091 = vadd.f32 %v4003, %v4090
  %v4092 = vpop.f32.mrf.mxu0
  %4093 = vdwg.mxu0
  %4094 = vmatpush.bf16.msra.mxu0 %v3467
  %4095 = vmatpush.bf16.msra.mxu0 %v3465
  %4096 = vmatpush.bf16.msra.mxu0 %v3463
  %4097 = vmatpush.bf16.msra.mxu0 %v3461
  %4098 = vmatpush.bf16.msra.mxu0 %v3459
  %4099 = vmatpush.bf16.msra.mxu0 %v3457
  %4100 = vmatpush.bf16.msra.mxu0 %v3455
  %4101 = vmatpush.bf16.msra.mxu0 %v3453
  %4102 = vmatmul.bf16.gmra.mxu0 %v3155
  %v4103 = vpop.f32.mrf.mxu0
  %v4104 = vadd.f32 %v4016, %v4103
  %v4105 = vpop.f32.mrf.mxu0
  %v4106 = vadd.f32 %v4018, %v4105
  %4107 = vmatmul.bf16.gmra.mxu0 %v3158
  %v4108 = vpop.f32.mrf.mxu0
  %v4109 = vadd.f32 %v4021, %v4108
  %v4110 = vpop.f32.mrf.mxu0
  %v4111 = vadd.f32 %v4023, %v4110
  %4112 = vmatmul.bf16.gmra.mxu0 %v3161
  %v4113 = vpop.f32.mrf.mxu0
  %v4114 = vadd.f32 %v4026, %v4113
  %v4115 = vpop.f32.mrf.mxu0
  %v4116 = vadd.f32 %v4028, %v4115
  %4117 = vmatmul.bf16.gmra.mxu0 %v3164
  %v4118 = vpop.f32.mrf.mxu0
  %v4119 = vadd.f32 %v4031, %v4118
  %v4120 = vpop.f32.mrf.mxu0
  %v4121 = vadd.f32 %v4033, %v4120
  %4122 = vmatmul.bf16.gmra.mxu0 %v3167
  %v4123 = vpop.f32.mrf.mxu0
  %v4124 = vadd.f32 %v4036, %v4123
  %v4125 = vpop.f32.mrf.mxu0
  %v4126 = vadd.f32 %v4038, %v4125
  %4127 = vmatmul.bf16.gmra.mxu0 %v3170
  %v4128 = vpop.f32.mrf.mxu0
  %v4129 = vadd.f32 %v4041, %v4128
  %v4130 = vpop.f32.mrf.mxu0
  %v4131 = vadd.f32 %v4043, %v4130
  %4132 = vmatmul.bf16.gmra.mxu0 %v3173
  %v4133 = vpop.f32.mrf.mxu0
  %v4134 = vadd.f32 %v4046, %v4133
  %v4135 = vpop.f32.mrf.mxu0
  %v4136 = vadd.f32 %v4048, %v4135
  %4137 = vmatmul.bf16.gmra.mxu0 %v3176
  %v4138 = vpop.f32.mrf.mxu0
  %v4139 = vadd.f32 %v4051, %v4138
  %v4140 = vpop.f32.mrf.mxu0
  %v4141 = vadd.f32 %v4053, %v4140
  %4142 = vmatmul.bf16.gmra.mxu0 %v3179
  %v4143 = vpop.f32.mrf.mxu0
  %v4144 = vadd.f32 %v4056, %v4143
  %v4145 = vpop.f32.mrf.mxu0
  %v4146 = vadd.f32 %v4058, %v4145
  %4147 = vmatmul.bf16.gmra.mxu0 %v3182
  %v4148 = vpop.f32.mrf.mxu0
  %v4149 = vadd.f32 %v4061, %v4148
  %v4150 = vpop.f32.mrf.mxu0
  %v4151 = vadd.f32 %v4063, %v4150
  %4152 = vmatmul.bf16.gmra.mxu0 %v3185
  %v4153 = vpop.f32.mrf.mxu0
  %v4154 = vadd.f32 %v4066, %v4153
  %v4155 = vpop.f32.mrf.mxu0
  %v4156 = vadd.f32 %v4068, %v4155
  %4157 = vmatmul.bf16.gmra.mxu0 %v3188
  %v4158 = vpop.f32.mrf.mxu0
  %v4159 = vadd.f32 %v4071, %v4158
  %v4160 = vpop.f32.mrf.mxu0
  %v4161 = vadd.f32 %v4073, %v4160
  %4162 = vmatmul.bf16.gmra.mxu0 %v3191
  %v4163 = vpop.f32.mrf.mxu0
  %v4164 = vadd.f32 %v4076, %v4163
  %v4165 = vpop.f32.mrf.mxu0
  %v4166 = vadd.f32 %v4078, %v4165
  %4167 = vmatmul.bf16.gmra.mxu0 %v3194
  %v4168 = vpop.f32.mrf.mxu0
  %v4169 = vadd.f32 %v4081, %v4168
  %v4170 = vpop.f32.mrf.mxu0
  %v4171 = vadd.f32 %v4083, %v4170
  %4172 = vmatmul.bf16.gmra.mxu0 %v3197
  %v4173 = vpop.f32.mrf.mxu0
  %v4174 = vadd.f32 %v4086, %v4173
  %v4175 = vpop.f32.mrf.mxu0
  %v4176 = vadd.f32 %v4088, %v4175
  %4177 = vmatmul.bf16.gmra.mxu0 %v3200
  %v4178 = vpop.f32.mrf.mxu0
  %v4179 = vadd.f32 %v4091, %v4178
  %v4180 = vpop.f32.mrf.mxu0
  %4181 = vdwg.mxu0
  %4182 = vmatpush.bf16.msra.mxu0 0
  %4183 = vmatpush.bf16.msra.mxu0 0
  %4184 = vmatpush.bf16.msra.mxu0 0
  %4185 = vmatpush.bf16.msra.mxu0 0
  %4186 = vmatpush.bf16.msra.mxu0 0
  %4187 = vmatpush.bf16.msra.mxu0 %v3564
  %4188 = vmatpush.bf16.msra.mxu0 %v3471
  %4189 = vmatpush.bf16.msra.mxu0 %v3469
  %4190 = vmatmul.bf16.gmra.mxu0 %v3527
  %v4191 = vpop.f32.mrf.mxu0
  %v4192 = vadd.f32 %v4104, %v4191
  %v4193 = vpop.f32.mrf.mxu0
  %v4194 = vadd.f32 %v4106, %v4193
  %4195 = vmatmul.bf16.gmra.mxu0 %v3529
  %v4196 = vpop.f32.mrf.mxu0
  %v4197 = vadd.f32 %v4109, %v4196
  %v4198 = vpop.f32.mrf.mxu0
  %v4199 = vadd.f32 %v4111, %v4198
  %4200 = vmatmul.bf16.gmra.mxu0 %v3531
  %v4201 = vpop.f32.mrf.mxu0
  %v4202 = vadd.f32 %v4114, %v4201
  %v4203 = vpop.f32.mrf.mxu0
  %v4204 = vadd.f32 %v4116, %v4203
  %4205 = vmatmul.bf16.gmra.mxu0 %v3533
  %v4206 = vpop.f32.mrf.mxu0
  %v4207 = vadd.f32 %v4119, %v4206
  %v4208 = vpop.f32.mrf.mxu0
  %v4209 = vadd.f32 %v4121, %v4208
  %4210 = vmatmul.bf16.gmra.mxu0 %v3535
  %v4211 = vpop.f32.mrf.mxu0
  %v4212 = vadd.f32 %v4124, %v4211
  %v4213 = vpop.f32.mrf.mxu0
  %v4214 = vadd.f32 %v4126, %v4213
  %4215 = vmatmul.bf16.gmra.mxu0 %v3537
  %v4216 = vpop.f32.mrf.mxu0
  %v4217 = vadd.f32 %v4129, %v4216
  %v4218 = vpop.f32.mrf.mxu0
  %v4219 = vadd.f32 %v4131, %v4218
  %4220 = vmatmul.bf16.gmra.mxu0 %v3539
  %v4221 = vpop.f32.mrf.mxu0
  %v4222 = vadd.f32 %v4134, %v4221
  %v4223 = vpop.f32.mrf.mxu0
  %v4224 = vadd.f32 %v4136, %v4223
  %4225 = vmatmul.bf16.gmra.mxu0 %v3541
  %v4226 = vpop.f32.mrf.mxu0
  %v4227 = vadd.f32 %v4139, %v4226
  %v4228 = vpop.f32.mrf.mxu0
  %v4229 = vadd.f32 %v4141, %v4228
  %4230 = vmatmul.bf16.gmra.mxu0 %v3543
  %v4231 = vpop.f32.mrf.mxu0
  %v4232 = vadd.f32 %v4144, %v4231
  %v4233 = vpop.f32.mrf.mxu0
  %v4234 = vadd.f32 %v4146, %v4233
  %4235 = vmatmul.bf16.gmra.mxu0 %v3545
  %v4236 = vpop.f32.mrf.mxu0
  %v4237 = vadd.f32 %v4149, %v4236
  %v4238 = vpop.f32.mrf.mxu0
  %v4239 = vadd.f32 %v4151, %v4238
  %4240 = vmatmul.bf16.gmra.mxu0 %v3547
  %v4241 = vpop.f32.mrf.mxu0
  %v4242 = vadd.f32 %v4154, %v4241
  %v4243 = vpop.f32.mrf.mxu0
  %v4244 = vadd.f32 %v4156, %v4243
  %4245 = vmatmul.bf16.gmra.mxu0 %v3549
  %v4246 = vpop.f32.mrf.mxu0
  %v4247 = vadd.f32 %v4159, %v4246
  %v4248 = vpop.f32.mrf.mxu0
  %v4249 = vadd.f32 %v4161, %v4248
  %4250 = vmatmul.bf16.gmra.mxu0 %v3551
  %v4251 = vpop.f32.mrf.mxu0
  %v4252 = vadd.f32 %v4164, %v4251
  %v4253 = vpop.f32.mrf.mxu0
  %v4254 = vadd.f32 %v4166, %v4253
  %4255 = vmatmul.bf16.gmra.mxu0 %v3553
  %v4256 = vpop.f32.mrf.mxu0
  %v4257 = vadd.f32 %v4169, %v4256
  %v4258 = vpop.f32.mrf.mxu0
  %v4259 = vadd.f32 %v4171, %v4258
  %4260 = vmatmul.bf16.gmra.mxu0 %v3555
  %v4261 = vpop.f32.mrf.mxu0
  %v4262 = vadd.f32 %v4174, %v4261
  %v4263 = vpop.f32.mrf.mxu0
  %v4264 = vadd.f32 %v4176, %v4263
  %4265 = vmatmul.bf16.gmra.mxu0 %v3557
  %v4266 = vpop.f32.mrf.mxu0
  %v4267 = vadd.f32 %v4179, %v4266
  %v4268 = vpop.f32.mrf.mxu0
  %4269 = vdwg.mxu0
  %v4270 = vmax.f32 %v3840, 0.0
  %v4271 = vmax.f32 %v4192, 0.0
  %v4272 = vmax.f32 %v3842, 0.0
  %v4273 = vmax.f32 %v4194, 0.0
  %v4274 = vmax.f32 %v3845, 0.0
  %v4275 = vmax.f32 %v4197, 0.0
  %v4276 = vmax.f32 %v3847, 0.0
  %v4277 = vmax.f32 %v4199, 0.0
  %v4278 = vmax.f32 %v3850, 0.0
  %v4279 = vmax.f32 %v4202, 0.0
  %v4280 = vmax.f32 %v3852, 0.0
  %v4281 = vmax.f32 %v4204, 0.0
  %v4282 = vmax.f32 %v3855, 0.0
  %v4283 = vmax.f32 %v4207, 0.0
  %v4284 = vmax.f32 %v3857, 0.0
  %v4285 = vmax.f32 %v4209, 0.0
  %v4286 = vmax.f32 %v3860, 0.0
  %v4287 = vmax.f32 %v4212, 0.0
  %v4288 = vmax.f32 %v3862, 0.0
  %v4289 = vmax.f32 %v4214, 0.0
  %v4290 = vmax.f32 %v3865, 0.0
  %v4291 = vmax.f32 %v4217, 0.0
  %v4292 = vmax.f32 %v3867, 0.0
  %v4293 = vmax.f32 %v4219, 0.0
  %v4294 = vmax.f32 %v3870, 0.0
  %v4295 = vmax.f32 %v4222, 0.0
  %v4296 = vmax.f32 %v3872, 0.0
  %v4297 = vmax.f32 %v4224, 0.0
  %v4298 = vmax.f32 %v3875, 0.0
  %v4299 = vmax.f32 %v4227, 0.0
  %v4300 = vmax.f32 %v3877, 0.0
  %v4301 = vmax.f32 %v4229, 0.0
  %v4302 = vmax.f32 %v3880, 0.0
  %v4303 = vmax.f32 %v4232, 0.0
  %v4304 = vmax.f32 %v3882, 0.0
  %v4305 = vmax.f32 %v4234, 0.0
  %v4306 = vmax.f32 %v3885, 0.0
  %v4307 = vmax.f32 %v4237, 0.0
  %v4308 = vmax.f32 %v3887, 0.0
  %v4309 = vmax.f32 %v4239, 0.0
  %v4310 = vmax.f32 %v3890, 0.0
  %v4311 = vmax.f32 %v4242, 0.0
  %v4312 = vmax.f32 %v3892, 0.0
  %v4313 = vmax.f32 %v4244, 0.0
  %v4314 = vmax.f32 %v3895, 0.0
  %v4315 = vmax.f32 %v4247, 0.0
  %v4316 = vmax.f32 %v3897, 0.0
  %v4317 = vmax.f32 %v4249, 0.0
  %v4318 = vmax.f32 %v3900, 0.0
  %v4319 = vmax.f32 %v4252, 0.0
  %v4320 = vmax.f32 %v3902, 0.0
  %v4321 = vmax.f32 %v4254, 0.0
  %v4322 = vmax.f32 %v3905, 0.0
  %v4323 = vmax.f32 %v4257, 0.0
  %v4324 = vmax.f32 %v3907, 0.0
  %v4325 = vmax.f32 %v4259, 0.0
  %v4326 = vmax.f32 %v3910, 0.0
  %v4327 = vmax.f32 %v4262, 0.0
  %v4328 = vmax.f32 %v3912, 0.0
  %v4329 = vmax.f32 %v4264, 0.0
  %v4330 = vmax.f32 %v3915, 0.0
  %v4331 = vmax.f32 %v4267, 0.0
  %v4332 = vpack.c.bf16 %v4272, %v4270
  %v4333 = vpack.c.bf16 %v4273, %v4271
  %v4334 = vpack.c.bf16 %v4276, %v4274
  %v4335 = vpack.c.bf16 %v4277, %v4275
  %v4336 = vpack.c.bf16 %v4280, %v4278
  %v4337 = vpack.c.bf16 %v4281, %v4279
  %v4338 = vpack.c.bf16 %v4284, %v4282
  %v4339 = vpack.c.bf16 %v4285, %v4283
  %v4340 = vpack.c.bf16 %v4288, %v4286
  %v4341 = vpack.c.bf16 %v4289, %v4287
  %v4342 = vpack.c.bf16 %v4292, %v4290
  %v4343 = vpack.c.bf16 %v4293, %v4291
  %v4344 = vpack.c.bf16 %v4296, %v4294
  %v4345 = vpack.c.bf16 %v4297, %v4295
  %v4346 = vpack.c.bf16 %v4300, %v4298
  %v4347 = vpack.c.bf16 %v4301, %v4299
  %v4348 = vpack.c.bf16 %v4304, %v4302
  %v4349 = vpack.c.bf16 %v4305, %v4303
  %v4350 = vpack.c.bf16 %v4308, %v4306
  %v4351 = vpack.c.bf16 %v4309, %v4307
  %v4352 = vpack.c.bf16 %v4312, %v4310
  %v4353 = vpack.c.bf16 %v4313, %v4311
  %v4354 = vpack.c.bf16 %v4316, %v4314
  %v4355 = vpack.c.bf16 %v4317, %v4315
  %v4356 = vpack.c.bf16 %v4320, %v4318
  %v4357 = vpack.c.bf16 %v4321, %v4319
  %v4358 = vpack.c.bf16 %v4324, %v4322
  %v4359 = vpack.c.bf16 %v4325, %v4323
  %v4360 = vpack.c.bf16 %v4328, %v4326
  %v4361 = vpack.c.bf16 %v4329, %v4327
  %v4362 = vpack.c.bf16 %v4330, %v4330
  %v4363 = vpack.c.bf16 %v4331, %v4331
  %v4364 = vld [vmem:[%s7] sm:$0xf]
  %v4365 = vld [vmem:[%s7 + $0x4] sm:$0xf]
  %v4366 = vld [vmem:[%s7 + $0x8] sm:$0xf]
  %v4367 = vld [vmem:[%s7 + $0xc] sm:$0xf]
  %v4368 = vld [vmem:[%s7 + $0x10] sm:$0xf]
  %v4369 = vld [vmem:[%s7 + $0x14] sm:$0xf]
  %v4370 = vld [vmem:[%s7 + $0x18] sm:$0xf]
  %v4371 = vld [vmem:[%s7 + $0x1c] sm:$0xf]
  %v4372 = vld [vmem:[%s7 + $0x20] sm:$0xf]
  %v4373 = vld [vmem:[%s7 + $0x24] sm:$0xf]
  %v4374 = vld [vmem:[%s7 + $0x28] sm:$0xf]
  %v4375 = vld [vmem:[%s7 + $0x2c] sm:$0xf]
  %v4376 = vld [vmem:[%s7 + $0x30] sm:$0xf]
  %v4377 = vld [vmem:[%s7 + $0x34] sm:$0xf]
  %v4378 = vld [vmem:[%s7 + $0x38] sm:$0xf]
  %v4379 = vld [vmem:[%s7 + $0x3c] sm:$0xf]
  %v4380 = vld [vmem:[%s7 + $0x40] sm:$0xf]
  %v4381 = vld [vmem:[%s7 + $0x44] sm:$0xf]
  %v4382 = vld [vmem:[%s7 + $0x48] sm:$0xf]
  %v4383 = vld [vmem:[%s7 + $0x4c] sm:$0xf]
  %v4404 = vunpack.c.l.b16 %v4364
  %v4405 = vunpack.c.l.b16 %v4365
  %v4406 = vunpack.c.l.b16 %v4366
  %v4407 = vunpack.c.l.b16 %v4367
  %v4408 = vunpack.c.l.b16 %v4368
  %v4409 = vunpack.c.l.b16 %v4369
  %v4410 = vunpack.c.l.b16 %v4370
  %v4411 = vunpack.c.l.b16 %v4371
  %v4412 = vunpack.c.l.b16 %v4372
  %v4413 = vunpack.c.l.b16 %v4373
  %v4414 = vunpack.c.l.b16 %v4374
  %v4415 = vunpack.c.l.b16 %v4375
  %v4416 = vunpack.c.l.b16 %v4376
  %v4417 = vunpack.c.l.b16 %v4377
  %v4418 = vunpack.c.l.b16 %v4378
  %v4419 = vunpack.c.l.b16 %v4379
  %v4420 = vunpack.c.l.b16 %v4380
  %v4421 = vunpack.c.l.b16 %v4381
  %v4422 = vunpack.c.l.b16 %v4382
  %v4423 = vunpack.c.l.b16 %v4383
  %v4424 = vpack.c.b16 %v4405, %v4404
  %v4425 = vpack.c.b16 %v4407, %v4406
  %v4426 = vpack.c.b16 %v4409, %v4408
  %v4427 = vpack.c.b16 %v4411, %v4410
  %v4428 = vpack.c.b16 %v4413, %v4412
  %v4429 = vpack.c.b16 %v4415, %v4414
  %v4430 = vpack.c.b16 %v4417, %v4416
  %v4431 = vpack.c.b16 %v4419, %v4418
  %v4432 = vpack.c.b16 %v4421, %v4420
  %v4433 = vpack.c.b16 %v4423, %v4422
  %v4445 = vsel %vm613, %v4333, 0
  %v4448 = vsel %vm613, %v4335, 0
  %v4451 = vsel %vm613, %v4337, 0
  %v4454 = vsel %vm613, %v4339, 0
  %v4457 = vsel %vm613, %v4341, 0
  %v4460 = vsel %vm613, %v4343, 0
  %v4463 = vsel %vm613, %v4345, 0
  %v4466 = vsel %vm613, %v4347, 0
  %v4469 = vsel %vm613, %v4349, 0
  %v4472 = vsel %vm613, %v4351, 0
  %v4475 = vsel %vm613, %v4353, 0
  %v4478 = vsel %vm613, %v4355, 0
  %v4481 = vsel %vm613, %v4357, 0
  %v4484 = vsel %vm613, %v4359, 0
  %v4487 = vsel %vm613, %v4361, 0
  %v4490 = vsel %vm613, %v4363, 0
  %4492 = vmatpush.bf16.msra.mxu0 %v4431
  %4493 = vmatpush.bf16.msra.mxu0 %v4430
  %4494 = vmatpush.bf16.msra.mxu0 %v4429
  %4495 = vmatpush.bf16.msra.mxu0 %v4428
  %4496 = vmatpush.bf16.msra.mxu0 %v4427
  %4497 = vmatpush.bf16.msra.mxu0 %v4426
  %4498 = vmatpush.bf16.msra.mxu0 %v4425
  %4499 = vmatpush.bf16.msra.mxu0 %v4424
  %4500 = vmatmul.bf16.gmra.mxu0 %v4332
  %v4501 = vpop.f32.mrf.mxu0
  %v4502 = vadd.f32 0.0, %v4501
  %v4503 = vpop.f32.mrf.mxu0
  %v4504 = vadd.f32 0.0, %v4503
  %4505 = vmatmul.bf16.gmra.mxu0 %v4334
  %v4506 = vpop.f32.mrf.mxu0
  %v4507 = vadd.f32 0.0, %v4506
  %v4508 = vpop.f32.mrf.mxu0
  %v4509 = vadd.f32 0.0, %v4508
  %4510 = vmatmul.bf16.gmra.mxu0 %v4336
  %v4511 = vpop.f32.mrf.mxu0
  %v4512 = vadd.f32 0.0, %v4511
  %v4513 = vpop.f32.mrf.mxu0
  %v4514 = vadd.f32 0.0, %v4513
  %4515 = vmatmul.bf16.gmra.mxu0 %v4338
  %v4516 = vpop.f32.mrf.mxu0
  %v4517 = vadd.f32 0.0, %v4516
  %v4518 = vpop.f32.mrf.mxu0
  %v4519 = vadd.f32 0.0, %v4518
  %4520 = vmatmul.bf16.gmra.mxu0 %v4340
  %v4521 = vpop.f32.mrf.mxu0
  %v4522 = vadd.f32 0.0, %v4521
  %v4523 = vpop.f32.mrf.mxu0
  %v4524 = vadd.f32 0.0, %v4523
  %4525 = vmatmul.bf16.gmra.mxu0 %v4342
  %v4526 = vpop.f32.mrf.mxu0
  %v4527 = vadd.f32 0.0, %v4526
  %v4528 = vpop.f32.mrf.mxu0
  %v4529 = vadd.f32 0.0, %v4528
  %4530 = vmatmul.bf16.gmra.mxu0 %v4344
  %v4531 = vpop.f32.mrf.mxu0
  %v4532 = vadd.f32 0.0, %v4531
  %v4533 = vpop.f32.mrf.mxu0
  %v4534 = vadd.f32 0.0, %v4533
  %4535 = vmatmul.bf16.gmra.mxu0 %v4346
  %v4536 = vpop.f32.mrf.mxu0
  %v4537 = vadd.f32 0.0, %v4536
  %v4538 = vpop.f32.mrf.mxu0
  %v4539 = vadd.f32 0.0, %v4538
  %4540 = vmatmul.bf16.gmra.mxu0 %v4348
  %v4541 = vpop.f32.mrf.mxu0
  %v4542 = vadd.f32 0.0, %v4541
  %v4543 = vpop.f32.mrf.mxu0
  %v4544 = vadd.f32 0.0, %v4543
  %4545 = vmatmul.bf16.gmra.mxu0 %v4350
  %v4546 = vpop.f32.mrf.mxu0
  %v4547 = vadd.f32 0.0, %v4546
  %v4548 = vpop.f32.mrf.mxu0
  %v4549 = vadd.f32 0.0, %v4548
  %4550 = vmatmul.bf16.gmra.mxu0 %v4352
  %v4551 = vpop.f32.mrf.mxu0
  %v4552 = vadd.f32 0.0, %v4551
  %v4553 = vpop.f32.mrf.mxu0
  %v4554 = vadd.f32 0.0, %v4553
  %4555 = vmatmul.bf16.gmra.mxu0 %v4354
  %v4556 = vpop.f32.mrf.mxu0
  %v4557 = vadd.f32 0.0, %v4556
  %v4558 = vpop.f32.mrf.mxu0
  %v4559 = vadd.f32 0.0, %v4558
  %4560 = vmatmul.bf16.gmra.mxu0 %v4356
  %v4561 = vpop.f32.mrf.mxu0
  %v4562 = vadd.f32 0.0, %v4561
  %v4563 = vpop.f32.mrf.mxu0
  %v4564 = vadd.f32 0.0, %v4563
  %4565 = vmatmul.bf16.gmra.mxu0 %v4358
  %v4566 = vpop.f32.mrf.mxu0
  %v4567 = vadd.f32 0.0, %v4566
  %v4568 = vpop.f32.mrf.mxu0
  %v4569 = vadd.f32 0.0, %v4568
  %4570 = vmatmul.bf16.gmra.mxu0 %v4360
  %v4571 = vpop.f32.mrf.mxu0
  %v4572 = vadd.f32 0.0, %v4571
  %v4573 = vpop.f32.mrf.mxu0
  %v4574 = vadd.f32 0.0, %v4573
  %4575 = vmatmul.bf16.gmra.mxu0 %v4362
  %v4576 = vpop.f32.mrf.mxu0
  %v4577 = vadd.f32 0.0, %v4576
  %v4578 = vpop.f32.mrf.mxu0
  %4579 = vdwg.mxu0
  %4580 = vmatpush.bf16.msra.mxu0 0
  %4581 = vmatpush.bf16.msra.mxu0 0
  %4582 = vmatpush.bf16.msra.mxu0 0
  %4583 = vmatpush.bf16.msra.mxu0 0
  %4584 = vmatpush.bf16.msra.mxu0 0
  %4585 = vmatpush.bf16.msra.mxu0 0
  %4586 = vmatpush.bf16.msra.mxu0 %v4433
  %4587 = vmatpush.bf16.msra.mxu0 %v4432
  %4588 = vmatmul.bf16.gmra.mxu0 %v4445
  %v4589 = vpop.f32.mrf.mxu0
  %v4590 = vadd.f32 %v4502, %v4589
  %v4591 = vpop.f32.mrf.mxu0
  %v4592 = vadd.f32 %v4504, %v4591
  %4593 = vmatmul.bf16.gmra.mxu0 %v4448
  %v4594 = vpop.f32.mrf.mxu0
  %v4595 = vadd.f32 %v4507, %v4594
  %v4596 = vpop.f32.mrf.mxu0
  %v4597 = vadd.f32 %v4509, %v4596
  %4598 = vmatmul.bf16.gmra.mxu0 %v4451
  %v4599 = vpop.f32.mrf.mxu0
  %v4600 = vadd.f32 %v4512, %v4599
  %v4601 = vpop.f32.mrf.mxu0
  %v4602 = vadd.f32 %v4514, %v4601
  %4603 = vmatmul.bf16.gmra.mxu0 %v4454
  %v4604 = vpop.f32.mrf.mxu0
  %v4605 = vadd.f32 %v4517, %v4604
  %v4606 = vpop.f32.mrf.mxu0
  %v4607 = vadd.f32 %v4519, %v4606
  %4608 = vmatmul.bf16.gmra.mxu0 %v4457
  %v4609 = vpop.f32.mrf.mxu0
  %v4610 = vadd.f32 %v4522, %v4609
  %v4611 = vpop.f32.mrf.mxu0
  %v4612 = vadd.f32 %v4524, %v4611
  %4613 = vmatmul.bf16.gmra.mxu0 %v4460
  %v4614 = vpop.f32.mrf.mxu0
  %v4615 = vadd.f32 %v4527, %v4614
  %v4616 = vpop.f32.mrf.mxu0
  %v4617 = vadd.f32 %v4529, %v4616
  %4618 = vmatmul.bf16.gmra.mxu0 %v4463
  %v4619 = vpop.f32.mrf.mxu0
  %v4620 = vadd.f32 %v4532, %v4619
  %v4621 = vpop.f32.mrf.mxu0
  %v4622 = vadd.f32 %v4534, %v4621
  %4623 = vmatmul.bf16.gmra.mxu0 %v4466
  %v4624 = vpop.f32.mrf.mxu0
  %v4625 = vadd.f32 %v4537, %v4624
  %v4626 = vpop.f32.mrf.mxu0
  %v4627 = vadd.f32 %v4539, %v4626
  %4628 = vmatmul.bf16.gmra.mxu0 %v4469
  %v4629 = vpop.f32.mrf.mxu0
  %v4630 = vadd.f32 %v4542, %v4629
  %v4631 = vpop.f32.mrf.mxu0
  %v4632 = vadd.f32 %v4544, %v4631
  %4633 = vmatmul.bf16.gmra.mxu0 %v4472
  %v4634 = vpop.f32.mrf.mxu0
  %v4635 = vadd.f32 %v4547, %v4634
  %v4636 = vpop.f32.mrf.mxu0
  %v4637 = vadd.f32 %v4549, %v4636
  %4638 = vmatmul.bf16.gmra.mxu0 %v4475
  %v4639 = vpop.f32.mrf.mxu0
  %v4640 = vadd.f32 %v4552, %v4639
  %v4641 = vpop.f32.mrf.mxu0
  %v4642 = vadd.f32 %v4554, %v4641
  %4643 = vmatmul.bf16.gmra.mxu0 %v4478
  %v4644 = vpop.f32.mrf.mxu0
  %v4645 = vadd.f32 %v4557, %v4644
  %v4646 = vpop.f32.mrf.mxu0
  %v4647 = vadd.f32 %v4559, %v4646
  %4648 = vmatmul.bf16.gmra.mxu0 %v4481
  %v4649 = vpop.f32.mrf.mxu0
  %v4650 = vadd.f32 %v4562, %v4649
  %v4651 = vpop.f32.mrf.mxu0
  %v4652 = vadd.f32 %v4564, %v4651
  %4653 = vmatmul.bf16.gmra.mxu0 %v4484
  %v4654 = vpop.f32.mrf.mxu0
  %v4655 = vadd.f32 %v4567, %v4654
  %v4656 = vpop.f32.mrf.mxu0
  %v4657 = vadd.f32 %v4569, %v4656
  %4658 = vmatmul.bf16.gmra.mxu0 %v4487
  %v4659 = vpop.f32.mrf.mxu0
  %v4660 = vadd.f32 %v4572, %v4659
  %v4661 = vpop.f32.mrf.mxu0
  %v4662 = vadd.f32 %v4574, %v4661
  %4663 = vmatmul.bf16.gmra.mxu0 %v4490
  %v4664 = vpop.f32.mrf.mxu0
  %v4665 = vadd.f32 %v4577, %v4664
  %v4666 = vpop.f32.mrf.mxu0
  %4667 = vdwg.mxu0
  %v4668 = vld [vmem:[%s8] sm:$0xf]
  %v4669 = vld [vmem:[%s8 + $0x4] sm:$0xf]
  %v4670 = vld [vmem:[%s8 + $0x8] sm:$0xf]
  %v4671 = vld [vmem:[%s8 + $0xc] sm:$0xf]
  %v4672 = vld [vmem:[%s8 + $0x10] sm:$0xf]
  %v4673 = vld [vmem:[%s8 + $0x14] sm:$0xf]
  %v4674 = vld [vmem:[%s8 + $0x18] sm:$0xf]
  %v4675 = vld [vmem:[%s8 + $0x1c] sm:$0xf]
  %v4676 = vld [vmem:[%s8 + $0x20] sm:$0xf]
  %v4677 = vld [vmem:[%s8 + $0x24] sm:$0xf]
  %v4678 = vld [vmem:[%s8 + $0x28] sm:$0xf]
  %v4679 = vld [vmem:[%s8 + $0x2c] sm:$0xf]
  %v4680 = vld [vmem:[%s8 + $0x30] sm:$0xf]
  %v4681 = vld [vmem:[%s8 + $0x34] sm:$0xf]
  %v4682 = vld [vmem:[%s8 + $0x38] sm:$0xf]
  %v4683 = vld [vmem:[%s8 + $0x3c] sm:$0xf]
  %v4684 = vld [vmem:[%s8 + $0x40] sm:$0xf]
  %v4685 = vld [vmem:[%s8 + $0x44] sm:$0xf]
  %v4686 = vld [vmem:[%s8 + $0x48] sm:$0xf]
  %v4687 = vld [vmem:[%s8 + $0x4c] sm:$0xf]
  %v4708 = vunpack.c.l.b16 %v4668
  %v4709 = vunpack.c.l.b16 %v4669
  %v4710 = vunpack.c.l.b16 %v4670
  %v4711 = vunpack.c.l.b16 %v4671
  %v4712 = vunpack.c.l.b16 %v4672
  %v4713 = vunpack.c.l.b16 %v4673
  %v4714 = vunpack.c.l.b16 %v4674
  %v4715 = vunpack.c.l.b16 %v4675
  %v4716 = vunpack.c.l.b16 %v4676
  %v4717 = vunpack.c.l.b16 %v4677
  %v4718 = vunpack.c.l.b16 %v4678
  %v4719 = vunpack.c.l.b16 %v4679
  %v4720 = vunpack.c.l.b16 %v4680
  %v4721 = vunpack.c.l.b16 %v4681
  %v4722 = vunpack.c.l.b16 %v4682
  %v4723 = vunpack.c.l.b16 %v4683
  %v4724 = vunpack.c.l.b16 %v4684
  %v4725 = vunpack.c.l.b16 %v4685
  %v4726 = vunpack.c.l.b16 %v4686
  %v4727 = vunpack.c.l.b16 %v4687
  %v4728 = vpack.c.b16 %v4709, %v4708
  %v4729 = vpack.c.b16 %v4711, %v4710
  %v4730 = vpack.c.b16 %v4713, %v4712
  %v4731 = vpack.c.b16 %v4715, %v4714
  %v4732 = vpack.c.b16 %v4717, %v4716
  %v4733 = vpack.c.b16 %v4719, %v4718
  %v4734 = vpack.c.b16 %v4721, %v4720
  %v4735 = vpack.c.b16 %v4723, %v4722
  %v4736 = vpack.c.b16 %v4725, %v4724
  %v4737 = vpack.c.b16 %v4727, %v4726
  %4748 = vmatpush.bf16.msra.mxu0 %v4735
  %4749 = vmatpush.bf16.msra.mxu0 %v4734
  %4750 = vmatpush.bf16.msra.mxu0 %v4733
  %4751 = vmatpush.bf16.msra.mxu0 %v4732
  %4752 = vmatpush.bf16.msra.mxu0 %v4731
  %4753 = vmatpush.bf16.msra.mxu0 %v4730
  %4754 = vmatpush.bf16.msra.mxu0 %v4729
  %4755 = vmatpush.bf16.msra.mxu0 %v4728
  %4756 = vmatmul.bf16.gmra.mxu0 %v4332
  %v4757 = vpop.f32.mrf.mxu0
  %v4758 = vadd.f32 0.0, %v4757
  %v4759 = vpop.f32.mrf.mxu0
  %v4760 = vadd.f32 0.0, %v4759
  %4761 = vmatmul.bf16.gmra.mxu0 %v4334
  %v4762 = vpop.f32.mrf.mxu0
  %v4763 = vadd.f32 0.0, %v4762
  %v4764 = vpop.f32.mrf.mxu0
  %v4765 = vadd.f32 0.0, %v4764
  %4766 = vmatmul.bf16.gmra.mxu0 %v4336
  %v4767 = vpop.f32.mrf.mxu0
  %v4768 = vadd.f32 0.0, %v4767
  %v4769 = vpop.f32.mrf.mxu0
  %v4770 = vadd.f32 0.0, %v4769
  %4771 = vmatmul.bf16.gmra.mxu0 %v4338
  %v4772 = vpop.f32.mrf.mxu0
  %v4773 = vadd.f32 0.0, %v4772
  %v4774 = vpop.f32.mrf.mxu0
  %v4775 = vadd.f32 0.0, %v4774
  %4776 = vmatmul.bf16.gmra.mxu0 %v4340
  %v4777 = vpop.f32.mrf.mxu0
  %v4778 = vadd.f32 0.0, %v4777
  %v4779 = vpop.f32.mrf.mxu0
  %v4780 = vadd.f32 0.0, %v4779
  %4781 = vmatmul.bf16.gmra.mxu0 %v4342
  %v4782 = vpop.f32.mrf.mxu0
  %v4783 = vadd.f32 0.0, %v4782
  %v4784 = vpop.f32.mrf.mxu0
  %v4785 = vadd.f32 0.0, %v4784
  %4786 = vmatmul.bf16.gmra.mxu0 %v4344
  %v4787 = vpop.f32.mrf.mxu0
  %v4788 = vadd.f32 0.0, %v4787
  %v4789 = vpop.f32.mrf.mxu0
  %v4790 = vadd.f32 0.0, %v4789
  %4791 = vmatmul.bf16.gmra.mxu0 %v4346
  %v4792 = vpop.f32.mrf.mxu0
  %v4793 = vadd.f32 0.0, %v4792
  %v4794 = vpop.f32.mrf.mxu0
  %v4795 = vadd.f32 0.0, %v4794
  %4796 = vmatmul.bf16.gmra.mxu0 %v4348
  %v4797 = vpop.f32.mrf.mxu0
  %v4798 = vadd.f32 0.0, %v4797
  %v4799 = vpop.f32.mrf.mxu0
  %v4800 = vadd.f32 0.0, %v4799
  %4801 = vmatmul.bf16.gmra.mxu0 %v4350
  %v4802 = vpop.f32.mrf.mxu0
  %v4803 = vadd.f32 0.0, %v4802
  %v4804 = vpop.f32.mrf.mxu0
  %v4805 = vadd.f32 0.0, %v4804
  %4806 = vmatmul.bf16.gmra.mxu0 %v4352
  %v4807 = vpop.f32.mrf.mxu0
  %v4808 = vadd.f32 0.0, %v4807
  %v4809 = vpop.f32.mrf.mxu0
  %v4810 = vadd.f32 0.0, %v4809
  %4811 = vmatmul.bf16.gmra.mxu0 %v4354
  %v4812 = vpop.f32.mrf.mxu0
  %v4813 = vadd.f32 0.0, %v4812
  %v4814 = vpop.f32.mrf.mxu0
  %v4815 = vadd.f32 0.0, %v4814
  %4816 = vmatmul.bf16.gmra.mxu0 %v4356
  %v4817 = vpop.f32.mrf.mxu0
  %v4818 = vadd.f32 0.0, %v4817
  %v4819 = vpop.f32.mrf.mxu0
  %v4820 = vadd.f32 0.0, %v4819
  %4821 = vmatmul.bf16.gmra.mxu0 %v4358
  %v4822 = vpop.f32.mrf.mxu0
  %v4823 = vadd.f32 0.0, %v4822
  %v4824 = vpop.f32.mrf.mxu0
  %v4825 = vadd.f32 0.0, %v4824
  %4826 = vmatmul.bf16.gmra.mxu0 %v4360
  %v4827 = vpop.f32.mrf.mxu0
  %v4828 = vadd.f32 0.0, %v4827
  %v4829 = vpop.f32.mrf.mxu0
  %v4830 = vadd.f32 0.0, %v4829
  %4831 = vmatmul.bf16.gmra.mxu0 %v4362
  %v4832 = vpop.f32.mrf.mxu0
  %v4833 = vadd.f32 0.0, %v4832
  %v4834 = vpop.f32.mrf.mxu0
  %4835 = vdwg.mxu0
  %4836 = vmatpush.bf16.msra.mxu0 0
  %4837 = vmatpush.bf16.msra.mxu0 0
  %4838 = vmatpush.bf16.msra.mxu0 0
  %4839 = vmatpush.bf16.msra.mxu0 0
  %4840 = vmatpush.bf16.msra.mxu0 0
  %4841 = vmatpush.bf16.msra.mxu0 0
  %4842 = vmatpush.bf16.msra.mxu0 %v4737
  %4843 = vmatpush.bf16.msra.mxu0 %v4736
  %4844 = vmatmul.bf16.gmra.mxu0 %v4445
  %v4845 = vpop.f32.mrf.mxu0
  %v4846 = vadd.f32 %v4758, %v4845
  %v4847 = vpop.f32.mrf.mxu0
  %v4848 = vadd.f32 %v4760, %v4847
  %4849 = vmatmul.bf16.gmra.mxu0 %v4448
  %v4850 = vpop.f32.mrf.mxu0
  %v4851 = vadd.f32 %v4763, %v4850
  %v4852 = vpop.f32.mrf.mxu0
  %v4853 = vadd.f32 %v4765, %v4852
  %4854 = vmatmul.bf16.gmra.mxu0 %v4451
  %v4855 = vpop.f32.mrf.mxu0
  %v4856 = vadd.f32 %v4768, %v4855
  %v4857 = vpop.f32.mrf.mxu0
  %v4858 = vadd.f32 %v4770, %v4857
  %4859 = vmatmul.bf16.gmra.mxu0 %v4454
  %v4860 = vpop.f32.mrf.mxu0
  %v4861 = vadd.f32 %v4773, %v4860
  %v4862 = vpop.f32.mrf.mxu0
  %v4863 = vadd.f32 %v4775, %v4862
  %4864 = vmatmul.bf16.gmra.mxu0 %v4457
  %v4865 = vpop.f32.mrf.mxu0
  %v4866 = vadd.f32 %v4778, %v4865
  %v4867 = vpop.f32.mrf.mxu0
  %v4868 = vadd.f32 %v4780, %v4867
  %4869 = vmatmul.bf16.gmra.mxu0 %v4460
  %v4870 = vpop.f32.mrf.mxu0
  %v4871 = vadd.f32 %v4783, %v4870
  %v4872 = vpop.f32.mrf.mxu0
  %v4873 = vadd.f32 %v4785, %v4872
  %4874 = vmatmul.bf16.gmra.mxu0 %v4463
  %v4875 = vpop.f32.mrf.mxu0
  %v4876 = vadd.f32 %v4788, %v4875
  %v4877 = vpop.f32.mrf.mxu0
  %v4878 = vadd.f32 %v4790, %v4877
  %4879 = vmatmul.bf16.gmra.mxu0 %v4466
  %v4880 = vpop.f32.mrf.mxu0
  %v4881 = vadd.f32 %v4793, %v4880
  %v4882 = vpop.f32.mrf.mxu0
  %v4883 = vadd.f32 %v4795, %v4882
  %4884 = vmatmul.bf16.gmra.mxu0 %v4469
  %v4885 = vpop.f32.mrf.mxu0
  %v4886 = vadd.f32 %v4798, %v4885
  %v4887 = vpop.f32.mrf.mxu0
  %v4888 = vadd.f32 %v4800, %v4887
  %4889 = vmatmul.bf16.gmra.mxu0 %v4472
  %v4890 = vpop.f32.mrf.mxu0
  %v4891 = vadd.f32 %v4803, %v4890
  %v4892 = vpop.f32.mrf.mxu0
  %v4893 = vadd.f32 %v4805, %v4892
  %4894 = vmatmul.bf16.gmra.mxu0 %v4475
  %v4895 = vpop.f32.mrf.mxu0
  %v4896 = vadd.f32 %v4808, %v4895
  %v4897 = vpop.f32.mrf.mxu0
  %v4898 = vadd.f32 %v4810, %v4897
  %4899 = vmatmul.bf16.gmra.mxu0 %v4478
  %v4900 = vpop.f32.mrf.mxu0
  %v4901 = vadd.f32 %v4813, %v4900
  %v4902 = vpop.f32.mrf.mxu0
  %v4903 = vadd.f32 %v4815, %v4902
  %4904 = vmatmul.bf16.gmra.mxu0 %v4481
  %v4905 = vpop.f32.mrf.mxu0
  %v4906 = vadd.f32 %v4818, %v4905
  %v4907 = vpop.f32.mrf.mxu0
  %v4908 = vadd.f32 %v4820, %v4907
  %4909 = vmatmul.bf16.gmra.mxu0 %v4484
  %v4910 = vpop.f32.mrf.mxu0
  %v4911 = vadd.f32 %v4823, %v4910
  %v4912 = vpop.f32.mrf.mxu0
  %v4913 = vadd.f32 %v4825, %v4912
  %4914 = vmatmul.bf16.gmra.mxu0 %v4487
  %v4915 = vpop.f32.mrf.mxu0
  %v4916 = vadd.f32 %v4828, %v4915
  %v4917 = vpop.f32.mrf.mxu0
  %v4918 = vadd.f32 %v4830, %v4917
  %4919 = vmatmul.bf16.gmra.mxu0 %v4490
  %v4920 = vpop.f32.mrf.mxu0
  %v4921 = vadd.f32 %v4833, %v4920
  %v4922 = vpop.f32.mrf.mxu0
  %4923 = vdwg.mxu0
  %v4924 = vmax.f32 %v4590, %v4846
  %v4925 = vmax.f32 %v4592, %v4848
  %v4926 = vmax.f32 %v4595, %v4851
  %v4927 = vmax.f32 %v4597, %v4853
  %v4928 = vmax.f32 %v4600, %v4856
  %v4929 = vmax.f32 %v4602, %v4858
  %v4930 = vmax.f32 %v4605, %v4861
  %v4931 = vmax.f32 %v4607, %v4863
  %v4932 = vmax.f32 %v4610, %v4866
  %v4933 = vmax.f32 %v4612, %v4868
  %v4934 = vmax.f32 %v4615, %v4871
  %v4935 = vmax.f32 %v4617, %v4873
  %v4936 = vmax.f32 %v4620, %v4876
  %v4937 = vmax.f32 %v4622, %v4878
  %v4938 = vmax.f32 %v4625, %v4881
  %v4939 = vmax.f32 %v4627, %v4883
  %v4940 = vmax.f32 %v4630, %v4886
  %v4941 = vmax.f32 %v4632, %v4888
  %v4942 = vmax.f32 %v4635, %v4891
  %v4943 = vmax.f32 %v4637, %v4893
  %v4944 = vmax.f32 %v4640, %v4896
  %v4945 = vmax.f32 %v4642, %v4898
  %v4946 = vmax.f32 %v4645, %v4901
  %v4947 = vmax.f32 %v4647, %v4903
  %v4948 = vmax.f32 %v4650, %v4906
  %v4949 = vmax.f32 %v4652, %v4908
  %v4950 = vmax.f32 %v4655, %v4911
  %v4951 = vmax.f32 %v4657, %v4913
  %v4952 = vmax.f32 %v4660, %v4916
  %v4953 = vmax.f32 %v4662, %v4918
  %v4954 = vmax.f32 %v4665, %v4921
  %vm4986 = vcmask 1045504
  %v4987 = vrot.slane %v4924, 2
  %v4988 = vrot.slane %v4925, 2
  %v4989 = vsel %vm4986, %v4987, %v4988
  %v4990 = vrot.slane %v4926, 2
  %v4991 = vsel %vm4986, %v4988, %v4990
  %v4992 = vrot.slane %v4927, 2
  %v4993 = vsel %vm4986, %v4990, %v4992
  %v4994 = vrot.slane %v4928, 2
  %v4995 = vsel %vm4986, %v4992, %v4994
  %v4996 = vrot.slane %v4929, 2
  %v4997 = vsel %vm4986, %v4994, %v4996
  %v4998 = vrot.slane %v4930, 2
  %v4999 = vsel %vm4986, %v4996, %v4998
  %v5000 = vrot.slane %v4931, 2
  %v5001 = vsel %vm4986, %v4998, %v5000
  %v5002 = vrot.slane %v4932, 2
  %v5003 = vsel %vm4986, %v5000, %v5002
  %v5004 = vrot.slane %v4933, 2
  %v5005 = vsel %vm4986, %v5002, %v5004
  %v5006 = vrot.slane %v4934, 2
  %v5007 = vsel %vm4986, %v5004, %v5006
  %v5008 = vrot.slane %v4935, 2
  %v5009 = vsel %vm4986, %v5006, %v5008
  %v5010 = vrot.slane %v4936, 2
  %v5011 = vsel %vm4986, %v5008, %v5010
  %v5012 = vrot.slane %v4937, 2
  %v5013 = vsel %vm4986, %v5010, %v5012
  %v5014 = vrot.slane %v4938, 2
  %v5015 = vsel %vm4986, %v5012, %v5014
  %v5016 = vrot.slane %v4939, 2
  %v5017 = vsel %vm4986, %v5014, %v5016
  %v5018 = vrot.slane %v4940, 2
  %v5019 = vsel %vm4986, %v5016, %v5018
  %v5020 = vrot.slane %v4941, 2
  %v5021 = vsel %vm4986, %v5018, %v5020
  %v5022 = vrot.slane %v4942, 2
  %v5023 = vsel %vm4986, %v5020, %v5022
  %v5024 = vrot.slane %v4943, 2
  %v5025 = vsel %vm4986, %v5022, %v5024
  %v5026 = vrot.slane %v4944, 2
  %v5027 = vsel %vm4986, %v5024, %v5026
  %v5028 = vrot.slane %v4945, 2
  %v5029 = vsel %vm4986, %v5026, %v5028
  %v5030 = vrot.slane %v4946, 2
  %v5031 = vsel %vm4986, %v5028, %v5030
  %v5032 = vrot.slane %v4947, 2
  %v5033 = vsel %vm4986, %v5030, %v5032
  %v5034 = vrot.slane %v4948, 2
  %v5035 = vsel %vm4986, %v5032, %v5034
  %v5036 = vrot.slane %v4949, 2
  %v5037 = vsel %vm4986, %v5034, %v5036
  %v5038 = vrot.slane %v4950, 2
  %v5039 = vsel %vm4986, %v5036, %v5038
  %v5040 = vrot.slane %v4951, 2
  %v5041 = vsel %vm4986, %v5038, %v5040
  %v5042 = vrot.slane %v4952, 2
  %v5043 = vsel %vm4986, %v5040, %v5042
  %v5044 = vrot.slane %v4953, 2
  %v5045 = vsel %vm4986, %v5042, %v5044
  %v5046 = vrot.slane %v4954, 2
  %v5047 = vsel %vm4986, %v5044, %v5046
  %v5079 = vmax.f32 %v4924, %v4989
  %v5080 = vmax.f32 %v4925, %v4991
  %v5081 = vmax.f32 %v4926, %v4993
  %v5082 = vmax.f32 %v4927, %v4995
  %v5083 = vmax.f32 %v4928, %v4997
  %v5084 = vmax.f32 %v4929, %v4999
  %v5085 = vmax.f32 %v4930, %v5001
  %v5086 = vmax.f32 %v4931, %v5003
  %v5087 = vmax.f32 %v4932, %v5005
  %v5088 = vmax.f32 %v4933, %v5007
  %v5089 = vmax.f32 %v4934, %v5009
  %v5090 = vmax.f32 %v4935, %v5011
  %v5091 = vmax.f32 %v4936, %v5013
  %v5092 = vmax.f32 %v4937, %v5015
  %v5093 = vmax.f32 %v4938, %v5017
  %v5094 = vmax.f32 %v4939, %v5019
  %v5095 = vmax.f32 %v4940, %v5021
  %v5096 = vmax.f32 %v4941, %v5023
  %v5097 = vmax.f32 %v4942, %v5025
  %v5098 = vmax.f32 %v4943, %v5027
  %v5099 = vmax.f32 %v4944, %v5029
  %v5100 = vmax.f32 %v4945, %v5031
  %v5101 = vmax.f32 %v4946, %v5033
  %v5102 = vmax.f32 %v4947, %v5035
  %v5103 = vmax.f32 %v4948, %v5037
  %v5104 = vmax.f32 %v4949, %v5039
  %v5105 = vmax.f32 %v4950, %v5041
  %v5106 = vmax.f32 %v4951, %v5043
  %v5107 = vmax.f32 %v4952, %v5045
  %v5108 = vmax.f32 %v4953, %v5047
  %v5109 = vmax.f32 %v4954, %v5046
  %v5110 = vpack.c.bf16 %v5079, %v5079
  %v5111 = vpack.c.bf16 %v5080, %v5080
  %v5112 = vpack.c.bf16 %v5081, %v5081
  %v5113 = vpack.c.bf16 %v5082, %v5082
  %v5114 = vpack.c.bf16 %v5083, %v5083
  %v5115 = vpack.c.bf16 %v5084, %v5084
  %v5116 = vpack.c.bf16 %v5085, %v5085
  %v5117 = vpack.c.bf16 %v5086, %v5086
  %v5118 = vpack.c.bf16 %v5087, %v5087
  %v5119 = vpack.c.bf16 %v5088, %v5088
  %v5120 = vpack.c.bf16 %v5089, %v5089
  %v5121 = vpack.c.bf16 %v5090, %v5090
  %v5122 = vpack.c.bf16 %v5091, %v5091
  %v5123 = vpack.c.bf16 %v5092, %v5092
  %v5124 = vpack.c.bf16 %v5093, %v5093
  %v5125 = vpack.c.bf16 %v5094, %v5094
  %v5126 = vpack.c.bf16 %v5095, %v5095
  %v5127 = vpack.c.bf16 %v5096, %v5096
  %v5128 = vpack.c.bf16 %v5097, %v5097
  %v5129 = vpack.c.bf16 %v5098, %v5098
  %v5130 = vpack.c.bf16 %v5099, %v5099
  %v5131 = vpack.c.bf16 %v5100, %v5100
  %v5132 = vpack.c.bf16 %v5101, %v5101
  %v5133 = vpack.c.bf16 %v5102, %v5102
  %v5134 = vpack.c.bf16 %v5103, %v5103
  %v5135 = vpack.c.bf16 %v5104, %v5104
  %v5136 = vpack.c.bf16 %v5105, %v5105
  %v5137 = vpack.c.bf16 %v5106, %v5106
  %v5138 = vpack.c.bf16 %v5107, %v5107
  %v5139 = vpack.c.bf16 %v5108, %v5108
  %v5140 = vpack.c.bf16 %v5109, %v5109
  %v5170 = vunpack.c.l.b16 %v5110
  %v5171 = vunpack.c.l.b16 %v5111
  %v5172 = vunpack.c.l.b16 %v5112
  %v5173 = vunpack.c.l.b16 %v5113
  %v5174 = vunpack.c.l.b16 %v5114
  %v5175 = vunpack.c.l.b16 %v5115
  %v5176 = vunpack.c.l.b16 %v5116
  %v5177 = vunpack.c.l.b16 %v5117
  %v5178 = vunpack.c.l.b16 %v5118
  %v5179 = vunpack.c.l.b16 %v5119
  %v5180 = vunpack.c.l.b16 %v5120
  %v5181 = vunpack.c.l.b16 %v5121
  %v5182 = vunpack.c.l.b16 %v5122
  %v5183 = vunpack.c.l.b16 %v5123
  %v5184 = vunpack.c.l.b16 %v5124
  %v5185 = vunpack.c.l.b16 %v5125
  %v5186 = vunpack.c.l.b16 %v5126
  %v5187 = vunpack.c.l.b16 %v5127
  %v5188 = vunpack.c.l.b16 %v5128
  %v5189 = vunpack.c.l.b16 %v5129
  %v5190 = vunpack.c.l.b16 %v5130
  %v5191 = vunpack.c.l.b16 %v5131
  %v5192 = vunpack.c.l.b16 %v5132
  %v5193 = vunpack.c.l.b16 %v5133
  %v5194 = vunpack.c.l.b16 %v5134
  %v5195 = vunpack.c.l.b16 %v5135
  %v5196 = vunpack.c.l.b16 %v5136
  %v5197 = vunpack.c.l.b16 %v5137
  %v5198 = vunpack.c.l.b16 %v5138
  %v5199 = vpack.c.b16 %v5171, %v5170
  %v5200 = vpack.c.b16 %v5173, %v5172
  %v5201 = vpack.c.b16 %v5175, %v5174
  %v5202 = vpack.c.b16 %v5177, %v5176
  %v5203 = vpack.c.b16 %v5179, %v5178
  %v5204 = vpack.c.b16 %v5181, %v5180
  %v5205 = vpack.c.b16 %v5183, %v5182
  %v5206 = vpack.c.b16 %v5185, %v5184
  %v5207 = vpack.c.b16 %v5187, %v5186
  %v5208 = vpack.c.b16 %v5189, %v5188
  %v5209 = vpack.c.b16 %v5191, %v5190
  %v5210 = vpack.c.b16 %v5193, %v5192
  %v5211 = vpack.c.b16 %v5195, %v5194
  %v5212 = vpack.c.b16 %v5197, %v5196
  %v5213 = vpack.c.b16 %v5198, %v5198
  %v5214 = vrot.slane %v5199, 2
  %v5215 = vrot.slane %v5200, 2
  %v5216 = vsel %vm483, %v5214, %v5215
  %v5217 = vrot.slane %v5201, 2
  %v5218 = vsel %vm483, %v5215, %v5217
  %v5219 = vrot.slane %v5202, 2
  %v5220 = vsel %vm483, %v5217, %v5219
  %v5221 = vrot.slane %v5203, 2
  %v5222 = vsel %vm483, %v5219, %v5221
  %v5223 = vrot.slane %v5204, 2
  %v5224 = vsel %vm483, %v5221, %v5223
  %v5225 = vrot.slane %v5205, 2
  %v5226 = vsel %vm483, %v5223, %v5225
  %v5227 = vrot.slane %v5206, 2
  %v5228 = vsel %vm483, %v5225, %v5227
  %v5229 = vrot.slane %v5207, 2
  %v5230 = vsel %vm483, %v5227, %v5229
  %v5231 = vrot.slane %v5208, 2
  %v5232 = vsel %vm483, %v5229, %v5231
  %v5233 = vrot.slane %v5209, 2
  %v5234 = vsel %vm483, %v5231, %v5233
  %v5235 = vrot.slane %v5210, 2
  %v5236 = vsel %vm483, %v5233, %v5235
  %v5237 = vrot.slane %v5211, 2
  %v5238 = vsel %vm483, %v5235, %v5237
  %v5239 = vrot.slane %v5212, 2
  %v5240 = vsel %vm483, %v5237, %v5239
  %v5241 = vrot.slane %v5213, 2
  %v5242 = vsel %vm483, %v5239, %v5241
  %5243 = vrot.lane.b32.xlu0 %v5216, 80
  %v5244 = vpop.permute.xlu0 %5243
  %5245 = vrot.lane.b32.xlu0 %v5218, 80
  %v5246 = vpop.permute.xlu0 %5245
  %5247 = vrot.lane.b32.xlu0 %v5220, 80
  %v5248 = vpop.permute.xlu0 %5247
  %5249 = vrot.lane.b32.xlu0 %v5222, 80
  %v5250 = vpop.permute.xlu0 %5249
  %5251 = vrot.lane.b32.xlu0 %v5224, 80
  %v5252 = vpop.permute.xlu0 %5251
  %5253 = vrot.lane.b32.xlu0 %v5226, 80
  %v5254 = vpop.permute.xlu0 %5253
  %5255 = vrot.lane.b32.xlu0 %v5228, 80
  %v5256 = vpop.permute.xlu0 %5255
  %5257 = vrot.lane.b32.xlu0 %v5230, 80
  %v5258 = vpop.permute.xlu0 %5257
  %5259 = vrot.lane.b32.xlu0 %v5232, 80
  %v5260 = vpop.permute.xlu0 %5259
  %5261 = vrot.lane.b32.xlu0 %v5234, 80
  %v5262 = vpop.permute.xlu0 %5261
  %5263 = vrot.lane.b32.xlu0 %v5236, 80
  %v5264 = vpop.permute.xlu0 %5263
  %5265 = vrot.lane.b32.xlu0 %v5238, 80
  %v5266 = vpop.permute.xlu0 %5265
  %5267 = vrot.lane.b32.xlu0 %v5240, 80
  %v5268 = vpop.permute.xlu0 %5267
  %5269 = vrot.lane.b32.xlu0 %v5242, 80
  %v5270 = vpop.permute.xlu0 %5269
  %5271 = vrot.lane.b32.xlu0 %v5241, 80
  %v5272 = vpop.permute.xlu0 %5271
  %v5274 = vunpack.c.l.b16 %v5139
  %v5275 = vpack.c.b16 %v5172, %v5171
  %v5276 = vpack.c.b16 %v5174, %v5173
  %v5277 = vpack.c.b16 %v5176, %v5175
  %v5278 = vpack.c.b16 %v5178, %v5177
  %v5279 = vpack.c.b16 %v5180, %v5179
  %v5280 = vpack.c.b16 %v5182, %v5181
  %v5281 = vpack.c.b16 %v5184, %v5183
  %v5282 = vpack.c.b16 %v5186, %v5185
  %v5283 = vpack.c.b16 %v5188, %v5187
  %v5284 = vpack.c.b16 %v5190, %v5189
  %v5285 = vpack.c.b16 %v5192, %v5191
  %v5286 = vpack.c.b16 %v5194, %v5193
  %v5287 = vpack.c.b16 %v5196, %v5195
  %v5288 = vpack.c.b16 %v5198, %v5197
  %v5289 = vpack.c.b16 %v5274, %v5274
  %5290 = vrot.lane.b32.xlu0 %v5275, 32
  %v5291 = vpop.permute.xlu0 %5290
  %5292 = vrot.lane.b32.xlu0 %v5276, 32
  %v5293 = vpop.permute.xlu0 %5292
  %5294 = vrot.lane.b32.xlu0 %v5277, 32
  %v5295 = vpop.permute.xlu0 %5294
  %5296 = vrot.lane.b32.xlu0 %v5278, 32
  %v5297 = vpop.permute.xlu0 %5296
  %5298 = vrot.lane.b32.xlu0 %v5279, 32
  %v5299 = vpop.permute.xlu0 %5298
  %5300 = vrot.lane.b32.xlu0 %v5280, 32
  %v5301 = vpop.permute.xlu0 %5300
  %5302 = vrot.lane.b32.xlu0 %v5281, 32
  %v5303 = vpop.permute.xlu0 %5302
  %5304 = vrot.lane.b32.xlu0 %v5282, 32
  %v5305 = vpop.permute.xlu0 %5304
  %5306 = vrot.lane.b32.xlu0 %v5283, 32
  %v5307 = vpop.permute.xlu0 %5306
  %5308 = vrot.lane.b32.xlu0 %v5284, 32
  %v5309 = vpop.permute.xlu0 %5308
  %5310 = vrot.lane.b32.xlu0 %v5285, 32
  %v5311 = vpop.permute.xlu0 %5310
  %5312 = vrot.lane.b32.xlu0 %v5286, 32
  %v5313 = vpop.permute.xlu0 %5312
  %5314 = vrot.lane.b32.xlu0 %v5287, 32
  %v5315 = vpop.permute.xlu0 %5314
  %5316 = vrot.lane.b32.xlu0 %v5288, 32
  %v5317 = vpop.permute.xlu0 %5316
  %5318 = vrot.lane.b32.xlu0 %v5289, 32
  %v5319 = vpop.permute.xlu0 %5318
  %v5320 = vrot.slane %v5275, 2
  %v5321 = vrot.slane %v5276, 2
  %v5322 = vsel %vm483, %v5320, %v5321
  %v5323 = vrot.slane %v5277, 2
  %v5324 = vsel %vm483, %v5321, %v5323
  %v5325 = vrot.slane %v5278, 2
  %v5326 = vsel %vm483, %v5323, %v5325
  %v5327 = vrot.slane %v5279, 2
  %v5328 = vsel %vm483, %v5325, %v5327
  %v5329 = vrot.slane %v5280, 2
  %v5330 = vsel %vm483, %v5327, %v5329
  %v5331 = vrot.slane %v5281, 2
  %v5332 = vsel %vm483, %v5329, %v5331
  %v5333 = vrot.slane %v5282, 2
  %v5334 = vsel %vm483, %v5331, %v5333
  %v5335 = vrot.slane %v5283, 2
  %v5336 = vsel %vm483, %v5333, %v5335
  %v5337 = vrot.slane %v5284, 2
  %v5338 = vsel %vm483, %v5335, %v5337
  %v5339 = vrot.slane %v5285, 2
  %v5340 = vsel %vm483, %v5337, %v5339
  %v5341 = vrot.slane %v5286, 2
  %v5342 = vsel %vm483, %v5339, %v5341
  %v5343 = vrot.slane %v5287, 2
  %v5344 = vsel %vm483, %v5341, %v5343
  %v5345 = vrot.slane %v5288, 2
  %v5346 = vsel %vm483, %v5343, %v5345
  %v5347 = vrot.slane %v5289, 2
  %v5348 = vsel %vm483, %v5345, %v5347
  %5349 = vrot.lane.b32.xlu0 %v5322, 112
  %v5350 = vpop.permute.xlu0 %5349
  %5351 = vrot.lane.b32.xlu0 %v5324, 112
  %v5352 = vpop.permute.xlu0 %5351
  %5353 = vrot.lane.b32.xlu0 %v5326, 112
  %v5354 = vpop.permute.xlu0 %5353
  %5355 = vrot.lane.b32.xlu0 %v5328, 112
  %v5356 = vpop.permute.xlu0 %5355
  %5357 = vrot.lane.b32.xlu0 %v5330, 112
  %v5358 = vpop.permute.xlu0 %5357
  %5359 = vrot.lane.b32.xlu0 %v5332, 112
  %v5360 = vpop.permute.xlu0 %5359
  %5361 = vrot.lane.b32.xlu0 %v5334, 112
  %v5362 = vpop.permute.xlu0 %5361
  %5363 = vrot.lane.b32.xlu0 %v5336, 112
  %v5364 = vpop.permute.xlu0 %5363
  %5365 = vrot.lane.b32.xlu0 %v5338, 112
  %v5366 = vpop.permute.xlu0 %5365
  %5367 = vrot.lane.b32.xlu0 %v5340, 112
  %v5368 = vpop.permute.xlu0 %5367
  %5369 = vrot.lane.b32.xlu0 %v5342, 112
  %v5370 = vpop.permute.xlu0 %5369
  %5371 = vrot.lane.b32.xlu0 %v5344, 112
  %v5372 = vpop.permute.xlu0 %5371
  %5373 = vrot.lane.b32.xlu0 %v5346, 112
  %v5374 = vpop.permute.xlu0 %5373
  %5375 = vrot.lane.b32.xlu0 %v5348, 112
  %v5376 = vpop.permute.xlu0 %5375
  %5377 = vrot.lane.b32.xlu0 %v5347, 112
  %v5378 = vpop.permute.xlu0 %5377
  %v5380 = vunpack.c.l.b16 %v5140
  %v5381 = vpack.c.b16 %v5274, %v5198
  %v5382 = vpack.c.b16 %v5380, %v5380
  %5383 = vrot.lane.b32.xlu0 %v5200, 64
  %v5384 = vpop.permute.xlu0 %5383
  %5385 = vrot.lane.b32.xlu0 %v5201, 64
  %v5386 = vpop.permute.xlu0 %5385
  %5387 = vrot.lane.b32.xlu0 %v5202, 64
  %v5388 = vpop.permute.xlu0 %5387
  %5389 = vrot.lane.b32.xlu0 %v5203, 64
  %v5390 = vpop.permute.xlu0 %5389
  %5391 = vrot.lane.b32.xlu0 %v5204, 64
  %v5392 = vpop.permute.xlu0 %5391
  %5393 = vrot.lane.b32.xlu0 %v5205, 64
  %v5394 = vpop.permute.xlu0 %5393
  %5395 = vrot.lane.b32.xlu0 %v5206, 64
  %v5396 = vpop.permute.xlu0 %5395
  %5397 = vrot.lane.b32.xlu0 %v5207, 64
  %v5398 = vpop.permute.xlu0 %5397
  %5399 = vrot.lane.b32.xlu0 %v5208, 64
  %v5400 = vpop.permute.xlu0 %5399
  %5401 = vrot.lane.b32.xlu0 %v5209, 64
  %v5402 = vpop.permute.xlu0 %5401
  %5403 = vrot.lane.b32.xlu0 %v5210, 64
  %v5404 = vpop.permute.xlu0 %5403
  %5405 = vrot.lane.b32.xlu0 %v5211, 64
  %v5406 = vpop.permute.xlu0 %5405
  %5407 = vrot.lane.b32.xlu0 %v5212, 64
  %v5408 = vpop.permute.xlu0 %5407
  %5409 = vrot.lane.b32.xlu0 %v5381, 64
  %v5410 = vpop.permute.xlu0 %5409
  %5411 = vrot.lane.b32.xlu0 %v5382, 64
  %v5412 = vpop.permute.xlu0 %5411
  %v5415 = vsel %vm3153, %v5199, %v5244
  %v5419 = vsel %vm3153, %v5200, %v5246
  %v5423 = vsel %vm3153, %v5201, %v5248
  %v5427 = vsel %vm3153, %v5202, %v5250
  %v5431 = vsel %vm3153, %v5203, %v5252
  %v5435 = vsel %vm3153, %v5204, %v5254
  %v5439 = vsel %vm3153, %v5205, %v5256
  %v5443 = vsel %vm3153, %v5206, %v5258
  %v5447 = vsel %vm3153, %v5207, %v5260
  %v5451 = vsel %vm3153, %v5208, %v5262
  %v5455 = vsel %vm3153, %v5209, %v5264
  %v5459 = vsel %vm3153, %v5210, %v5266
  %v5463 = vsel %vm3153, %v5211, %v5268
  %v5467 = vsel %vm3153, %v5212, %v5270
  %v5471 = vsel %vm3153, %v5213, %v5272
  %v5474 = vsel %vm613, %v5244, %v5291
  %v5476 = vsel %vm613, %v5246, %v5293
  %v5478 = vsel %vm613, %v5248, %v5295
  %v5480 = vsel %vm613, %v5250, %v5297
  %v5482 = vsel %vm613, %v5252, %v5299
  %v5484 = vsel %vm613, %v5254, %v5301
  %v5486 = vsel %vm613, %v5256, %v5303
  %v5488 = vsel %vm613, %v5258, %v5305
  %v5490 = vsel %vm613, %v5260, %v5307
  %v5492 = vsel %vm613, %v5262, %v5309
  %v5494 = vsel %vm613, %v5264, %v5311
  %v5496 = vsel %vm613, %v5266, %v5313
  %v5498 = vsel %vm613, %v5268, %v5315
  %v5500 = vsel %vm613, %v5270, %v5317
  %v5502 = vsel %vm613, %v5272, %v5319
  %vm5503 = vcmask 916480
  %v5505 = vsel %vm5503, %v5474, %v5350
  %v5508 = vsel %vm5503, %v5476, %v5352
  %v5511 = vsel %vm5503, %v5478, %v5354
  %v5514 = vsel %vm5503, %v5480, %v5356
  %v5517 = vsel %vm5503, %v5482, %v5358
  %v5520 = vsel %vm5503, %v5484, %v5360
  %v5523 = vsel %vm5503, %v5486, %v5362
  %v5526 = vsel %vm5503, %v5488, %v5364
  %v5529 = vsel %vm5503, %v5490, %v5366
  %v5532 = vsel %vm5503, %v5492, %v5368
  %v5535 = vsel %vm5503, %v5494, %v5370
  %v5538 = vsel %vm5503, %v5496, %v5372
  %v5541 = vsel %vm5503, %v5498, %v5374
  %v5544 = vsel %vm5503, %v5500, %v5376
  %v5547 = vsel %vm5503, %v5502, %v5378
  %v5550 = vsel %vm564, %v5350, %v5384
  %v5553 = vsel %vm564, %v5352, %v5386
  %v5556 = vsel %vm564, %v5354, %v5388
  %v5559 = vsel %vm564, %v5356, %v5390
  %v5562 = vsel %vm564, %v5358, %v5392
  %v5565 = vsel %vm564, %v5360, %v5394
  %v5568 = vsel %vm564, %v5362, %v5396
  %v5571 = vsel %vm564, %v5364, %v5398
  %v5574 = vsel %vm564, %v5366, %v5400
  %v5577 = vsel %vm564, %v5368, %v5402
  %v5580 = vsel %vm564, %v5370, %v5404
  %v5583 = vsel %vm564, %v5372, %v5406
  %v5586 = vsel %vm564, %v5374, %v5408
  %v5589 = vsel %vm564, %v5376, %v5410
  %v5592 = vsel %vm564, %v5378, %v5412
  %v5594 = vld [vmem:[%s9] sm:$0xf]
  %v5595 = vld [vmem:[%s9 + $0x4] sm:$0xf]
  %v5596 = vld [vmem:[%s9 + $0x8] sm:$0xf]
  %v5597 = vld [vmem:[%s9 + $0xc] sm:$0xf]
  %v5598 = vld [vmem:[%s9 + $0x10] sm:$0xf]
  %v5599 = vld [vmem:[%s9 + $0x14] sm:$0xf]
  %v5600 = vld [vmem:[%s9 + $0x18] sm:$0xf]
  %v5601 = vld [vmem:[%s9 + $0x1c] sm:$0xf]
  %v5602 = vld [vmem:[%s9 + $0x20] sm:$0xf]
  %v5603 = vld [vmem:[%s9 + $0x24] sm:$0xf]
  %v5604 = vld [vmem:[%s9 + $0x28] sm:$0xf]
  %v5605 = vld [vmem:[%s9 + $0x2c] sm:$0xf]
  %v5606 = vld [vmem:[%s9 + $0x30] sm:$0xf]
  %v5607 = vld [vmem:[%s9 + $0x34] sm:$0xf]
  %v5608 = vld [vmem:[%s9 + $0x38] sm:$0xf]
  %v5609 = vld [vmem:[%s9 + $0x3c] sm:$0xf]
  %v5610 = vld [vmem:[%s9 + $0x40] sm:$0xf]
  %v5611 = vld [vmem:[%s9 + $0x44] sm:$0xf]
  %v5612 = vld [vmem:[%s9 + $0x48] sm:$0xf]
  %v5613 = vld [vmem:[%s9 + $0x4c] sm:$0xf]
  %v5614 = vld [vmem:[%s9 + $0x50] sm:$0xf]
  %v5615 = vld [vmem:[%s9 + $0x54] sm:$0xf]
  %v5616 = vld [vmem:[%s9 + $0x58] sm:$0xf]
  %v5617 = vld [vmem:[%s9 + $0x5c] sm:$0xf]
  %v5618 = vld [vmem:[%s9 + $0x60] sm:$0xf]
  %v5619 = vld [vmem:[%s9 + $0x64] sm:$0xf]
  %v5620 = vld [vmem:[%s9 + $0x68] sm:$0xf]
  %v5621 = vld [vmem:[%s9 + $0x6c] sm:$0xf]
  %v5622 = vld [vmem:[%s9 + $0x70] sm:$0xf]
  %v5623 = vld [vmem:[%s9 + $0x74] sm:$0xf]
  %v5624 = vld [vmem:[%s9 + $0x78] sm:$0xf]
  %v5625 = vld [vmem:[%s9 + $0x7c] sm:$0xf]
  %v5626 = vld [vmem:[%s9 + $0x80] sm:$0xf]
  %v5627 = vld [vmem:[%s9 + $0x84] sm:$0xf]
  %v5628 = vld [vmem:[%s9 + $0x88] sm:$0xf]
  %v5629 = vld [vmem:[%s9 + $0x8c] sm:$0xf]
  %v5630 = vld [vmem:[%s9 + $0x90] sm:$0xf]
  %v5631 = vld [vmem:[%s9 + $0x94] sm:$0xf]
  %v5632 = vld [vmem:[%s9 + $0x98] sm:$0xf]
  %v5633 = vld [vmem:[%s9 + $0x9c] sm:$0xf]
  %v5634 = vld [vmem:[%s9 + $0xa0] sm:$0xf]
  %v5635 = vld [vmem:[%s9 + $0xa4] sm:$0xf]
  %v5636 = vld [vmem:[%s9 + $0xa8] sm:$0xf]
  %v5637 = vld [vmem:[%s9 + $0xac] sm:$0xf]
  %v5638 = vld [vmem:[%s9 + $0xb0] sm:$0xf]
  %v5639 = vld [vmem:[%s9 + $0xb4] sm:$0xf]
  %v5640 = vld [vmem:[%s9 + $0xb8] sm:$0xf]
  %v5641 = vld [vmem:[%s9 + $0xbc] sm:$0xf]
  %v5642 = vld [vmem:[%s9 + $0xc0] sm:$0xf]
  %v5643 = vld [vmem:[%s9 + $0xc4] sm:$0xf]
  %v5644 = vld [vmem:[%s10] sm:$0x1]
  %v5646 = vperm.slane %v5644, 0
  %v5698 = vunpack.c.l.b16 %v5594
  %v5699 = vunpack.c.l.b16 %v5595
  %v5700 = vunpack.c.l.b16 %v5596
  %v5701 = vunpack.c.l.b16 %v5597
  %v5702 = vunpack.c.l.b16 %v5598
  %v5703 = vunpack.c.l.b16 %v5599
  %v5704 = vunpack.c.l.b16 %v5600
  %v5705 = vunpack.c.l.b16 %v5601
  %v5706 = vunpack.c.l.b16 %v5602
  %v5707 = vunpack.c.l.b16 %v5603
  %v5708 = vunpack.c.l.b16 %v5604
  %v5709 = vunpack.c.l.b16 %v5605
  %v5710 = vunpack.c.l.b16 %v5606
  %v5711 = vunpack.c.l.b16 %v5607
  %v5712 = vunpack.c.l.b16 %v5608
  %v5713 = vunpack.c.l.b16 %v5609
  %v5714 = vunpack.c.l.b16 %v5610
  %v5715 = vunpack.c.l.b16 %v5611
  %v5716 = vunpack.c.l.b16 %v5612
  %v5717 = vunpack.c.l.b16 %v5613
  %v5718 = vunpack.c.l.b16 %v5614
  %v5719 = vunpack.c.l.b16 %v5615
  %v5720 = vunpack.c.l.b16 %v5616
  %v5721 = vunpack.c.l.b16 %v5617
  %v5722 = vunpack.c.l.b16 %v5618
  %v5723 = vunpack.c.l.b16 %v5619
  %v5724 = vunpack.c.l.b16 %v5620
  %v5725 = vunpack.c.l.b16 %v5621
  %v5726 = vunpack.c.l.b16 %v5622
  %v5727 = vunpack.c.l.b16 %v5623
  %v5728 = vunpack.c.l.b16 %v5624
  %v5729 = vunpack.c.l.b16 %v5625
  %v5730 = vunpack.c.l.b16 %v5626
  %v5731 = vunpack.c.l.b16 %v5627
  %v5732 = vunpack.c.l.b16 %v5628
  %v5733 = vunpack.c.l.b16 %v5629
  %v5734 = vunpack.c.l.b16 %v5630
  %v5735 = vunpack.c.l.b16 %v5631
  %v5736 = vunpack.c.l.b16 %v5632
  %v5737 = vunpack.c.l.b16 %v5633
  %v5738 = vunpack.c.l.b16 %v5634
  %v5739 = vunpack.c.l.b16 %v5635
  %v5740 = vunpack.c.l.b16 %v5636
  %v5741 = vunpack.c.l.b16 %v5637
  %v5742 = vunpack.c.l.b16 %v5638
  %v5743 = vunpack.c.l.b16 %v5639
  %v5744 = vunpack.c.l.b16 %v5640
  %v5745 = vunpack.c.l.b16 %v5641
  %v5746 = vunpack.c.l.b16 %v5642
  %v5747 = vunpack.c.l.b16 %v5643
  %v5748 = vpack.c.b16 %v5699, %v5698
  %v5749 = vpack.c.b16 %v5701, %v5700
  %v5750 = vpack.c.b16 %v5703, %v5702
  %v5751 = vpack.c.b16 %v5705, %v5704
  %v5752 = vpack.c.b16 %v5707, %v5706
  %v5753 = vpack.c.b16 %v5709, %v5708
  %v5754 = vpack.c.b16 %v5711, %v5710
  %v5755 = vpack.c.b16 %v5713, %v5712
  %v5756 = vpack.c.b16 %v5715, %v5714
  %v5757 = vpack.c.b16 %v5717, %v5716
  %v5758 = vpack.c.b16 %v5719, %v5718
  %v5759 = vpack.c.b16 %v5721, %v5720
  %v5760 = vpack.c.b16 %v5723, %v5722
  %v5761 = vpack.c.b16 %v5725, %v5724
  %v5762 = vpack.c.b16 %v5727, %v5726
  %v5763 = vpack.c.b16 %v5729, %v5728
  %v5764 = vpack.c.b16 %v5731, %v5730
  %v5765 = vpack.c.b16 %v5733, %v5732
  %v5766 = vpack.c.b16 %v5735, %v5734
  %v5767 = vpack.c.b16 %v5737, %v5736
  %v5768 = vpack.c.b16 %v5739, %v5738
  %v5769 = vpack.c.b16 %v5741, %v5740
  %v5770 = vpack.c.b16 %v5743, %v5742
  %v5771 = vpack.c.b16 %v5745, %v5744
  %v5772 = vpack.c.b16 %v5747, %v5746
  %vm5798 = vcmask 130048
  %v5799 = vsel %vm5798, %v5384, 0
  %v5801 = vsel %vm5798, %v5386, 0
  %v5803 = vsel %vm5798, %v5388, 0
  %v5805 = vsel %vm5798, %v5390, 0
  %v5807 = vsel %vm5798, %v5392, 0
  %v5809 = vsel %vm5798, %v5394, 0
  %v5811 = vsel %vm5798, %v5396, 0
  %v5813 = vsel %vm5798, %v5398, 0
  %v5815 = vsel %vm5798, %v5400, 0
  %v5817 = vsel %vm5798, %v5402, 0
  %v5819 = vsel %vm5798, %v5404, 0
  %v5821 = vsel %vm5798, %v5406, 0
  %v5823 = vsel %vm5798, %v5408, 0
  %v5825 = vsel %vm5798, %v5410, 0
  %v5827 = vsel %vm5798, %v5412, 0
  %5829 = vmatpush.bf16.msra.mxu0 %v5755
  %5830 = vmatpush.bf16.msra.mxu0 %v5754
  %5831 = vmatpush.bf16.msra.mxu0 %v5753
  %5832 = vmatpush.bf16.msra.mxu0 %v5752
  %5833 = vmatpush.bf16.msra.mxu0 %v5751
  %5834 = vmatpush.bf16.msra.mxu0 %v5750
  %5835 = vmatpush.bf16.msra.mxu0 %v5749
  %5836 = vmatpush.bf16.msra.mxu0 %v5748
  %5837 = vmatmul.bf16.gmra.mxu0 %v5415
  %v5838 = vpop.f32.mrf.mxu0
  %v5839 = vadd.f32 %v5646, %v5838
  %v5840 = vpop.f32.mrf.mxu0
  %v5841 = vadd.f32 %v5646, %v5840
  %5842 = vmatmul.bf16.gmra.mxu0 %v5419
  %v5843 = vpop.f32.mrf.mxu0
  %v5844 = vadd.f32 %v5646, %v5843
  %v5845 = vpop.f32.mrf.mxu0
  %v5846 = vadd.f32 %v5646, %v5845
  %5847 = vmatmul.bf16.gmra.mxu0 %v5423
  %v5848 = vpop.f32.mrf.mxu0
  %v5849 = vadd.f32 %v5646, %v5848
  %v5850 = vpop.f32.mrf.mxu0
  %v5851 = vadd.f32 %v5646, %v5850
  %5852 = vmatmul.bf16.gmra.mxu0 %v5427
  %v5853 = vpop.f32.mrf.mxu0
  %v5854 = vadd.f32 %v5646, %v5853
  %v5855 = vpop.f32.mrf.mxu0
  %v5856 = vadd.f32 %v5646, %v5855
  %5857 = vmatmul.bf16.gmra.mxu0 %v5431
  %v5858 = vpop.f32.mrf.mxu0
  %v5859 = vadd.f32 %v5646, %v5858
  %v5860 = vpop.f32.mrf.mxu0
  %v5861 = vadd.f32 %v5646, %v5860
  %5862 = vmatmul.bf16.gmra.mxu0 %v5435
  %v5863 = vpop.f32.mrf.mxu0
  %v5864 = vadd.f32 %v5646, %v5863
  %v5865 = vpop.f32.mrf.mxu0
  %v5866 = vadd.f32 %v5646, %v5865
  %5867 = vmatmul.bf16.gmra.mxu0 %v5439
  %v5868 = vpop.f32.mrf.mxu0
  %v5869 = vadd.f32 %v5646, %v5868
  %v5870 = vpop.f32.mrf.mxu0
  %v5871 = vadd.f32 %v5646, %v5870
  %5872 = vmatmul.bf16.gmra.mxu0 %v5443
  %v5873 = vpop.f32.mrf.mxu0
  %v5874 = vadd.f32 %v5646, %v5873
  %v5875 = vpop.f32.mrf.mxu0
  %v5876 = vadd.f32 %v5646, %v5875
  %5877 = vmatmul.bf16.gmra.mxu0 %v5447
  %v5878 = vpop.f32.mrf.mxu0
  %v5879 = vadd.f32 %v5646, %v5878
  %v5880 = vpop.f32.mrf.mxu0
  %v5881 = vadd.f32 %v5646, %v5880
  %5882 = vmatmul.bf16.gmra.mxu0 %v5451
  %v5883 = vpop.f32.mrf.mxu0
  %v5884 = vadd.f32 %v5646, %v5883
  %v5885 = vpop.f32.mrf.mxu0
  %v5886 = vadd.f32 %v5646, %v5885
  %5887 = vmatmul.bf16.gmra.mxu0 %v5455
  %v5888 = vpop.f32.mrf.mxu0
  %v5889 = vadd.f32 %v5646, %v5888
  %v5890 = vpop.f32.mrf.mxu0
  %v5891 = vadd.f32 %v5646, %v5890
  %5892 = vmatmul.bf16.gmra.mxu0 %v5459
  %v5893 = vpop.f32.mrf.mxu0
  %v5894 = vadd.f32 %v5646, %v5893
  %v5895 = vpop.f32.mrf.mxu0
  %v5896 = vadd.f32 %v5646, %v5895
  %5897 = vmatmul.bf16.gmra.mxu0 %v5463
  %v5898 = vpop.f32.mrf.mxu0
  %v5899 = vadd.f32 %v5646, %v5898
  %v5900 = vpop.f32.mrf.mxu0
  %v5901 = vadd.f32 %v5646, %v5900
  %5902 = vmatmul.bf16.gmra.mxu0 %v5467
  %v5903 = vpop.f32.mrf.mxu0
  %v5904 = vadd.f32 %v5646, %v5903
  %v5905 = vpop.f32.mrf.mxu0
  %v5906 = vadd.f32 %v5646, %v5905
  %5907 = vmatmul.bf16.gmra.mxu0 %v5471
  %v5908 = vpop.f32.mrf.mxu0
  %v5909 = vadd.f32 %v5646, %v5908
  %v5910 = vpop.f32.mrf.mxu0
  %5911 = vdwg.mxu0
  %5912 = vmatpush.bf16.msra.mxu0 %v5763
  %5913 = vmatpush.bf16.msra.mxu0 %v5762
  %5914 = vmatpush.bf16.msra.mxu0 %v5761
  %5915 = vmatpush.bf16.msra.mxu0 %v5760
  %5916 = vmatpush.bf16.msra.mxu0 %v5759
  %5917 = vmatpush.bf16.msra.mxu0 %v5758
  %5918 = vmatpush.bf16.msra.mxu0 %v5757
  %5919 = vmatpush.bf16.msra.mxu0 %v5756
  %5920 = vmatmul.bf16.gmra.mxu0 %v5505
  %v5921 = vpop.f32.mrf.mxu0
  %v5922 = vadd.f32 %v5839, %v5921
  %v5923 = vpop.f32.mrf.mxu0
  %v5924 = vadd.f32 %v5841, %v5923
  %5925 = vmatmul.bf16.gmra.mxu0 %v5508
  %v5926 = vpop.f32.mrf.mxu0
  %v5927 = vadd.f32 %v5844, %v5926
  %v5928 = vpop.f32.mrf.mxu0
  %v5929 = vadd.f32 %v5846, %v5928
  %5930 = vmatmul.bf16.gmra.mxu0 %v5511
  %v5931 = vpop.f32.mrf.mxu0
  %v5932 = vadd.f32 %v5849, %v5931
  %v5933 = vpop.f32.mrf.mxu0
  %v5934 = vadd.f32 %v5851, %v5933
  %5935 = vmatmul.bf16.gmra.mxu0 %v5514
  %v5936 = vpop.f32.mrf.mxu0
  %v5937 = vadd.f32 %v5854, %v5936
  %v5938 = vpop.f32.mrf.mxu0
  %v5939 = vadd.f32 %v5856, %v5938
  %5940 = vmatmul.bf16.gmra.mxu0 %v5517
  %v5941 = vpop.f32.mrf.mxu0
  %v5942 = vadd.f32 %v5859, %v5941
  %v5943 = vpop.f32.mrf.mxu0
  %v5944 = vadd.f32 %v5861, %v5943
  %5945 = vmatmul.bf16.gmra.mxu0 %v5520
  %v5946 = vpop.f32.mrf.mxu0
  %v5947 = vadd.f32 %v5864, %v5946
  %v5948 = vpop.f32.mrf.mxu0
  %v5949 = vadd.f32 %v5866, %v5948
  %5950 = vmatmul.bf16.gmra.mxu0 %v5523
  %v5951 = vpop.f32.mrf.mxu0
  %v5952 = vadd.f32 %v5869, %v5951
  %v5953 = vpop.f32.mrf.mxu0
  %v5954 = vadd.f32 %v5871, %v5953
  %5955 = vmatmul.bf16.gmra.mxu0 %v5526
  %v5956 = vpop.f32.mrf.mxu0
  %v5957 = vadd.f32 %v5874, %v5956
  %v5958 = vpop.f32.mrf.mxu0
  %v5959 = vadd.f32 %v5876, %v5958
  %5960 = vmatmul.bf16.gmra.mxu0 %v5529
  %v5961 = vpop.f32.mrf.mxu0
  %v5962 = vadd.f32 %v5879, %v5961
  %v5963 = vpop.f32.mrf.mxu0
  %v5964 = vadd.f32 %v5881, %v5963
  %5965 = vmatmul.bf16.gmra.mxu0 %v5532
  %v5966 = vpop.f32.mrf.mxu0
  %v5967 = vadd.f32 %v5884, %v5966
  %v5968 = vpop.f32.mrf.mxu0
  %v5969 = vadd.f32 %v5886, %v5968
  %5970 = vmatmul.bf16.gmra.mxu0 %v5535
  %v5971 = vpop.f32.mrf.mxu0
  %v5972 = vadd.f32 %v5889, %v5971
  %v5973 = vpop.f32.mrf.mxu0
  %v5974 = vadd.f32 %v5891, %v5973
  %5975 = vmatmul.bf16.gmra.mxu0 %v5538
  %v5976 = vpop.f32.mrf.mxu0
  %v5977 = vadd.f32 %v5894, %v5976
  %v5978 = vpop.f32.mrf.mxu0
  %v5979 = vadd.f32 %v5896, %v5978
  %5980 = vmatmul.bf16.gmra.mxu0 %v5541
  %v5981 = vpop.f32.mrf.mxu0
  %v5982 = vadd.f32 %v5899, %v5981
  %v5983 = vpop.f32.mrf.mxu0
  %v5984 = vadd.f32 %v5901, %v5983
  %5985 = vmatmul.bf16.gmra.mxu0 %v5544
  %v5986 = vpop.f32.mrf.mxu0
  %v5987 = vadd.f32 %v5904, %v5986
  %v5988 = vpop.f32.mrf.mxu0
  %v5989 = vadd.f32 %v5906, %v5988
  %5990 = vmatmul.bf16.gmra.mxu0 %v5547
  %v5991 = vpop.f32.mrf.mxu0
  %v5992 = vadd.f32 %v5909, %v5991
  %v5993 = vpop.f32.mrf.mxu0
  %5994 = vdwg.mxu0
  %5995 = vmatpush.bf16.msra.mxu0 %v5771
  %5996 = vmatpush.bf16.msra.mxu0 %v5770
  %5997 = vmatpush.bf16.msra.mxu0 %v5769
  %5998 = vmatpush.bf16.msra.mxu0 %v5768
  %5999 = vmatpush.bf16.msra.mxu0 %v5767
  %6000 = vmatpush.bf16.msra.mxu0 %v5766
  %6001 = vmatpush.bf16.msra.mxu0 %v5765
  %6002 = vmatpush.bf16.msra.mxu0 %v5764
  %6003 = vmatmul.bf16.gmra.mxu0 %v5550
  %v6004 = vpop.f32.mrf.mxu0
  %v6005 = vadd.f32 %v5922, %v6004
  %v6006 = vpop.f32.mrf.mxu0
  %v6007 = vadd.f32 %v5924, %v6006
  %6008 = vmatmul.bf16.gmra.mxu0 %v5553
  %v6009 = vpop.f32.mrf.mxu0
  %v6010 = vadd.f32 %v5927, %v6009
  %v6011 = vpop.f32.mrf.mxu0
  %v6012 = vadd.f32 %v5929, %v6011
  %6013 = vmatmul.bf16.gmra.mxu0 %v5556
  %v6014 = vpop.f32.mrf.mxu0
  %v6015 = vadd.f32 %v5932, %v6014
  %v6016 = vpop.f32.mrf.mxu0
  %v6017 = vadd.f32 %v5934, %v6016
  %6018 = vmatmul.bf16.gmra.mxu0 %v5559
  %v6019 = vpop.f32.mrf.mxu0
  %v6020 = vadd.f32 %v5937, %v6019
  %v6021 = vpop.f32.mrf.mxu0
  %v6022 = vadd.f32 %v5939, %v6021
  %6023 = vmatmul.bf16.gmra.mxu0 %v5562
  %v6024 = vpop.f32.mrf.mxu0
  %v6025 = vadd.f32 %v5942, %v6024
  %v6026 = vpop.f32.mrf.mxu0
  %v6027 = vadd.f32 %v5944, %v6026
  %6028 = vmatmul.bf16.gmra.mxu0 %v5565
  %v6029 = vpop.f32.mrf.mxu0
  %v6030 = vadd.f32 %v5947, %v6029
  %v6031 = vpop.f32.mrf.mxu0
  %v6032 = vadd.f32 %v5949, %v6031
  %6033 = vmatmul.bf16.gmra.mxu0 %v5568
  %v6034 = vpop.f32.mrf.mxu0
  %v6035 = vadd.f32 %v5952, %v6034
  %v6036 = vpop.f32.mrf.mxu0
  %v6037 = vadd.f32 %v5954, %v6036
  %6038 = vmatmul.bf16.gmra.mxu0 %v5571
  %v6039 = vpop.f32.mrf.mxu0
  %v6040 = vadd.f32 %v5957, %v6039
  %v6041 = vpop.f32.mrf.mxu0
  %v6042 = vadd.f32 %v5959, %v6041
  %6043 = vmatmul.bf16.gmra.mxu0 %v5574
  %v6044 = vpop.f32.mrf.mxu0
  %v6045 = vadd.f32 %v5962, %v6044
  %v6046 = vpop.f32.mrf.mxu0
  %v6047 = vadd.f32 %v5964, %v6046
  %6048 = vmatmul.bf16.gmra.mxu0 %v5577
  %v6049 = vpop.f32.mrf.mxu0
  %v6050 = vadd.f32 %v5967, %v6049
  %v6051 = vpop.f32.mrf.mxu0
  %v6052 = vadd.f32 %v5969, %v6051
  %6053 = vmatmul.bf16.gmra.mxu0 %v5580
  %v6054 = vpop.f32.mrf.mxu0
  %v6055 = vadd.f32 %v5972, %v6054
  %v6056 = vpop.f32.mrf.mxu0
  %v6057 = vadd.f32 %v5974, %v6056
  %6058 = vmatmul.bf16.gmra.mxu0 %v5583
  %v6059 = vpop.f32.mrf.mxu0
  %v6060 = vadd.f32 %v5977, %v6059
  %v6061 = vpop.f32.mrf.mxu0
  %v6062 = vadd.f32 %v5979, %v6061
  %6063 = vmatmul.bf16.gmra.mxu0 %v5586
  %v6064 = vpop.f32.mrf.mxu0
  %v6065 = vadd.f32 %v5982, %v6064
  %v6066 = vpop.f32.mrf.mxu0
  %v6067 = vadd.f32 %v5984, %v6066
  %6068 = vmatmul.bf16.gmra.mxu0 %v5589
  %v6069 = vpop.f32.mrf.mxu0
  %v6070 = vadd.f32 %v5987, %v6069
  %v6071 = vpop.f32.mrf.mxu0
  %v6072 = vadd.f32 %v5989, %v6071
  %6073 = vmatmul.bf16.gmra.mxu0 %v5592
  %v6074 = vpop.f32.mrf.mxu0
  %v6075 = vadd.f32 %v5992, %v6074
  %v6076 = vpop.f32.mrf.mxu0
  %6077 = vdwg.mxu0
  %6078 = vmatpush.bf16.msra.mxu0 0
  %6079 = vmatpush.bf16.msra.mxu0 0
  %6080 = vmatpush.bf16.msra.mxu0 0
  %6081 = vmatpush.bf16.msra.mxu0 0
  %6082 = vmatpush.bf16.msra.mxu0 0
  %6083 = vmatpush.bf16.msra.mxu0 0
  %6084 = vmatpush.bf16.msra.mxu0 0
  %6085 = vmatpush.bf16.msra.mxu0 %v5772
  %6086 = vmatmul.bf16.gmra.mxu0 %v5799
  %v6087 = vpop.f32.mrf.mxu0
  %v6088 = vadd.f32 %v6005, %v6087
  %v6089 = vpop.f32.mrf.mxu0
  %v6090 = vadd.f32 %v6007, %v6089
  %6091 = vmatmul.bf16.gmra.mxu0 %v5801
  %v6092 = vpop.f32.mrf.mxu0
  %v6093 = vadd.f32 %v6010, %v6092
  %v6094 = vpop.f32.mrf.mxu0
  %v6095 = vadd.f32 %v6012, %v6094
  %6096 = vmatmul.bf16.gmra.mxu0 %v5803
  %v6097 = vpop.f32.mrf.mxu0
  %v6098 = vadd.f32 %v6015, %v6097
  %v6099 = vpop.f32.mrf.mxu0
  %v6100 = vadd.f32 %v6017, %v6099
  %6101 = vmatmul.bf16.gmra.mxu0 %v5805
  %v6102 = vpop.f32.mrf.mxu0
  %v6103 = vadd.f32 %v6020, %v6102
  %v6104 = vpop.f32.mrf.mxu0
  %v6105 = vadd.f32 %v6022, %v6104
  %6106 = vmatmul.bf16.gmra.mxu0 %v5807
  %v6107 = vpop.f32.mrf.mxu0
  %v6108 = vadd.f32 %v6025, %v6107
  %v6109 = vpop.f32.mrf.mxu0
  %v6110 = vadd.f32 %v6027, %v6109
  %6111 = vmatmul.bf16.gmra.mxu0 %v5809
  %v6112 = vpop.f32.mrf.mxu0
  %v6113 = vadd.f32 %v6030, %v6112
  %v6114 = vpop.f32.mrf.mxu0
  %v6115 = vadd.f32 %v6032, %v6114
  %6116 = vmatmul.bf16.gmra.mxu0 %v5811
  %v6117 = vpop.f32.mrf.mxu0
  %v6118 = vadd.f32 %v6035, %v6117
  %v6119 = vpop.f32.mrf.mxu0
  %v6120 = vadd.f32 %v6037, %v6119
  %6121 = vmatmul.bf16.gmra.mxu0 %v5813
  %v6122 = vpop.f32.mrf.mxu0
  %v6123 = vadd.f32 %v6040, %v6122
  %v6124 = vpop.f32.mrf.mxu0
  %v6125 = vadd.f32 %v6042, %v6124
  %6126 = vmatmul.bf16.gmra.mxu0 %v5815
  %v6127 = vpop.f32.mrf.mxu0
  %v6128 = vadd.f32 %v6045, %v6127
  %v6129 = vpop.f32.mrf.mxu0
  %v6130 = vadd.f32 %v6047, %v6129
  %6131 = vmatmul.bf16.gmra.mxu0 %v5817
  %v6132 = vpop.f32.mrf.mxu0
  %v6133 = vadd.f32 %v6050, %v6132
  %v6134 = vpop.f32.mrf.mxu0
  %v6135 = vadd.f32 %v6052, %v6134
  %6136 = vmatmul.bf16.gmra.mxu0 %v5819
  %v6137 = vpop.f32.mrf.mxu0
  %v6138 = vadd.f32 %v6055, %v6137
  %v6139 = vpop.f32.mrf.mxu0
  %v6140 = vadd.f32 %v6057, %v6139
  %6141 = vmatmul.bf16.gmra.mxu0 %v5821
  %v6142 = vpop.f32.mrf.mxu0
  %v6143 = vadd.f32 %v6060, %v6142
  %v6144 = vpop.f32.mrf.mxu0
  %v6145 = vadd.f32 %v6062, %v6144
  %6146 = vmatmul.bf16.gmra.mxu0 %v5823
  %v6147 = vpop.f32.mrf.mxu0
  %v6148 = vadd.f32 %v6065, %v6147
  %v6149 = vpop.f32.mrf.mxu0
  %v6150 = vadd.f32 %v6067, %v6149
  %6151 = vmatmul.bf16.gmra.mxu0 %v5825
  %v6152 = vpop.f32.mrf.mxu0
  %v6153 = vadd.f32 %v6070, %v6152
  %v6154 = vpop.f32.mrf.mxu0
  %v6155 = vadd.f32 %v6072, %v6154
  %6156 = vmatmul.bf16.gmra.mxu0 %v5827
  %v6157 = vpop.f32.mrf.mxu0
  %v6158 = vadd.f32 %v6075, %v6157
  %v6159 = vpop.f32.mrf.mxu0
  %6160 = vdwg.mxu0
  %v6161 = vmax.f32 %v6088, 0.0
  %v6162 = vmax.f32 %v6090, 0.0
  %v6163 = vmax.f32 %v6093, 0.0
  %v6164 = vmax.f32 %v6095, 0.0
  %v6165 = vmax.f32 %v6098, 0.0
  %v6166 = vmax.f32 %v6100, 0.0
  %v6167 = vmax.f32 %v6103, 0.0
  %v6168 = vmax.f32 %v6105, 0.0
  %v6169 = vmax.f32 %v6108, 0.0
  %v6170 = vmax.f32 %v6110, 0.0
  %v6171 = vmax.f32 %v6113, 0.0
  %v6172 = vmax.f32 %v6115, 0.0
  %v6173 = vmax.f32 %v6118, 0.0
  %v6174 = vmax.f32 %v6120, 0.0
  %v6175 = vmax.f32 %v6123, 0.0
  %v6176 = vmax.f32 %v6125, 0.0
  %v6177 = vmax.f32 %v6128, 0.0
  %v6178 = vmax.f32 %v6130, 0.0
  %v6179 = vmax.f32 %v6133, 0.0
  %v6180 = vmax.f32 %v6135, 0.0
  %v6181 = vmax.f32 %v6138, 0.0
  %v6182 = vmax.f32 %v6140, 0.0
  %v6183 = vmax.f32 %v6143, 0.0
  %v6184 = vmax.f32 %v6145, 0.0
  %v6185 = vmax.f32 %v6148, 0.0
  %v6186 = vmax.f32 %v6150, 0.0
  %v6187 = vmax.f32 %v6153, 0.0
  %v6188 = vmax.f32 %v6155, 0.0
  %v6189 = vmax.f32 %v6158, 0.0
  %v6190 = vpack.c.bf16 %v6162, %v6161
  %v6191 = vpack.c.bf16 %v6164, %v6163
  %v6192 = vpack.c.bf16 %v6166, %v6165
  %v6193 = vpack.c.bf16 %v6168, %v6167
  %v6194 = vpack.c.bf16 %v6170, %v6169
  %v6195 = vpack.c.bf16 %v6172, %v6171
  %v6196 = vpack.c.bf16 %v6174, %v6173
  %v6197 = vpack.c.bf16 %v6176, %v6175
  %v6198 = vpack.c.bf16 %v6178, %v6177
  %v6199 = vpack.c.bf16 %v6180, %v6179
  %v6200 = vpack.c.bf16 %v6182, %v6181
  %v6201 = vpack.c.bf16 %v6184, %v6183
  %v6202 = vpack.c.bf16 %v6186, %v6185
  %v6203 = vpack.c.bf16 %v6188, %v6187
  %v6204 = vpack.c.bf16 %v6189, %v6189
  %v6205 = vld [vmem:[%s11] sm:$0xf]
  %v6206 = vld [vmem:[%s11 + $0x4] sm:$0xf]
  %v6207 = vld [vmem:[%s11 + $0x8] sm:$0xf]
  %v6208 = vld [vmem:[%s11 + $0xc] sm:$0xf]
  %v6209 = vld [vmem:[%s11 + $0x10] sm:$0xf]
  %v6210 = vld [vmem:[%s11 + $0x14] sm:$0xf]
  %v6211 = vld [vmem:[%s11 + $0x18] sm:$0xf]
  %v6212 = vld [vmem:[%s11 + $0x1c] sm:$0xf]
  %v6213 = vld [vmem:[%s11 + $0x20] sm:$0xf]
  %v6214 = vld [vmem:[%s11 + $0x24] sm:$0xf]
  %v6215 = vld [vmem:[%s11 + $0x28] sm:$0xf]
  %v6216 = vld [vmem:[%s11 + $0x2c] sm:$0xf]
  %v6217 = vld [vmem:[%s11 + $0x30] sm:$0xf]
  %v6218 = vld [vmem:[%s11 + $0x34] sm:$0xf]
  %v6219 = vld [vmem:[%s11 + $0x38] sm:$0xf]
  %v6220 = vld [vmem:[%s12] sm:$0x1]
  %v6222 = vperm.slane %v6220, 0
  %v6239 = vunpack.c.l.b16 %v6205
  %v6240 = vunpack.c.l.b16 %v6206
  %v6241 = vunpack.c.l.b16 %v6207
  %v6242 = vunpack.c.l.b16 %v6208
  %v6243 = vunpack.c.l.b16 %v6209
  %v6244 = vunpack.c.l.b16 %v6210
  %v6245 = vunpack.c.l.b16 %v6211
  %v6246 = vunpack.c.l.b16 %v6212
  %v6247 = vunpack.c.l.b16 %v6213
  %v6248 = vunpack.c.l.b16 %v6214
  %v6249 = vunpack.c.l.b16 %v6215
  %v6250 = vunpack.c.l.b16 %v6216
  %v6251 = vunpack.c.l.b16 %v6217
  %v6252 = vunpack.c.l.b16 %v6218
  %v6253 = vunpack.c.l.b16 %v6219
  %v6254 = vpack.c.b16 %v6240, %v6239
  %v6255 = vpack.c.b16 %v6242, %v6241
  %v6256 = vpack.c.b16 %v6244, %v6243
  %v6257 = vpack.c.b16 %v6246, %v6245
  %v6258 = vpack.c.b16 %v6248, %v6247
  %v6259 = vpack.c.b16 %v6250, %v6249
  %v6260 = vpack.c.b16 %v6252, %v6251
  %v6261 = vpack.c.b16 %v6253, %v6253
  %vm6269 = vcmask 982016
  %v6271 = vsel %vm6269, %v6190, 0
  %v6274 = vsel %vm6269, %v6191, 0
  %v6277 = vsel %vm6269, %v6192, 0
  %v6280 = vsel %vm6269, %v6193, 0
  %v6283 = vsel %vm6269, %v6194, 0
  %v6286 = vsel %vm6269, %v6195, 0
  %v6289 = vsel %vm6269, %v6196, 0
  %v6292 = vsel %vm6269, %v6197, 0
  %v6295 = vsel %vm6269, %v6198, 0
  %v6298 = vsel %vm6269, %v6199, 0
  %v6301 = vsel %vm6269, %v6200, 0
  %v6304 = vsel %vm6269, %v6201, 0
  %v6307 = vsel %vm6269, %v6202, 0
  %v6310 = vsel %vm6269, %v6203, 0
  %v6313 = vsel %vm6269, %v6204, 0
  %v6316 = vsel %vm2017, %v6261, 0
  %6318 = vmatpush.bf16.msra.mxu0 %v6316
  %6319 = vmatpush.bf16.msra.mxu0 %v6260
  %6320 = vmatpush.bf16.msra.mxu0 %v6259
  %6321 = vmatpush.bf16.msra.mxu0 %v6258
  %6322 = vmatpush.bf16.msra.mxu0 %v6257
  %6323 = vmatpush.bf16.msra.mxu0 %v6256
  %6324 = vmatpush.bf16.msra.mxu0 %v6255
  %6325 = vmatpush.bf16.msra.mxu0 %v6254
  %6326 = vmatmul.bf16.gmra.mxu0 %v6271
  %v6327 = vpop.f32.mrf.mxu0
  %v6328 = vadd.f32 %v6222, %v6327
  %v6329 = vpop.f32.mrf.mxu0
  %v6330 = vadd.f32 %v6222, %v6329
  %6331 = vmatmul.bf16.gmra.mxu0 %v6274
  %v6332 = vpop.f32.mrf.mxu0
  %v6333 = vadd.f32 %v6222, %v6332
  %v6334 = vpop.f32.mrf.mxu0
  %v6335 = vadd.f32 %v6222, %v6334
  %6336 = vmatmul.bf16.gmra.mxu0 %v6277
  %v6337 = vpop.f32.mrf.mxu0
  %v6338 = vadd.f32 %v6222, %v6337
  %v6339 = vpop.f32.mrf.mxu0
  %v6340 = vadd.f32 %v6222, %v6339
  %6341 = vmatmul.bf16.gmra.mxu0 %v6280
  %v6342 = vpop.f32.mrf.mxu0
  %v6343 = vadd.f32 %v6222, %v6342
  %v6344 = vpop.f32.mrf.mxu0
  %v6345 = vadd.f32 %v6222, %v6344
  %6346 = vmatmul.bf16.gmra.mxu0 %v6283
  %v6347 = vpop.f32.mrf.mxu0
  %v6348 = vadd.f32 %v6222, %v6347
  %v6349 = vpop.f32.mrf.mxu0
  %v6350 = vadd.f32 %v6222, %v6349
  %6351 = vmatmul.bf16.gmra.mxu0 %v6286
  %v6352 = vpop.f32.mrf.mxu0
  %v6353 = vadd.f32 %v6222, %v6352
  %v6354 = vpop.f32.mrf.mxu0
  %v6355 = vadd.f32 %v6222, %v6354
  %6356 = vmatmul.bf16.gmra.mxu0 %v6289
  %v6357 = vpop.f32.mrf.mxu0
  %v6358 = vadd.f32 %v6222, %v6357
  %v6359 = vpop.f32.mrf.mxu0
  %v6360 = vadd.f32 %v6222, %v6359
  %6361 = vmatmul.bf16.gmra.mxu0 %v6292
  %v6362 = vpop.f32.mrf.mxu0
  %v6363 = vadd.f32 %v6222, %v6362
  %v6364 = vpop.f32.mrf.mxu0
  %v6365 = vadd.f32 %v6222, %v6364
  %6366 = vmatmul.bf16.gmra.mxu0 %v6295
  %v6367 = vpop.f32.mrf.mxu0
  %v6368 = vadd.f32 %v6222, %v6367
  %v6369 = vpop.f32.mrf.mxu0
  %v6370 = vadd.f32 %v6222, %v6369
  %6371 = vmatmul.bf16.gmra.mxu0 %v6298
  %v6372 = vpop.f32.mrf.mxu0
  %v6373 = vadd.f32 %v6222, %v6372
  %v6374 = vpop.f32.mrf.mxu0
  %v6375 = vadd.f32 %v6222, %v6374
  %6376 = vmatmul.bf16.gmra.mxu0 %v6301
  %v6377 = vpop.f32.mrf.mxu0
  %v6378 = vadd.f32 %v6222, %v6377
  %v6379 = vpop.f32.mrf.mxu0
  %v6380 = vadd.f32 %v6222, %v6379
  %6381 = vmatmul.bf16.gmra.mxu0 %v6304
  %v6382 = vpop.f32.mrf.mxu0
  %v6383 = vadd.f32 %v6222, %v6382
  %v6384 = vpop.f32.mrf.mxu0
  %v6385 = vadd.f32 %v6222, %v6384
  %6386 = vmatmul.bf16.gmra.mxu0 %v6307
  %v6387 = vpop.f32.mrf.mxu0
  %v6388 = vadd.f32 %v6222, %v6387
  %v6389 = vpop.f32.mrf.mxu0
  %v6390 = vadd.f32 %v6222, %v6389
  %6391 = vmatmul.bf16.gmra.mxu0 %v6310
  %v6392 = vpop.f32.mrf.mxu0
  %v6393 = vadd.f32 %v6222, %v6392
  %v6394 = vpop.f32.mrf.mxu0
  %v6395 = vadd.f32 %v6222, %v6394
  %6396 = vmatmul.bf16.gmra.mxu0 %v6313
  %v6397 = vpop.f32.mrf.mxu0
  %v6398 = vadd.f32 %v6222, %v6397
  %v6399 = vpop.f32.mrf.mxu0
  %6400 = vdwg.mxu0
  %v6401 = vmax.f32 %v6328, 0.0
  %v6402 = vmax.f32 %v6330, 0.0
  %v6403 = vmax.f32 %v6333, 0.0
  %v6404 = vmax.f32 %v6335, 0.0
  %v6405 = vmax.f32 %v6338, 0.0
  %v6406 = vmax.f32 %v6340, 0.0
  %v6407 = vmax.f32 %v6343, 0.0
  %v6408 = vmax.f32 %v6345, 0.0
  %v6409 = vmax.f32 %v6348, 0.0
  %v6410 = vmax.f32 %v6350, 0.0
  %v6411 = vmax.f32 %v6353, 0.0
  %v6412 = vmax.f32 %v6355, 0.0
  %v6413 = vmax.f32 %v6358, 0.0
  %v6414 = vmax.f32 %v6360, 0.0
  %v6415 = vmax.f32 %v6363, 0.0
  %v6416 = vmax.f32 %v6365, 0.0
  %v6417 = vmax.f32 %v6368, 0.0
  %v6418 = vmax.f32 %v6370, 0.0
  %v6419 = vmax.f32 %v6373, 0.0
  %v6420 = vmax.f32 %v6375, 0.0
  %v6421 = vmax.f32 %v6378, 0.0
  %v6422 = vmax.f32 %v6380, 0.0
  %v6423 = vmax.f32 %v6383, 0.0
  %v6424 = vmax.f32 %v6385, 0.0
  %v6425 = vmax.f32 %v6388, 0.0
  %v6426 = vmax.f32 %v6390, 0.0
  %v6427 = vmax.f32 %v6393, 0.0
  %v6428 = vmax.f32 %v6395, 0.0
  %v6429 = vmax.f32 %v6398, 0.0
  %v6430 = vpack.c.bf16 %v6402, %v6401
  %v6431 = vpack.c.bf16 %v6404, %v6403
  %v6432 = vpack.c.bf16 %v6406, %v6405
  %v6433 = vpack.c.bf16 %v6408, %v6407
  %v6434 = vpack.c.bf16 %v6410, %v6409
  %v6435 = vpack.c.bf16 %v6412, %v6411
  %v6436 = vpack.c.bf16 %v6414, %v6413
  %v6437 = vpack.c.bf16 %v6416, %v6415
  %v6438 = vpack.c.bf16 %v6418, %v6417
  %v6439 = vpack.c.bf16 %v6420, %v6419
  %v6440 = vpack.c.bf16 %v6422, %v6421
  %v6441 = vpack.c.bf16 %v6424, %v6423
  %v6442 = vpack.c.bf16 %v6426, %v6425
  %v6443 = vpack.c.bf16 %v6428, %v6427
  %v6444 = vpack.c.bf16 %v6429, %v6429
  %v6445 = vld [vmem:[%s13] sm:$0xf]
  %v6446 = vld [vmem:[%s13 + $0x4] sm:$0xf]
  %v6447 = vld [vmem:[%s13 + $0x8] sm:$0xf]
  %v6448 = vld [vmem:[%s13 + $0xc] sm:$0xf]
  %v6449 = vld [vmem:[%s13 + $0x10] sm:$0xf]
  %v6450 = vld [vmem:[%s13 + $0x14] sm:$0xf]
  %v6451 = vld [vmem:[%s13 + $0x18] sm:$0xf]
  %v6452 = vld [vmem:[%s13 + $0x1c] sm:$0xf]
  %v6453 = vld [vmem:[%s13 + $0x20] sm:$0xf]
  %v6454 = vld [vmem:[%s13 + $0x24] sm:$0xf]
  %v6455 = vld [vmem:[%s13 + $0x28] sm:$0x3]
  %v6456 = vld [vmem:[%s14] sm:$0x1]
  %v6458 = vperm.slane %v6456, 0
  %v6471 = vunpack.c.l.b16 %v6445
  %v6472 = vunpack.c.l.b16 %v6446
  %v6473 = vunpack.c.l.b16 %v6447
  %v6474 = vunpack.c.l.b16 %v6448
  %v6475 = vunpack.c.l.b16 %v6449
  %v6476 = vunpack.c.l.b16 %v6450
  %v6477 = vunpack.c.l.b16 %v6451
  %v6478 = vunpack.c.l.b16 %v6452
  %v6479 = vunpack.c.l.b16 %v6453
  %v6480 = vunpack.c.l.b16 %v6454
  %v6481 = vunpack.c.l.b16 %v6455
  %v6482 = vpack.c.b16 %v6472, %v6471
  %v6483 = vpack.c.b16 %v6474, %v6473
  %v6484 = vpack.c.b16 %v6476, %v6475
  %v6485 = vpack.c.b16 %v6478, %v6477
  %v6486 = vpack.c.b16 %v6480, %v6479
  %v6487 = vpack.c.b16 %v6481, %v6481
  %v6494 = vsel %vm3007, %v6430, 0
  %v6497 = vsel %vm3007, %v6431, 0
  %v6500 = vsel %vm3007, %v6432, 0
  %v6503 = vsel %vm3007, %v6433, 0
  %v6506 = vsel %vm3007, %v6434, 0
  %v6509 = vsel %vm3007, %v6435, 0
  %v6512 = vsel %vm3007, %v6436, 0
  %v6515 = vsel %vm3007, %v6437, 0
  %v6518 = vsel %vm3007, %v6438, 0
  %v6521 = vsel %vm3007, %v6439, 0
  %v6524 = vsel %vm3007, %v6440, 0
  %v6527 = vsel %vm3007, %v6441, 0
  %v6530 = vsel %vm3007, %v6442, 0
  %v6533 = vsel %vm3007, %v6443, 0
  %v6536 = vsel %vm3007, %v6444, 0
  %v6539 = vsel %vm3559, %v6487, 0
  %6541 = vmatpush.bf16.msra.mxu0 0
  %6542 = vmatpush.bf16.msra.mxu0 0
  %6543 = vmatpush.bf16.msra.mxu0 %v6539
  %6544 = vmatpush.bf16.msra.mxu0 %v6486
  %6545 = vmatpush.bf16.msra.mxu0 %v6485
  %6546 = vmatpush.bf16.msra.mxu0 %v6484
  %6547 = vmatpush.bf16.msra.mxu0 %v6483
  %6548 = vmatpush.bf16.msra.mxu0 %v6482
  %6549 = vmatmul.bf16.gmra.mxu0 %v6494
  %v6550 = vpop.f32.mrf.mxu0
  %v6551 = vadd.f32 %v6458, %v6550
  %v6552 = vpop.f32.mrf.mxu0
  %v6553 = vadd.f32 %v6458, %v6552
  %6554 = vmatmul.bf16.gmra.mxu0 %v6497
  %v6555 = vpop.f32.mrf.mxu0
  %v6556 = vadd.f32 %v6458, %v6555
  %v6557 = vpop.f32.mrf.mxu0
  %v6558 = vadd.f32 %v6458, %v6557
  %6559 = vmatmul.bf16.gmra.mxu0 %v6500
  %v6560 = vpop.f32.mrf.mxu0
  %v6561 = vadd.f32 %v6458, %v6560
  %v6562 = vpop.f32.mrf.mxu0
  %v6563 = vadd.f32 %v6458, %v6562
  %6564 = vmatmul.bf16.gmra.mxu0 %v6503
  %v6565 = vpop.f32.mrf.mxu0
  %v6566 = vadd.f32 %v6458, %v6565
  %v6567 = vpop.f32.mrf.mxu0
  %v6568 = vadd.f32 %v6458, %v6567
  %6569 = vmatmul.bf16.gmra.mxu0 %v6506
  %v6570 = vpop.f32.mrf.mxu0
  %v6571 = vadd.f32 %v6458, %v6570
  %v6572 = vpop.f32.mrf.mxu0
  %v6573 = vadd.f32 %v6458, %v6572
  %6574 = vmatmul.bf16.gmra.mxu0 %v6509
  %v6575 = vpop.f32.mrf.mxu0
  %v6576 = vadd.f32 %v6458, %v6575
  %v6577 = vpop.f32.mrf.mxu0
  %v6578 = vadd.f32 %v6458, %v6577
  %6579 = vmatmul.bf16.gmra.mxu0 %v6512
  %v6580 = vpop.f32.mrf.mxu0
  %v6581 = vadd.f32 %v6458, %v6580
  %v6582 = vpop.f32.mrf.mxu0
  %v6583 = vadd.f32 %v6458, %v6582
  %6584 = vmatmul.bf16.gmra.mxu0 %v6515
  %v6585 = vpop.f32.mrf.mxu0
  %v6586 = vadd.f32 %v6458, %v6585
  %v6587 = vpop.f32.mrf.mxu0
  %v6588 = vadd.f32 %v6458, %v6587
  %6589 = vmatmul.bf16.gmra.mxu0 %v6518
  %v6590 = vpop.f32.mrf.mxu0
  %v6591 = vadd.f32 %v6458, %v6590
  %v6592 = vpop.f32.mrf.mxu0
  %v6593 = vadd.f32 %v6458, %v6592
  %6594 = vmatmul.bf16.gmra.mxu0 %v6521
  %v6595 = vpop.f32.mrf.mxu0
  %v6596 = vadd.f32 %v6458, %v6595
  %v6597 = vpop.f32.mrf.mxu0
  %v6598 = vadd.f32 %v6458, %v6597
  %6599 = vmatmul.bf16.gmra.mxu0 %v6524
  %v6600 = vpop.f32.mrf.mxu0
  %v6601 = vadd.f32 %v6458, %v6600
  %v6602 = vpop.f32.mrf.mxu0
  %v6603 = vadd.f32 %v6458, %v6602
  %6604 = vmatmul.bf16.gmra.mxu0 %v6527
  %v6605 = vpop.f32.mrf.mxu0
  %v6606 = vadd.f32 %v6458, %v6605
  %v6607 = vpop.f32.mrf.mxu0
  %v6608 = vadd.f32 %v6458, %v6607
  %6609 = vmatmul.bf16.gmra.mxu0 %v6530
  %v6610 = vpop.f32.mrf.mxu0
  %v6611 = vadd.f32 %v6458, %v6610
  %v6612 = vpop.f32.mrf.mxu0
  %v6613 = vadd.f32 %v6458, %v6612
  %6614 = vmatmul.bf16.gmra.mxu0 %v6533
  %v6615 = vpop.f32.mrf.mxu0
  %v6616 = vadd.f32 %v6458, %v6615
  %v6617 = vpop.f32.mrf.mxu0
  %v6618 = vadd.f32 %v6458, %v6617
  %6619 = vmatmul.bf16.gmra.mxu0 %v6536
  %v6620 = vpop.f32.mrf.mxu0
  %v6621 = vadd.f32 %v6458, %v6620
  %v6622 = vpop.f32.mrf.mxu0
  %6623 = vdwg.mxu0
  %vm6624 = vcmask 1040384
  %v6625 = vsel %vm6624, %v6621, 0.0
  %vm6626 = vcmask 80896
  %6627 = vst.msk [vmem:[%s15] sm:$0xff] %vm6626, %v6551
  %6628 = vst.msk [vmem:[%s15 + $0x8] sm:$0xff] %vm6626, %v6553
  %6629 = vst.msk [vmem:[%s15 + $0x10] sm:$0xff] %vm6626, %v6556
  %6630 = vst.msk [vmem:[%s15 + $0x18] sm:$0xff] %vm6626, %v6558
  %6631 = vst.msk [vmem:[%s15 + $0x20] sm:$0xff] %vm6626, %v6561
  %6632 = vst.msk [vmem:[%s15 + $0x28] sm:$0xff] %vm6626, %v6563
  %6633 = vst.msk [vmem:[%s15 + $0x30] sm:$0xff] %vm6626, %v6566
  %6634 = vst.msk [vmem:[%s15 + $0x38] sm:$0xff] %vm6626, %v6568
  %6635 = vst.msk [vmem:[%s15 + $0x40] sm:$0xff] %vm6626, %v6571
  %6636 = vst.msk [vmem:[%s15 + $0x48] sm:$0xff] %vm6626, %v6573
  %6637 = vst.msk [vmem:[%s15 + $0x50] sm:$0xff] %vm6626, %v6576
  %6638 = vst.msk [vmem:[%s15 + $0x58] sm:$0xff] %vm6626, %v6578
  %6639 = vst.msk [vmem:[%s15 + $0x60] sm:$0xff] %vm6626, %v6581
  %6640 = vst.msk [vmem:[%s15 + $0x68] sm:$0xff] %vm6626, %v6583
  %6641 = vst.msk [vmem:[%s15 + $0x70] sm:$0xff] %vm6626, %v6586
  %6642 = vst.msk [vmem:[%s15 + $0x78] sm:$0xff] %vm6626, %v6588
  %6643 = vst.msk [vmem:[%s15 + $0x80] sm:$0xff] %vm6626, %v6591
  %6644 = vst.msk [vmem:[%s15 + $0x88] sm:$0xff] %vm6626, %v6593
  %6645 = vst.msk [vmem:[%s15 + $0x90] sm:$0xff] %vm6626, %v6596
  %6646 = vst.msk [vmem:[%s15 + $0x98] sm:$0xff] %vm6626, %v6598
  %6647 = vst.msk [vmem:[%s15 + $0xa0] sm:$0xff] %vm6626, %v6601
  %6648 = vst.msk [vmem:[%s15 + $0xa8] sm:$0xff] %vm6626, %v6603
  %6649 = vst.msk [vmem:[%s15 + $0xb0] sm:$0xff] %vm6626, %v6606
  %6650 = vst.msk [vmem:[%s15 + $0xb8] sm:$0xff] %vm6626, %v6608
  %6651 = vst.msk [vmem:[%s15 + $0xc0] sm:$0xff] %vm6626, %v6611
  %6652 = vst.msk [vmem:[%s15 + $0xc8] sm:$0xff] %vm6626, %v6613
  %6653 = vst.msk [vmem:[%s15 + $0xd0] sm:$0xff] %vm6626, %v6616
  %6654 = vst.msk [vmem:[%s15 + $0xd8] sm:$0xff] %vm6626, %v6618
  %6655 = vst.msk [vmem:[%s15 + $0xe0] sm:$0xff] %vm6626, %v6625
  %6656 = vst.msk [vmem:[%s15 + $0xe8] sm:$0xff] %vm6626, 0.0
  %6657 = vst.msk [vmem:[%s15 + $0xf0] sm:$0xff] %vm6626, 0.0
  %6658 = vst.msk [vmem:[%s15 + $0xf8] sm:$0xff] %vm6626, 0.0
  // Predicated region
  $region62: #{lenet_forward.1} parent=0 // pred_check
    _
  $region63: #{lenet_forward.1} parent=0 // pred_check_branch
    %6660 = sbr.rel (0) target = $region65
  $region64: #{lenet_forward.1} parent=0 // pred_region
    _
  $region65: #{lenet_forward.1} parent=0 // pred_fallthru
    _
  // Predicated region
  $region66: #{lenet_forward.1} parent=0 // pred_check
    _
  $region67: #{lenet_forward.1} parent=0 // pred_check_branch
    %6662 = sbr.rel (0) target = $region69
  $region68: #{lenet_forward.1} parent=0 // pred_region
    _
  $region69: #{lenet_forward.1} parent=0 // pred_fallthru
    _

</llo_original>
